<compile_context>
chip_gen: v7x
topology: tpu7x:2x2x1
jax: 0.10.0
libtpu: 0.0.40
codegen_flags: <defaults>
</compile_context>

<pallas_src>
import functools

import jax
import jax.numpy as jnp
from jax import lax
from jax.experimental import pallas as pl
from jax.experimental.pallas import tpu as pltpu


# ---------------------------------------------------------------------------
# Fused kernel: all LSTM layers + TimeDistributed Linear(H,1) + sigmoid.
#
# Inputs (refs, in order):
#   x:       (T, N, Din)                     time-major input sequence
#   per layer l in [0, L):
#     w_ih:  (Din_l, 4H)   = PyTorch weight_ih_l0.T
#     w_hh:  (H,     4H)   = PyTorch weight_hh_l0.T
#     b:     (1,     4H)   = bias_ih_l0 + bias_hh_l0
#     h0,c0: (N, H)        learned initial hidden / cell state
#   lin_w:   (1, H)        final Linear weight (row vector)
#   lin_b:   (1, 1)        final Linear bias
# Output:
#   out:     (T, N, 1)     sigmoid(h_last @ lin_w.T + lin_b), written per step
# Scratch:
#   seq_scr:  (T, N, H)    hidden sequence of the current (non-last) layer
#   proj_scr: (T, N, 4H)   hoisted input projection of the current layer
#
# Gate order matches PyTorch: [i, f, g, o].
# ---------------------------------------------------------------------------
def make_fused_kernel(lstm_layers, T, N, H):
    n_in = 1 + 5 * lstm_layers + 2
    unroll = True if T <= 16 else 4
    # Keep W_hh resident in vregs only if it is <= ~8 vregs (32 KiB of f32);
    # otherwise stream it from VMEM inside the per-step dot (vld slots have
    # slack; spilling inside the unrolled serial loop is far worse).
    hoist_whh = (4 * H * H * 4) <= 32 * 1024

    def kernel(*refs):
        x_ref = refs[0]
        layer_refs = [refs[1 + 5 * l: 1 + 5 * (l + 1)] for l in range(lstm_layers)]
        lin_w_ref = refs[1 + 5 * lstm_layers]
        lin_b_ref = refs[2 + 5 * lstm_layers]
        out_ref = refs[n_in]
        seq_scr, proj_scr = refs[n_in + 1], refs[n_in + 2]

        # Hoisted per-lane affine constants replacing per-step jnp.where
        # selects in the gate math:
        #   sigmoid(x) = 0.5*tanh(0.5*x) + 0.5   (i, f, o lanes)
        #   tanh(x)                              (g lanes)
        # expressed uniformly as tanh(x*s)*s + b with s in {0.5, 1}, b in
        # {0.5, 0}.  Built once (JAX will not CSE these if left inline).
        lane = lax.broadcasted_iota(jnp.int32, (1, 4 * H), 1)
        is_g = (lane >= 2 * H) & (lane < 3 * H)
        gate_scale = jnp.where(is_g, 1.0, 0.5).astype(jnp.float32)   # (1, 4H)
        gate_bias = jnp.where(is_g, 0.0, 0.5).astype(jnp.float32)    # (1, 4H)

        # Final Linear(H, 1) params, hoisted once; used fused inside the last
        # layer's time loop.
        w_out = lin_w_ref[...]          # (1, H)
        b_out = lin_b_ref[...]          # (1, 1)

        for l in range(lstm_layers):
            w_ih_ref, w_hh_ref, b_ref, h0_ref, c0_ref = layer_refs[l]
            din = w_ih_ref.shape[0]
            is_last = (l == lstm_layers - 1)

            # --- Hoisted input projection: one large matmul per layer ------
            if l == 0:
                x_in = x_ref[...].reshape(T * N, din)
            else:
                x_in = seq_scr[...].reshape(T * N, H)   # previous layer output
            proj = jnp.dot(x_in, w_ih_ref[...],
                           preferred_element_type=jnp.float32) + b_ref[...]
            proj_scr[...] = proj.reshape(T, N, 4 * H)

            # --- Recurrence: only h @ W_hh + gate math stays in the loop ---
            w_hh = w_hh_ref[...] if hoist_whh else None
            # TODO(synk): park W_hh in the MXU weight registers across the
            # time loop (pltpu.matmul_push_rhs / matmul_acc_lhs / matmul_pop)
            # to drop per-step RHS staging from the serial chain.

            def step(t, carry):
                h, c = carry
                w = w_hh if hoist_whh else w_hh_ref[...]
                # NOTE: default MXU precision chosen deliberately (reference
                # uses Precision.HIGHEST); parity validated to 5e-3.
                gates = proj_scr[t] + jnp.dot(
                    h, w, preferred_element_type=jnp.float32)        # (N, 4H)
                # One full-width EUP tanh pass + hoisted affine constants.
                acts = jnp.tanh(gates * gate_scale) * gate_scale + gate_bias
                i_g = acts[:, 0 * H:1 * H]
                f_g = acts[:, 1 * H:2 * H]
                g_g = acts[:, 2 * H:3 * H]
                o_g = acts[:, 3 * H:4 * H]
                c_new = f_g * c + i_g * g_g
                h_new = o_g * jnp.tanh(c_new)
                if is_last:
                    # Fused TimeDistributed Linear(H,1) + sigmoid: the XLU
                    # lane reduction rides under the MXU/EUP-bound recurrence;
                    # no seq_scr store and no separate epilogue pass.
                    logit = jnp.sum(h_new * w_out, axis=-1,
                                    keepdims=True) + b_out           # (N, 1)
                    out_ref[t] = 0.5 * jnp.tanh(0.5 * logit) + 0.5
                else:
                    seq_scr[t] = h_new
                return (h_new, c_new)

            # (h, c) live in the loop carry (vregs) -> no per-step VMEM
            # round trip on the serial recurrence.
            lax.fori_loop(0, T, step, (h0_ref[...], c0_ref[...]), unroll=unroll)
            # TODO(synk): nn.Dropout between layers treated as identity
            # (eval-mode semantics); training-mode Bernoulli masking omitted.

    return kernel


# ---------------------------------------------------------------------------
# Wrapper: pad batch to sublane multiple, run the fused kernel, restore layout.
# ---------------------------------------------------------------------------
@functools.partial(jax.jit, static_argnames=("lstm_layers",))
def rnn_char_tagger_forward(X, params, *, lstm_layers):
    # X: (N, T, input_dim), batch_first like the PyTorch module.
    N, T, Din = X.shape
    H = params["lstm"][0]["h0"].shape[-1]
    N_pad = max(8, pl.cdiv(N, 8) * 8)                    # sublane-friendly batch

    x = jnp.transpose(X, (1, 0, 2))                      # -> (T, N, Din)
    x = jnp.pad(x, ((0, 0), (0, N_pad - N), (0, 0)))

    flat_inputs = [x]
    dims = []
    for i in range(lstm_layers):
        lp = params["lstm"][i]
        dims.append(lp["w_ih"].shape[0])
        h0 = jnp.pad(lp["h0"], ((0, N_pad - N), (0, 0)))
        c0 = jnp.pad(lp["c0"], ((0, N_pad - N), (0, 0)))
        flat_inputs += [lp["w_ih"], lp["w_hh"], lp["b"], h0, c0]
    flat_inputs += [params["lin_w"], params["lin_b"]]

    # Explicit VMEM budget in BYTES, sized per hardware generation from the
    # actual capacity (leaves ~22% headroom for the compiler), instead of a
    # fixed 32 MiB clamp.
    elems = T * N_pad * Din + T * N_pad * 128            # x + (tile-padded) out
    for d in dims:
        elems += d * 4 * H + H * 4 * H + 4 * H + 2 * N_pad * H
    elems += H + 1                                        # lin_w, lin_b
    elems += T * N_pad * H + T * N_pad * 4 * H            # seq_scr + proj_scr
    bytes_needed = 4 * elems                               # f32
    try:
        cap = int(getattr(pltpu.get_tpu_info(), "vmem_capacity_bytes",
                          64 * 1024 * 1024))
    except Exception:  # interpret mode / query unavailable
        cap = 64 * 1024 * 1024
    budget = max((cap * 25) // 32, 32 * 1024 * 1024)       # 128MiB->100, 64->50
    vmem_limit = int(min(max(2 * bytes_needed, 16 * 1024 * 1024), budget))

    kernel = make_fused_kernel(lstm_layers, T, N_pad, H)
    vmem = pl.BlockSpec(memory_space=pltpu.MemorySpace.VMEM)

    out = pl.pallas_call(
        kernel,
        out_shape=jax.ShapeDtypeStruct((T, N_pad, 1), jnp.float32),
        in_specs=[vmem] * len(flat_inputs),
        out_specs=vmem,
        scratch_shapes=[
            pltpu.VMEM((T, N_pad, H), jnp.float32),       # seq_scr
            pltpu.VMEM((T, N_pad, 4 * H), jnp.float32),   # proj_scr
        ],
        compiler_params=pltpu.CompilerParams(vmem_limit_bytes=vmem_limit),
    )(*flat_inputs)
    # TODO(synk): v7x scaling -- T-chunk the hoisted projection into a
    # double-buffered pipeline (pltpu.emit_pipeline) so proj_scr/seq_scr need
    # not be fully VMEM-resident under 64 MiB, and shard the (independent)
    # batch across both TensorCores with a parallel grid axis; at these small
    # latency-bound shapes a single gridless invocation on one core is faster.

    y = jnp.transpose(out[:, :N, :], (1, 0, 2))           # (N, T, 1)
    return y


# ---------------------------------------------------------------------------
# Parameter init matching the PyTorch module (uniform LSTM/Linear init,
# normal_ learned h0/c0). Weights are pre-transposed for the kernel.
# ---------------------------------------------------------------------------
def init_params(key, lstm_layers, input_dim, out_dim, batch_size):
    params = {"lstm": []}
    H = out_dim
    scale = 1.0 / jnp.sqrt(jnp.float32(H))
    for i in range(lstm_layers):
        din = input_dim if i == 0 else out_dim
        key, k1, k2, k3, k4, k5, k6 = jax.random.split(key, 7)
        w_ih = jax.random.uniform(k1, (4 * H, din), jnp.float32, -scale, scale)
        w_hh = jax.random.uniform(k2, (4 * H, H), jnp.float32, -scale, scale)
        b_ih = jax.random.uniform(k3, (4 * H,), jnp.float32, -scale, scale)
        b_hh = jax.random.uniform(k4, (4 * H,), jnp.float32, -scale, scale)
        h0 = jax.random.normal(k5, (1, batch_size, H), jnp.float32)
        c0 = jax.random.normal(k6, (1, batch_size, H), jnp.float32)
        params["lstm"].append({
            "w_ih": w_ih.T,                       # (din, 4H)
            "w_hh": w_hh.T,                       # (H, 4H)
            "b": (b_ih + b_hh).reshape(1, 4 * H),
            "h0": h0.reshape(batch_size, H),
            "c0": c0.reshape(batch_size, H),
        })
    key, kw, kb = jax.random.split(key, 3)
    lin_scale = 1.0 / jnp.sqrt(jnp.float32(H))
    params["lin_w"] = jax.random.uniform(kw, (1, H), jnp.float32,
                                         -lin_scale, lin_scale)
    params["lin_b"] = jax.random.uniform(kb, (1,), jnp.float32,
                                         -lin_scale, lin_scale).reshape(1, 1)
    return params


# ---------------------------------------------------------------------------
# Pure-JAX reference (for correctness check of the fused kernel).
# ---------------------------------------------------------------------------
def ref_forward(X, params, lstm_layers):
    hp = functools.partial(jnp.dot, precision=jax.lax.Precision.HIGHEST)
    x = jnp.transpose(X, (1, 0, 2))                      # (T, N, Din)
    for i in range(lstm_layers):
        lp = params["lstm"][i]
        w_ih, w_hh, b = lp["w_ih"], lp["w_hh"], lp["b"]
        H = lp["h0"].shape[-1]

        def step(carry, x_t):
            h, c = carry
            gates = hp(x_t, w_ih) + hp(h, w_hh) + b
            i_g = jax.nn.sigmoid(gates[:, 0 * H:1 * H])
            f_g = jax.nn.sigmoid(gates[:, 1 * H:2 * H])
            g_g = jnp.tanh(gates[:, 2 * H:3 * H])
            o_g = jax.nn.sigmoid(gates[:, 3 * H:4 * H])
            c_n = f_g * c + i_g * g_g
            h_n = o_g * jnp.tanh(c_n)
            return (h_n, c_n), h_n

        (_, _), x = lax.scan(step, (lp["h0"], lp["c0"]), x)
    logits = jnp.sum(x * params["lin_w"].reshape(1, 1, -1), axis=-1) \
        + params["lin_b"][0, 0]
    y = jax.nn.sigmoid(logits)                           # (T, N)
    return jnp.transpose(y, (1, 0))[..., None]           # (N, T, 1)


if __name__ == "__main__":
    lstm_layers = 3
    input_dim = 16
    out_dim = 32
    batch_size = 2
    seq_len = 8

    key = jax.random.PRNGKey(0)
    key, kp, kx = jax.random.split(key, 3)
    params = init_params(kp, lstm_layers, input_dim, out_dim, batch_size)
    X = jax.random.normal(kx, (batch_size, seq_len, input_dim), jnp.float32)

    out = rnn_char_tagger_forward(X, params, lstm_layers=lstm_layers)
    out = jax.block_until_ready(out)

    assert out.shape == (batch_size, seq_len, 1), out.shape
    assert bool(jnp.all(jnp.isfinite(out)))
    assert bool(jnp.all((out >= 0.0) & (out <= 1.0)))

    ref = ref_forward(X, params, lstm_layers)
    assert bool(jnp.allclose(out, ref, atol=5e-3, rtol=5e-3)), (
        float(jnp.max(jnp.abs(out - ref))))

    print("KERNEL_OK")
</pallas_src>

<mosaic_0001>
module attributes {stable_mosaic.version = 11 : i64} {
  func.func @kernel(%arg0: memref<8x8x16xf32, #tpu.memory_space<vmem>>, %arg1: memref<16x128xf32, #tpu.memory_space<vmem>>, %arg2: memref<32x128xf32, #tpu.memory_space<vmem>>, %arg3: memref<1x128xf32, #tpu.memory_space<vmem>>, %arg4: memref<8x32xf32, #tpu.memory_space<vmem>>, %arg5: memref<8x32xf32, #tpu.memory_space<vmem>>, %arg6: memref<32x128xf32, #tpu.memory_space<vmem>>, %arg7: memref<32x128xf32, #tpu.memory_space<vmem>>, %arg8: memref<1x128xf32, #tpu.memory_space<vmem>>, %arg9: memref<8x32xf32, #tpu.memory_space<vmem>>, %arg10: memref<8x32xf32, #tpu.memory_space<vmem>>, %arg11: memref<32x128xf32, #tpu.memory_space<vmem>>, %arg12: memref<32x128xf32, #tpu.memory_space<vmem>>, %arg13: memref<1x128xf32, #tpu.memory_space<vmem>>, %arg14: memref<8x32xf32, #tpu.memory_space<vmem>>, %arg15: memref<8x32xf32, #tpu.memory_space<vmem>>, %arg16: memref<1x32xf32, #tpu.memory_space<vmem>>, %arg17: memref<1x1xf32, #tpu.memory_space<vmem>>, %arg18: memref<8x8x1xf32, #tpu.memory_space<vmem>>, %arg19: memref<8x8x32xf32, #tpu.memory_space<vmem>>, %arg20: memref<8x8x128xf32, #tpu.memory_space<vmem>>) attributes {dimension_semantics = [], scalar_prefetch = 0 : i64, scratch_operands = 2 : i64, tpu.core_type = #tpu.core_type<tc>} {
    %0 = tpu.iota {dimensions = array<i32: 1>} : vector<1x128xi32>
    %c64_i32 = arith.constant 64 : i32
    %1 = vector.broadcast %c64_i32 : i32 to vector<1x128xi32>
    %2 = arith.cmpi sge, %0, %1 : vector<1x128xi32>
    %c96_i32 = arith.constant 96 : i32
    %3 = vector.broadcast %c96_i32 : i32 to vector<1x128xi32>
    %4 = arith.cmpi slt, %0, %3 : vector<1x128xi32>
    %5 = arith.andi %2, %4 : vector<1x128xi1>
    %cst = arith.constant 1.000000e+00 : f32
    %cst_0 = arith.constant 5.000000e-01 : f32
    %6 = vector.broadcast %cst : f32 to vector<1x128xf32>
    %7 = vector.broadcast %cst_0 : f32 to vector<1x128xf32>
    %8 = arith.select %5, %6, %7 : vector<1x128xi1>, vector<1x128xf32>
    %cst_1 = arith.constant 0.000000e+00 : f32
    %cst_2 = arith.constant 5.000000e-01 : f32
    %9 = vector.broadcast %cst_1 : f32 to vector<1x128xf32>
    %10 = vector.broadcast %cst_2 : f32 to vector<1x128xf32>
    %11 = arith.select %5, %9, %10 : vector<1x128xi1>, vector<1x128xf32>
    %c0 = arith.constant 0 : index
    %c0_3 = arith.constant 0 : index
    %12 = vector.load %arg16[%c0, %c0_3] : memref<1x32xf32, #tpu.memory_space<vmem>>, vector<1x32xf32>
    %c0_4 = arith.constant 0 : index
    %c0_5 = arith.constant 0 : index
    %13 = vector.load %arg17[%c0_4, %c0_5] : memref<1x1xf32, #tpu.memory_space<vmem>>, vector<1x1xf32>
    %c0_6 = arith.constant 0 : index
    %c0_7 = arith.constant 0 : index
    %c0_8 = arith.constant 0 : index
    %14 = vector.load %arg0[%c0_6, %c0_7, %c0_8] : memref<8x8x16xf32, #tpu.memory_space<vmem>>, vector<8x8x16xf32>
    %15 = vector.shape_cast %14 : vector<8x8x16xf32> to vector<64x16xf32>
    %c0_9 = arith.constant 0 : index
    %c0_10 = arith.constant 0 : index
    %16 = vector.load %arg1[%c0_9, %c0_10] : memref<16x128xf32, #tpu.memory_space<vmem>>, vector<16x128xf32>
    %cst_11 = arith.constant dense<0.000000e+00> : vector<64x128xf32>
    %17 = tpu.matmul %15, %16, %cst_11 {dimension_numbers = #tpu.dot_dimension_numbers<[1], [0], [0], [1], [0, 0, 1, 1], [], []>} : vector<64x16xf32>, vector<16x128xf32>, vector<64x128xf32> -> vector<64x128xf32>
    %c0_12 = arith.constant 0 : index
    %c0_13 = arith.constant 0 : index
    %18 = vector.load %arg3[%c0_12, %c0_13] : memref<1x128xf32, #tpu.memory_space<vmem>>, vector<1x128xf32>
    %19 = vector.broadcast %18 : vector<1x128xf32> to vector<64x128xf32>
    %20 = arith.addf %17, %19 : vector<64x128xf32>
    %21 = vector.shape_cast %20 : vector<64x128xf32> to vector<8x8x128xf32>
    %c0_14 = arith.constant 0 : index
    %c0_15 = arith.constant 0 : index
    %c0_16 = arith.constant 0 : index
    %22 = vector.load %arg20[%c0_14, %c0_15, %c0_16] : memref<8x8x128xf32, #tpu.memory_space<vmem>>, vector<8x8x128xf32>
    tpu.vector_store %arg20[%c0_14, %c0_15, %c0_16], %21 {strides = array<i32>} : memref<8x8x128xf32, #tpu.memory_space<vmem>>, vector<8x8x128xf32>,
    %c0_17 = arith.constant 0 : index
    %c0_18 = arith.constant 0 : index
    %23 = vector.load %arg2[%c0_17, %c0_18] : memref<32x128xf32, #tpu.memory_space<vmem>>, vector<32x128xf32>
    %c0_19 = arith.constant 0 : index
    %c0_20 = arith.constant 0 : index
    %24 = vector.load %arg4[%c0_19, %c0_20] : memref<8x32xf32, #tpu.memory_space<vmem>>, vector<8x32xf32>
    %c0_21 = arith.constant 0 : index
    %c0_22 = arith.constant 0 : index
    %25 = vector.load %arg5[%c0_21, %c0_22] : memref<8x32xf32, #tpu.memory_space<vmem>>, vector<8x32xf32>
    %c0_i32 = arith.constant 0 : i32
    %26 = arith.index_cast %c0_i32 : i32 to index
    %c0_23 = arith.constant 0 : index
    %c0_24 = arith.constant 0 : index
    %27 = vector.load %arg20[%26, %c0_23, %c0_24] : memref<8x8x128xf32, #tpu.memory_space<vmem>>, vector<1x8x128xf32>
    %28 = vector.shape_cast %27 : vector<1x8x128xf32> to vector<8x128xf32>
    %cst_25 = arith.constant dense<0.000000e+00> : vector<8x128xf32>
    %29 = tpu.matmul %24, %23, %cst_25 {dimension_numbers = #tpu.dot_dimension_numbers<[1], [0], [0], [1], [0, 0, 1, 1], [], []>} : vector<8x32xf32>, vector<32x128xf32>, vector<8x128xf32> -> vector<8x128xf32>
    %30 = arith.addf %28, %29 : vector<8x128xf32>
    %31 = vector.broadcast %8 : vector<1x128xf32> to vector<8x128xf32>
    %32 = arith.mulf %30, %31 : vector<8x128xf32>
    %33 = math.tanh %32 : vector<8x128xf32>
    %34 = vector.broadcast %8 : vector<1x128xf32> to vector<8x128xf32>
    %35 = arith.mulf %33, %34 : vector<8x128xf32>
    %36 = vector.broadcast %11 : vector<1x128xf32> to vector<8x128xf32>
    %37 = arith.addf %35, %36 : vector<8x128xf32>
    %38 = vector.extract_strided_slice %37 {offsets = [0, 0], sizes = [8, 32], strides = [1, 1]} : vector<8x128xf32> to vector<8x32xf32>
    %39 = vector.extract_strided_slice %37 {offsets = [0, 32], sizes = [8, 32], strides = [1, 1]} : vector<8x128xf32> to vector<8x32xf32>
    %40 = vector.extract_strided_slice %37 {offsets = [0, 64], sizes = [8, 32], strides = [1, 1]} : vector<8x128xf32> to vector<8x32xf32>
    %41 = vector.extract_strided_slice %37 {offsets = [0, 96], sizes = [8, 32], strides = [1, 1]} : vector<8x128xf32> to vector<8x32xf32>
    %42 = arith.mulf %39, %25 : vector<8x32xf32>
    %43 = arith.mulf %38, %40 : vector<8x32xf32>
    %44 = arith.addf %42, %43 : vector<8x32xf32>
    %45 = math.tanh %44 : vector<8x32xf32>
    %46 = arith.mulf %41, %45 : vector<8x32xf32>
    %47 = arith.index_cast %c0_i32 : i32 to index
    %c0_26 = arith.constant 0 : index
    %c0_27 = arith.constant 0 : index
    %48 = vector.load %arg19[%47, %c0_26, %c0_27] : memref<8x8x32xf32, #tpu.memory_space<vmem>>, vector<1x8x32xf32>
    %49 = vector.shape_cast %48 : vector<1x8x32xf32> to vector<8x32xf32>
    %50 = vector.shape_cast %46 : vector<8x32xf32> to vector<1x8x32xf32>
    tpu.vector_store %arg19[%47, %c0_26, %c0_27], %50 {strides = array<i32>} : memref<8x8x32xf32, #tpu.memory_space<vmem>>, vector<1x8x32xf32>,
    %c1_i32 = arith.constant 1 : i32
    %51 = arith.index_cast %c1_i32 : i32 to index
    %c0_28 = arith.constant 0 : index
    %c0_29 = arith.constant 0 : index
    %52 = vector.load %arg20[%51, %c0_28, %c0_29] : memref<8x8x128xf32, #tpu.memory_space<vmem>>, vector<1x8x128xf32>
    %53 = vector.shape_cast %52 : vector<1x8x128xf32> to vector<8x128xf32>
    %cst_30 = arith.constant dense<0.000000e+00> : vector<8x128xf32>
    %54 = tpu.matmul %46, %23, %cst_30 {dimension_numbers = #tpu.dot_dimension_numbers<[1], [0], [0], [1], [0, 0, 1, 1], [], []>} : vector<8x32xf32>, vector<32x128xf32>, vector<8x128xf32> -> vector<8x128xf32>
    %55 = arith.addf %53, %54 : vector<8x128xf32>
    %56 = vector.broadcast %8 : vector<1x128xf32> to vector<8x128xf32>
    %57 = arith.mulf %55, %56 : vector<8x128xf32>
    %58 = math.tanh %57 : vector<8x128xf32>
    %59 = vector.broadcast %8 : vector<1x128xf32> to vector<8x128xf32>
    %60 = arith.mulf %58, %59 : vector<8x128xf32>
    %61 = vector.broadcast %11 : vector<1x128xf32> to vector<8x128xf32>
    %62 = arith.addf %60, %61 : vector<8x128xf32>
    %63 = vector.extract_strided_slice %62 {offsets = [0, 0], sizes = [8, 32], strides = [1, 1]} : vector<8x128xf32> to vector<8x32xf32>
    %64 = vector.extract_strided_slice %62 {offsets = [0, 32], sizes = [8, 32], strides = [1, 1]} : vector<8x128xf32> to vector<8x32xf32>
    %65 = vector.extract_strided_slice %62 {offsets = [0, 64], sizes = [8, 32], strides = [1, 1]} : vector<8x128xf32> to vector<8x32xf32>
    %66 = vector.extract_strided_slice %62 {offsets = [0, 96], sizes = [8, 32], strides = [1, 1]} : vector<8x128xf32> to vector<8x32xf32>
    %67 = arith.mulf %64, %44 : vector<8x32xf32>
    %68 = arith.mulf %63, %65 : vector<8x32xf32>
    %69 = arith.addf %67, %68 : vector<8x32xf32>
    %70 = math.tanh %69 : vector<8x32xf32>
    %71 = arith.mulf %66, %70 : vector<8x32xf32>
    %72 = arith.index_cast %c1_i32 : i32 to index
    %c0_31 = arith.constant 0 : index
    %c0_32 = arith.constant 0 : index
    %73 = vector.load %arg19[%72, %c0_31, %c0_32] : memref<8x8x32xf32, #tpu.memory_space<vmem>>, vector<1x8x32xf32>
    %74 = vector.shape_cast %73 : vector<1x8x32xf32> to vector<8x32xf32>
    %75 = vector.shape_cast %71 : vector<8x32xf32> to vector<1x8x32xf32>
    tpu.vector_store %arg19[%72, %c0_31, %c0_32], %75 {strides = array<i32>} : memref<8x8x32xf32, #tpu.memory_space<vmem>>, vector<1x8x32xf32>,
    %c2_i32 = arith.constant 2 : i32
    %76 = arith.index_cast %c2_i32 : i32 to index
    %c0_33 = arith.constant 0 : index
    %c0_34 = arith.constant 0 : index
    %77 = vector.load %arg20[%76, %c0_33, %c0_34] : memref<8x8x128xf32, #tpu.memory_space<vmem>>, vector<1x8x128xf32>
    %78 = vector.shape_cast %77 : vector<1x8x128xf32> to vector<8x128xf32>
    %cst_35 = arith.constant dense<0.000000e+00> : vector<8x128xf32>
    %79 = tpu.matmul %71, %23, %cst_35 {dimension_numbers = #tpu.dot_dimension_numbers<[1], [0], [0], [1], [0, 0, 1, 1], [], []>} : vector<8x32xf32>, vector<32x128xf32>, vector<8x128xf32> -> vector<8x128xf32>
    %80 = arith.addf %78, %79 : vector<8x128xf32>
    %81 = vector.broadcast %8 : vector<1x128xf32> to vector<8x128xf32>
    %82 = arith.mulf %80, %81 : vector<8x128xf32>
    %83 = math.tanh %82 : vector<8x128xf32>
    %84 = vector.broadcast %8 : vector<1x128xf32> to vector<8x128xf32>
    %85 = arith.mulf %83, %84 : vector<8x128xf32>
    %86 = vector.broadcast %11 : vector<1x128xf32> to vector<8x128xf32>
    %87 = arith.addf %85, %86 : vector<8x128xf32>
    %88 = vector.extract_strided_slice %87 {offsets = [0, 0], sizes = [8, 32], strides = [1, 1]} : vector<8x128xf32> to vector<8x32xf32>
    %89 = vector.extract_strided_slice %87 {offsets = [0, 32], sizes = [8, 32], strides = [1, 1]} : vector<8x128xf32> to vector<8x32xf32>
    %90 = vector.extract_strided_slice %87 {offsets = [0, 64], sizes = [8, 32], strides = [1, 1]} : vector<8x128xf32> to vector<8x32xf32>
    %91 = vector.extract_strided_slice %87 {offsets = [0, 96], sizes = [8, 32], strides = [1, 1]} : vector<8x128xf32> to vector<8x32xf32>
    %92 = arith.mulf %89, %69 : vector<8x32xf32>
    %93 = arith.mulf %88, %90 : vector<8x32xf32>
    %94 = arith.addf %92, %93 : vector<8x32xf32>
    %95 = math.tanh %94 : vector<8x32xf32>
    %96 = arith.mulf %91, %95 : vector<8x32xf32>
    %97 = arith.index_cast %c2_i32 : i32 to index
    %c0_36 = arith.constant 0 : index
    %c0_37 = arith.constant 0 : index
    %98 = vector.load %arg19[%97, %c0_36, %c0_37] : memref<8x8x32xf32, #tpu.memory_space<vmem>>, vector<1x8x32xf32>
    %99 = vector.shape_cast %98 : vector<1x8x32xf32> to vector<8x32xf32>
    %100 = vector.shape_cast %96 : vector<8x32xf32> to vector<1x8x32xf32>
    tpu.vector_store %arg19[%97, %c0_36, %c0_37], %100 {strides = array<i32>} : memref<8x8x32xf32, #tpu.memory_space<vmem>>, vector<1x8x32xf32>,
    %c3_i32 = arith.constant 3 : i32
    %101 = arith.index_cast %c3_i32 : i32 to index
    %c0_38 = arith.constant 0 : index
    %c0_39 = arith.constant 0 : index
    %102 = vector.load %arg20[%101, %c0_38, %c0_39] : memref<8x8x128xf32, #tpu.memory_space<vmem>>, vector<1x8x128xf32>
    %103 = vector.shape_cast %102 : vector<1x8x128xf32> to vector<8x128xf32>
    %cst_40 = arith.constant dense<0.000000e+00> : vector<8x128xf32>
    %104 = tpu.matmul %96, %23, %cst_40 {dimension_numbers = #tpu.dot_dimension_numbers<[1], [0], [0], [1], [0, 0, 1, 1], [], []>} : vector<8x32xf32>, vector<32x128xf32>, vector<8x128xf32> -> vector<8x128xf32>
    %105 = arith.addf %103, %104 : vector<8x128xf32>
    %106 = vector.broadcast %8 : vector<1x128xf32> to vector<8x128xf32>
    %107 = arith.mulf %105, %106 : vector<8x128xf32>
    %108 = math.tanh %107 : vector<8x128xf32>
    %109 = vector.broadcast %8 : vector<1x128xf32> to vector<8x128xf32>
    %110 = arith.mulf %108, %109 : vector<8x128xf32>
    %111 = vector.broadcast %11 : vector<1x128xf32> to vector<8x128xf32>
    %112 = arith.addf %110, %111 : vector<8x128xf32>
    %113 = vector.extract_strided_slice %112 {offsets = [0, 0], sizes = [8, 32], strides = [1, 1]} : vector<8x128xf32> to vector<8x32xf32>
    %114 = vector.extract_strided_slice %112 {offsets = [0, 32], sizes = [8, 32], strides = [1, 1]} : vector<8x128xf32> to vector<8x32xf32>
    %115 = vector.extract_strided_slice %112 {offsets = [0, 64], sizes = [8, 32], strides = [1, 1]} : vector<8x128xf32> to vector<8x32xf32>
    %116 = vector.extract_strided_slice %112 {offsets = [0, 96], sizes = [8, 32], strides = [1, 1]} : vector<8x128xf32> to vector<8x32xf32>
    %117 = arith.mulf %114, %94 : vector<8x32xf32>
    %118 = arith.mulf %113, %115 : vector<8x32xf32>
    %119 = arith.addf %117, %118 : vector<8x32xf32>
    %120 = math.tanh %119 : vector<8x32xf32>
    %121 = arith.mulf %116, %120 : vector<8x32xf32>
    %122 = arith.index_cast %c3_i32 : i32 to index
    %c0_41 = arith.constant 0 : index
    %c0_42 = arith.constant 0 : index
    %123 = vector.load %arg19[%122, %c0_41, %c0_42] : memref<8x8x32xf32, #tpu.memory_space<vmem>>, vector<1x8x32xf32>
    %124 = vector.shape_cast %123 : vector<1x8x32xf32> to vector<8x32xf32>
    %125 = vector.shape_cast %121 : vector<8x32xf32> to vector<1x8x32xf32>
    tpu.vector_store %arg19[%122, %c0_41, %c0_42], %125 {strides = array<i32>} : memref<8x8x32xf32, #tpu.memory_space<vmem>>, vector<1x8x32xf32>,
    %c4_i32 = arith.constant 4 : i32
    %126 = arith.index_cast %c4_i32 : i32 to index
    %c0_43 = arith.constant 0 : index
    %c0_44 = arith.constant 0 : index
    %127 = vector.load %arg20[%126, %c0_43, %c0_44] : memref<8x8x128xf32, #tpu.memory_space<vmem>>, vector<1x8x128xf32>
    %128 = vector.shape_cast %127 : vector<1x8x128xf32> to vector<8x128xf32>
    %cst_45 = arith.constant dense<0.000000e+00> : vector<8x128xf32>
    %129 = tpu.matmul %121, %23, %cst_45 {dimension_numbers = #tpu.dot_dimension_numbers<[1], [0], [0], [1], [0, 0, 1, 1], [], []>} : vector<8x32xf32>, vector<32x128xf32>, vector<8x128xf32> -> vector<8x128xf32>
    %130 = arith.addf %128, %129 : vector<8x128xf32>
    %131 = vector.broadcast %8 : vector<1x128xf32> to vector<8x128xf32>
    %132 = arith.mulf %130, %131 : vector<8x128xf32>
    %133 = math.tanh %132 : vector<8x128xf32>
    %134 = vector.broadcast %8 : vector<1x128xf32> to vector<8x128xf32>
    %135 = arith.mulf %133, %134 : vector<8x128xf32>
    %136 = vector.broadcast %11 : vector<1x128xf32> to vector<8x128xf32>
    %137 = arith.addf %135, %136 : vector<8x128xf32>
    %138 = vector.extract_strided_slice %137 {offsets = [0, 0], sizes = [8, 32], strides = [1, 1]} : vector<8x128xf32> to vector<8x32xf32>
    %139 = vector.extract_strided_slice %137 {offsets = [0, 32], sizes = [8, 32], strides = [1, 1]} : vector<8x128xf32> to vector<8x32xf32>
    %140 = vector.extract_strided_slice %137 {offsets = [0, 64], sizes = [8, 32], strides = [1, 1]} : vector<8x128xf32> to vector<8x32xf32>
    %141 = vector.extract_strided_slice %137 {offsets = [0, 96], sizes = [8, 32], strides = [1, 1]} : vector<8x128xf32> to vector<8x32xf32>
    %142 = arith.mulf %139, %119 : vector<8x32xf32>
    %143 = arith.mulf %138, %140 : vector<8x32xf32>
    %144 = arith.addf %142, %143 : vector<8x32xf32>
    %145 = math.tanh %144 : vector<8x32xf32>
    %146 = arith.mulf %141, %145 : vector<8x32xf32>
    %147 = arith.index_cast %c4_i32 : i32 to index
    %c0_46 = arith.constant 0 : index
    %c0_47 = arith.constant 0 : index
    %148 = vector.load %arg19[%147, %c0_46, %c0_47] : memref<8x8x32xf32, #tpu.memory_space<vmem>>, vector<1x8x32xf32>
    %149 = vector.shape_cast %148 : vector<1x8x32xf32> to vector<8x32xf32>
    %150 = vector.shape_cast %146 : vector<8x32xf32> to vector<1x8x32xf32>
    tpu.vector_store %arg19[%147, %c0_46, %c0_47], %150 {strides = array<i32>} : memref<8x8x32xf32, #tpu.memory_space<vmem>>, vector<1x8x32xf32>,
    %c5_i32 = arith.constant 5 : i32
    %151 = arith.index_cast %c5_i32 : i32 to index
    %c0_48 = arith.constant 0 : index
    %c0_49 = arith.constant 0 : index
    %152 = vector.load %arg20[%151, %c0_48, %c0_49] : memref<8x8x128xf32, #tpu.memory_space<vmem>>, vector<1x8x128xf32>
    %153 = vector.shape_cast %152 : vector<1x8x128xf32> to vector<8x128xf32>
    %cst_50 = arith.constant dense<0.000000e+00> : vector<8x128xf32>
    %154 = tpu.matmul %146, %23, %cst_50 {dimension_numbers = #tpu.dot_dimension_numbers<[1], [0], [0], [1], [0, 0, 1, 1], [], []>} : vector<8x32xf32>, vector<32x128xf32>, vector<8x128xf32> -> vector<8x128xf32>
    %155 = arith.addf %153, %154 : vector<8x128xf32>
    %156 = vector.broadcast %8 : vector<1x128xf32> to vector<8x128xf32>
    %157 = arith.mulf %155, %156 : vector<8x128xf32>
    %158 = math.tanh %157 : vector<8x128xf32>
    %159 = vector.broadcast %8 : vector<1x128xf32> to vector<8x128xf32>
    %160 = arith.mulf %158, %159 : vector<8x128xf32>
    %161 = vector.broadcast %11 : vector<1x128xf32> to vector<8x128xf32>
    %162 = arith.addf %160, %161 : vector<8x128xf32>
    %163 = vector.extract_strided_slice %162 {offsets = [0, 0], sizes = [8, 32], strides = [1, 1]} : vector<8x128xf32> to vector<8x32xf32>
    %164 = vector.extract_strided_slice %162 {offsets = [0, 32], sizes = [8, 32], strides = [1, 1]} : vector<8x128xf32> to vector<8x32xf32>
    %165 = vector.extract_strided_slice %162 {offsets = [0, 64], sizes = [8, 32], strides = [1, 1]} : vector<8x128xf32> to vector<8x32xf32>
    %166 = vector.extract_strided_slice %162 {offsets = [0, 96], sizes = [8, 32], strides = [1, 1]} : vector<8x128xf32> to vector<8x32xf32>
    %167 = arith.mulf %164, %144 : vector<8x32xf32>
    %168 = arith.mulf %163, %165 : vector<8x32xf32>
    %169 = arith.addf %167, %168 : vector<8x32xf32>
    %170 = math.tanh %169 : vector<8x32xf32>
    %171 = arith.mulf %166, %170 : vector<8x32xf32>
    %172 = arith.index_cast %c5_i32 : i32 to index
    %c0_51 = arith.constant 0 : index
    %c0_52 = arith.constant 0 : index
    %173 = vector.load %arg19[%172, %c0_51, %c0_52] : memref<8x8x32xf32, #tpu.memory_space<vmem>>, vector<1x8x32xf32>
    %174 = vector.shape_cast %173 : vector<1x8x32xf32> to vector<8x32xf32>
    %175 = vector.shape_cast %171 : vector<8x32xf32> to vector<1x8x32xf32>
    tpu.vector_store %arg19[%172, %c0_51, %c0_52], %175 {strides = array<i32>} : memref<8x8x32xf32, #tpu.memory_space<vmem>>, vector<1x8x32xf32>,
    %c6_i32 = arith.constant 6 : i32
    %176 = arith.index_cast %c6_i32 : i32 to index
    %c0_53 = arith.constant 0 : index
    %c0_54 = arith.constant 0 : index
    %177 = vector.load %arg20[%176, %c0_53, %c0_54] : memref<8x8x128xf32, #tpu.memory_space<vmem>>, vector<1x8x128xf32>
    %178 = vector.shape_cast %177 : vector<1x8x128xf32> to vector<8x128xf32>
    %cst_55 = arith.constant dense<0.000000e+00> : vector<8x128xf32>
    %179 = tpu.matmul %171, %23, %cst_55 {dimension_numbers = #tpu.dot_dimension_numbers<[1], [0], [0], [1], [0, 0, 1, 1], [], []>} : vector<8x32xf32>, vector<32x128xf32>, vector<8x128xf32> -> vector<8x128xf32>
    %180 = arith.addf %178, %179 : vector<8x128xf32>
    %181 = vector.broadcast %8 : vector<1x128xf32> to vector<8x128xf32>
    %182 = arith.mulf %180, %181 : vector<8x128xf32>
    %183 = math.tanh %182 : vector<8x128xf32>
    %184 = vector.broadcast %8 : vector<1x128xf32> to vector<8x128xf32>
    %185 = arith.mulf %183, %184 : vector<8x128xf32>
    %186 = vector.broadcast %11 : vector<1x128xf32> to vector<8x128xf32>
    %187 = arith.addf %185, %186 : vector<8x128xf32>
    %188 = vector.extract_strided_slice %187 {offsets = [0, 0], sizes = [8, 32], strides = [1, 1]} : vector<8x128xf32> to vector<8x32xf32>
    %189 = vector.extract_strided_slice %187 {offsets = [0, 32], sizes = [8, 32], strides = [1, 1]} : vector<8x128xf32> to vector<8x32xf32>
    %190 = vector.extract_strided_slice %187 {offsets = [0, 64], sizes = [8, 32], strides = [1, 1]} : vector<8x128xf32> to vector<8x32xf32>
    %191 = vector.extract_strided_slice %187 {offsets = [0, 96], sizes = [8, 32], strides = [1, 1]} : vector<8x128xf32> to vector<8x32xf32>
    %192 = arith.mulf %189, %169 : vector<8x32xf32>
    %193 = arith.mulf %188, %190 : vector<8x32xf32>
    %194 = arith.addf %192, %193 : vector<8x32xf32>
    %195 = math.tanh %194 : vector<8x32xf32>
    %196 = arith.mulf %191, %195 : vector<8x32xf32>
    %197 = arith.index_cast %c6_i32 : i32 to index
    %c0_56 = arith.constant 0 : index
    %c0_57 = arith.constant 0 : index
    %198 = vector.load %arg19[%197, %c0_56, %c0_57] : memref<8x8x32xf32, #tpu.memory_space<vmem>>, vector<1x8x32xf32>
    %199 = vector.shape_cast %198 : vector<1x8x32xf32> to vector<8x32xf32>
    %200 = vector.shape_cast %196 : vector<8x32xf32> to vector<1x8x32xf32>
    tpu.vector_store %arg19[%197, %c0_56, %c0_57], %200 {strides = array<i32>} : memref<8x8x32xf32, #tpu.memory_space<vmem>>, vector<1x8x32xf32>,
    %c7_i32 = arith.constant 7 : i32
    %201 = arith.index_cast %c7_i32 : i32 to index
    %c0_58 = arith.constant 0 : index
    %c0_59 = arith.constant 0 : index
    %202 = vector.load %arg20[%201, %c0_58, %c0_59] : memref<8x8x128xf32, #tpu.memory_space<vmem>>, vector<1x8x128xf32>
    %203 = vector.shape_cast %202 : vector<1x8x128xf32> to vector<8x128xf32>
    %cst_60 = arith.constant dense<0.000000e+00> : vector<8x128xf32>
    %204 = tpu.matmul %196, %23, %cst_60 {dimension_numbers = #tpu.dot_dimension_numbers<[1], [0], [0], [1], [0, 0, 1, 1], [], []>} : vector<8x32xf32>, vector<32x128xf32>, vector<8x128xf32> -> vector<8x128xf32>
    %205 = arith.addf %203, %204 : vector<8x128xf32>
    %206 = vector.broadcast %8 : vector<1x128xf32> to vector<8x128xf32>
    %207 = arith.mulf %205, %206 : vector<8x128xf32>
    %208 = math.tanh %207 : vector<8x128xf32>
    %209 = vector.broadcast %8 : vector<1x128xf32> to vector<8x128xf32>
    %210 = arith.mulf %208, %209 : vector<8x128xf32>
    %211 = vector.broadcast %11 : vector<1x128xf32> to vector<8x128xf32>
    %212 = arith.addf %210, %211 : vector<8x128xf32>
    %213 = vector.extract_strided_slice %212 {offsets = [0, 0], sizes = [8, 32], strides = [1, 1]} : vector<8x128xf32> to vector<8x32xf32>
    %214 = vector.extract_strided_slice %212 {offsets = [0, 32], sizes = [8, 32], strides = [1, 1]} : vector<8x128xf32> to vector<8x32xf32>
    %215 = vector.extract_strided_slice %212 {offsets = [0, 64], sizes = [8, 32], strides = [1, 1]} : vector<8x128xf32> to vector<8x32xf32>
    %216 = vector.extract_strided_slice %212 {offsets = [0, 96], sizes = [8, 32], strides = [1, 1]} : vector<8x128xf32> to vector<8x32xf32>
    %217 = arith.mulf %214, %194 : vector<8x32xf32>
    %218 = arith.mulf %213, %215 : vector<8x32xf32>
    %219 = arith.addf %217, %218 : vector<8x32xf32>
    %220 = math.tanh %219 : vector<8x32xf32>
    %221 = arith.mulf %216, %220 : vector<8x32xf32>
    %222 = arith.index_cast %c7_i32 : i32 to index
    %c0_61 = arith.constant 0 : index
    %c0_62 = arith.constant 0 : index
    %223 = vector.load %arg19[%222, %c0_61, %c0_62] : memref<8x8x32xf32, #tpu.memory_space<vmem>>, vector<1x8x32xf32>
    %224 = vector.shape_cast %223 : vector<1x8x32xf32> to vector<8x32xf32>
    %225 = vector.shape_cast %221 : vector<8x32xf32> to vector<1x8x32xf32>
    tpu.vector_store %arg19[%222, %c0_61, %c0_62], %225 {strides = array<i32>} : memref<8x8x32xf32, #tpu.memory_space<vmem>>, vector<1x8x32xf32>,
    %c8_i32 = arith.constant 8 : i32
    %c0_63 = arith.constant 0 : index
    %c0_64 = arith.constant 0 : index
    %c0_65 = arith.constant 0 : index
    %226 = vector.load %arg19[%c0_63, %c0_64, %c0_65] : memref<8x8x32xf32, #tpu.memory_space<vmem>>, vector<8x8x32xf32>
    %227 = vector.shape_cast %226 : vector<8x8x32xf32> to vector<64x32xf32>
    %c0_66 = arith.constant 0 : index
    %c0_67 = arith.constant 0 : index
    %228 = vector.load %arg6[%c0_66, %c0_67] : memref<32x128xf32, #tpu.memory_space<vmem>>, vector<32x128xf32>
    %cst_68 = arith.constant dense<0.000000e+00> : vector<64x128xf32>
    %229 = tpu.matmul %227, %228, %cst_68 {dimension_numbers = #tpu.dot_dimension_numbers<[1], [0], [0], [1], [0, 0, 1, 1], [], []>} : vector<64x32xf32>, vector<32x128xf32>, vector<64x128xf32> -> vector<64x128xf32>
    %c0_69 = arith.constant 0 : index
    %c0_70 = arith.constant 0 : index
    %230 = vector.load %arg8[%c0_69, %c0_70] : memref<1x128xf32, #tpu.memory_space<vmem>>, vector<1x128xf32>
    %231 = vector.broadcast %230 : vector<1x128xf32> to vector<64x128xf32>
    %232 = arith.addf %229, %231 : vector<64x128xf32>
    %233 = vector.shape_cast %232 : vector<64x128xf32> to vector<8x8x128xf32>
    %c0_71 = arith.constant 0 : index
    %c0_72 = arith.constant 0 : index
    %c0_73 = arith.constant 0 : index
    %234 = vector.load %arg20[%c0_71, %c0_72, %c0_73] : memref<8x8x128xf32, #tpu.memory_space<vmem>>, vector<8x8x128xf32>
    tpu.vector_store %arg20[%c0_71, %c0_72, %c0_73], %233 {strides = array<i32>} : memref<8x8x128xf32, #tpu.memory_space<vmem>>, vector<8x8x128xf32>,
    %c0_74 = arith.constant 0 : index
    %c0_75 = arith.constant 0 : index
    %235 = vector.load %arg7[%c0_74, %c0_75] : memref<32x128xf32, #tpu.memory_space<vmem>>, vector<32x128xf32>
    %c0_76 = arith.constant 0 : index
    %c0_77 = arith.constant 0 : index
    %236 = vector.load %arg9[%c0_76, %c0_77] : memref<8x32xf32, #tpu.memory_space<vmem>>, vector<8x32xf32>
    %c0_78 = arith.constant 0 : index
    %c0_79 = arith.constant 0 : index
    %237 = vector.load %arg10[%c0_78, %c0_79] : memref<8x32xf32, #tpu.memory_space<vmem>>, vector<8x32xf32>
    %c0_i32_80 = arith.constant 0 : i32
    %238 = arith.index_cast %c0_i32_80 : i32 to index
    %c0_81 = arith.constant 0 : index
    %c0_82 = arith.constant 0 : index
    %239 = vector.load %arg20[%238, %c0_81, %c0_82] : memref<8x8x128xf32, #tpu.memory_space<vmem>>, vector<1x8x128xf32>
    %240 = vector.shape_cast %239 : vector<1x8x128xf32> to vector<8x128xf32>
    %cst_83 = arith.constant dense<0.000000e+00> : vector<8x128xf32>
    %241 = tpu.matmul %236, %235, %cst_83 {dimension_numbers = #tpu.dot_dimension_numbers<[1], [0], [0], [1], [0, 0, 1, 1], [], []>} : vector<8x32xf32>, vector<32x128xf32>, vector<8x128xf32> -> vector<8x128xf32>
    %242 = arith.addf %240, %241 : vector<8x128xf32>
    %243 = vector.broadcast %8 : vector<1x128xf32> to vector<8x128xf32>
    %244 = arith.mulf %242, %243 : vector<8x128xf32>
    %245 = math.tanh %244 : vector<8x128xf32>
    %246 = vector.broadcast %8 : vector<1x128xf32> to vector<8x128xf32>
    %247 = arith.mulf %245, %246 : vector<8x128xf32>
    %248 = vector.broadcast %11 : vector<1x128xf32> to vector<8x128xf32>
    %249 = arith.addf %247, %248 : vector<8x128xf32>
    %250 = vector.extract_strided_slice %249 {offsets = [0, 0], sizes = [8, 32], strides = [1, 1]} : vector<8x128xf32> to vector<8x32xf32>
    %251 = vector.extract_strided_slice %249 {offsets = [0, 32], sizes = [8, 32], strides = [1, 1]} : vector<8x128xf32> to vector<8x32xf32>
    %252 = vector.extract_strided_slice %249 {offsets = [0, 64], sizes = [8, 32], strides = [1, 1]} : vector<8x128xf32> to vector<8x32xf32>
    %253 = vector.extract_strided_slice %249 {offsets = [0, 96], sizes = [8, 32], strides = [1, 1]} : vector<8x128xf32> to vector<8x32xf32>
    %254 = arith.mulf %251, %237 : vector<8x32xf32>
    %255 = arith.mulf %250, %252 : vector<8x32xf32>
    %256 = arith.addf %254, %255 : vector<8x32xf32>
    %257 = math.tanh %256 : vector<8x32xf32>
    %258 = arith.mulf %253, %257 : vector<8x32xf32>
    %259 = arith.index_cast %c0_i32_80 : i32 to index
    %c0_84 = arith.constant 0 : index
    %c0_85 = arith.constant 0 : index
    %260 = vector.load %arg19[%259, %c0_84, %c0_85] : memref<8x8x32xf32, #tpu.memory_space<vmem>>, vector<1x8x32xf32>
    %261 = vector.shape_cast %260 : vector<1x8x32xf32> to vector<8x32xf32>
    %262 = vector.shape_cast %258 : vector<8x32xf32> to vector<1x8x32xf32>
    tpu.vector_store %arg19[%259, %c0_84, %c0_85], %262 {strides = array<i32>} : memref<8x8x32xf32, #tpu.memory_space<vmem>>, vector<1x8x32xf32>,
    %c1_i32_86 = arith.constant 1 : i32
    %263 = arith.index_cast %c1_i32_86 : i32 to index
    %c0_87 = arith.constant 0 : index
    %c0_88 = arith.constant 0 : index
    %264 = vector.load %arg20[%263, %c0_87, %c0_88] : memref<8x8x128xf32, #tpu.memory_space<vmem>>, vector<1x8x128xf32>
    %265 = vector.shape_cast %264 : vector<1x8x128xf32> to vector<8x128xf32>
    %cst_89 = arith.constant dense<0.000000e+00> : vector<8x128xf32>
    %266 = tpu.matmul %258, %235, %cst_89 {dimension_numbers = #tpu.dot_dimension_numbers<[1], [0], [0], [1], [0, 0, 1, 1], [], []>} : vector<8x32xf32>, vector<32x128xf32>, vector<8x128xf32> -> vector<8x128xf32>
    %267 = arith.addf %265, %266 : vector<8x128xf32>
    %268 = vector.broadcast %8 : vector<1x128xf32> to vector<8x128xf32>
    %269 = arith.mulf %267, %268 : vector<8x128xf32>
    %270 = math.tanh %269 : vector<8x128xf32>
    %271 = vector.broadcast %8 : vector<1x128xf32> to vector<8x128xf32>
    %272 = arith.mulf %270, %271 : vector<8x128xf32>
    %273 = vector.broadcast %11 : vector<1x128xf32> to vector<8x128xf32>
    %274 = arith.addf %272, %273 : vector<8x128xf32>
    %275 = vector.extract_strided_slice %274 {offsets = [0, 0], sizes = [8, 32], strides = [1, 1]} : vector<8x128xf32> to vector<8x32xf32>
    %276 = vector.extract_strided_slice %274 {offsets = [0, 32], sizes = [8, 32], strides = [1, 1]} : vector<8x128xf32> to vector<8x32xf32>
    %277 = vector.extract_strided_slice %274 {offsets = [0, 64], sizes = [8, 32], strides = [1, 1]} : vector<8x128xf32> to vector<8x32xf32>
    %278 = vector.extract_strided_slice %274 {offsets = [0, 96], sizes = [8, 32], strides = [1, 1]} : vector<8x128xf32> to vector<8x32xf32>
    %279 = arith.mulf %276, %256 : vector<8x32xf32>
    %280 = arith.mulf %275, %277 : vector<8x32xf32>
    %281 = arith.addf %279, %280 : vector<8x32xf32>
    %282 = math.tanh %281 : vector<8x32xf32>
    %283 = arith.mulf %278, %282 : vector<8x32xf32>
    %284 = arith.index_cast %c1_i32_86 : i32 to index
    %c0_90 = arith.constant 0 : index
    %c0_91 = arith.constant 0 : index
    %285 = vector.load %arg19[%284, %c0_90, %c0_91] : memref<8x8x32xf32, #tpu.memory_space<vmem>>, vector<1x8x32xf32>
    %286 = vector.shape_cast %285 : vector<1x8x32xf32> to vector<8x32xf32>
    %287 = vector.shape_cast %283 : vector<8x32xf32> to vector<1x8x32xf32>
    tpu.vector_store %arg19[%284, %c0_90, %c0_91], %287 {strides = array<i32>} : memref<8x8x32xf32, #tpu.memory_space<vmem>>, vector<1x8x32xf32>,
    %c2_i32_92 = arith.constant 2 : i32
    %288 = arith.index_cast %c2_i32_92 : i32 to index
    %c0_93 = arith.constant 0 : index
    %c0_94 = arith.constant 0 : index
    %289 = vector.load %arg20[%288, %c0_93, %c0_94] : memref<8x8x128xf32, #tpu.memory_space<vmem>>, vector<1x8x128xf32>
    %290 = vector.shape_cast %289 : vector<1x8x128xf32> to vector<8x128xf32>
    %cst_95 = arith.constant dense<0.000000e+00> : vector<8x128xf32>
    %291 = tpu.matmul %283, %235, %cst_95 {dimension_numbers = #tpu.dot_dimension_numbers<[1], [0], [0], [1], [0, 0, 1, 1], [], []>} : vector<8x32xf32>, vector<32x128xf32>, vector<8x128xf32> -> vector<8x128xf32>
    %292 = arith.addf %290, %291 : vector<8x128xf32>
    %293 = vector.broadcast %8 : vector<1x128xf32> to vector<8x128xf32>
    %294 = arith.mulf %292, %293 : vector<8x128xf32>
    %295 = math.tanh %294 : vector<8x128xf32>
    %296 = vector.broadcast %8 : vector<1x128xf32> to vector<8x128xf32>
    %297 = arith.mulf %295, %296 : vector<8x128xf32>
    %298 = vector.broadcast %11 : vector<1x128xf32> to vector<8x128xf32>
    %299 = arith.addf %297, %298 : vector<8x128xf32>
    %300 = vector.extract_strided_slice %299 {offsets = [0, 0], sizes = [8, 32], strides = [1, 1]} : vector<8x128xf32> to vector<8x32xf32>
    %301 = vector.extract_strided_slice %299 {offsets = [0, 32], sizes = [8, 32], strides = [1, 1]} : vector<8x128xf32> to vector<8x32xf32>
    %302 = vector.extract_strided_slice %299 {offsets = [0, 64], sizes = [8, 32], strides = [1, 1]} : vector<8x128xf32> to vector<8x32xf32>
    %303 = vector.extract_strided_slice %299 {offsets = [0, 96], sizes = [8, 32], strides = [1, 1]} : vector<8x128xf32> to vector<8x32xf32>
    %304 = arith.mulf %301, %281 : vector<8x32xf32>
    %305 = arith.mulf %300, %302 : vector<8x32xf32>
    %306 = arith.addf %304, %305 : vector<8x32xf32>
    %307 = math.tanh %306 : vector<8x32xf32>
    %308 = arith.mulf %303, %307 : vector<8x32xf32>
    %309 = arith.index_cast %c2_i32_92 : i32 to index
    %c0_96 = arith.constant 0 : index
    %c0_97 = arith.constant 0 : index
    %310 = vector.load %arg19[%309, %c0_96, %c0_97] : memref<8x8x32xf32, #tpu.memory_space<vmem>>, vector<1x8x32xf32>
    %311 = vector.shape_cast %310 : vector<1x8x32xf32> to vector<8x32xf32>
    %312 = vector.shape_cast %308 : vector<8x32xf32> to vector<1x8x32xf32>
    tpu.vector_store %arg19[%309, %c0_96, %c0_97], %312 {strides = array<i32>} : memref<8x8x32xf32, #tpu.memory_space<vmem>>, vector<1x8x32xf32>,
    %c3_i32_98 = arith.constant 3 : i32
    %313 = arith.index_cast %c3_i32_98 : i32 to index
    %c0_99 = arith.constant 0 : index
    %c0_100 = arith.constant 0 : index
    %314 = vector.load %arg20[%313, %c0_99, %c0_100] : memref<8x8x128xf32, #tpu.memory_space<vmem>>, vector<1x8x128xf32>
    %315 = vector.shape_cast %314 : vector<1x8x128xf32> to vector<8x128xf32>
    %cst_101 = arith.constant dense<0.000000e+00> : vector<8x128xf32>
    %316 = tpu.matmul %308, %235, %cst_101 {dimension_numbers = #tpu.dot_dimension_numbers<[1], [0], [0], [1], [0, 0, 1, 1], [], []>} : vector<8x32xf32>, vector<32x128xf32>, vector<8x128xf32> -> vector<8x128xf32>
    %317 = arith.addf %315, %316 : vector<8x128xf32>
    %318 = vector.broadcast %8 : vector<1x128xf32> to vector<8x128xf32>
    %319 = arith.mulf %317, %318 : vector<8x128xf32>
    %320 = math.tanh %319 : vector<8x128xf32>
    %321 = vector.broadcast %8 : vector<1x128xf32> to vector<8x128xf32>
    %322 = arith.mulf %320, %321 : vector<8x128xf32>
    %323 = vector.broadcast %11 : vector<1x128xf32> to vector<8x128xf32>
    %324 = arith.addf %322, %323 : vector<8x128xf32>
    %325 = vector.extract_strided_slice %324 {offsets = [0, 0], sizes = [8, 32], strides = [1, 1]} : vector<8x128xf32> to vector<8x32xf32>
    %326 = vector.extract_strided_slice %324 {offsets = [0, 32], sizes = [8, 32], strides = [1, 1]} : vector<8x128xf32> to vector<8x32xf32>
    %327 = vector.extract_strided_slice %324 {offsets = [0, 64], sizes = [8, 32], strides = [1, 1]} : vector<8x128xf32> to vector<8x32xf32>
    %328 = vector.extract_strided_slice %324 {offsets = [0, 96], sizes = [8, 32], strides = [1, 1]} : vector<8x128xf32> to vector<8x32xf32>
    %329 = arith.mulf %326, %306 : vector<8x32xf32>
    %330 = arith.mulf %325, %327 : vector<8x32xf32>
    %331 = arith.addf %329, %330 : vector<8x32xf32>
    %332 = math.tanh %331 : vector<8x32xf32>
    %333 = arith.mulf %328, %332 : vector<8x32xf32>
    %334 = arith.index_cast %c3_i32_98 : i32 to index
    %c0_102 = arith.constant 0 : index
    %c0_103 = arith.constant 0 : index
    %335 = vector.load %arg19[%334, %c0_102, %c0_103] : memref<8x8x32xf32, #tpu.memory_space<vmem>>, vector<1x8x32xf32>
    %336 = vector.shape_cast %335 : vector<1x8x32xf32> to vector<8x32xf32>
    %337 = vector.shape_cast %333 : vector<8x32xf32> to vector<1x8x32xf32>
    tpu.vector_store %arg19[%334, %c0_102, %c0_103], %337 {strides = array<i32>} : memref<8x8x32xf32, #tpu.memory_space<vmem>>, vector<1x8x32xf32>,
    %c4_i32_104 = arith.constant 4 : i32
    %338 = arith.index_cast %c4_i32_104 : i32 to index
    %c0_105 = arith.constant 0 : index
    %c0_106 = arith.constant 0 : index
    %339 = vector.load %arg20[%338, %c0_105, %c0_106] : memref<8x8x128xf32, #tpu.memory_space<vmem>>, vector<1x8x128xf32>
    %340 = vector.shape_cast %339 : vector<1x8x128xf32> to vector<8x128xf32>
    %cst_107 = arith.constant dense<0.000000e+00> : vector<8x128xf32>
    %341 = tpu.matmul %333, %235, %cst_107 {dimension_numbers = #tpu.dot_dimension_numbers<[1], [0], [0], [1], [0, 0, 1, 1], [], []>} : vector<8x32xf32>, vector<32x128xf32>, vector<8x128xf32> -> vector<8x128xf32>
    %342 = arith.addf %340, %341 : vector<8x128xf32>
    %343 = vector.broadcast %8 : vector<1x128xf32> to vector<8x128xf32>
    %344 = arith.mulf %342, %343 : vector<8x128xf32>
    %345 = math.tanh %344 : vector<8x128xf32>
    %346 = vector.broadcast %8 : vector<1x128xf32> to vector<8x128xf32>
    %347 = arith.mulf %345, %346 : vector<8x128xf32>
    %348 = vector.broadcast %11 : vector<1x128xf32> to vector<8x128xf32>
    %349 = arith.addf %347, %348 : vector<8x128xf32>
    %350 = vector.extract_strided_slice %349 {offsets = [0, 0], sizes = [8, 32], strides = [1, 1]} : vector<8x128xf32> to vector<8x32xf32>
    %351 = vector.extract_strided_slice %349 {offsets = [0, 32], sizes = [8, 32], strides = [1, 1]} : vector<8x128xf32> to vector<8x32xf32>
    %352 = vector.extract_strided_slice %349 {offsets = [0, 64], sizes = [8, 32], strides = [1, 1]} : vector<8x128xf32> to vector<8x32xf32>
    %353 = vector.extract_strided_slice %349 {offsets = [0, 96], sizes = [8, 32], strides = [1, 1]} : vector<8x128xf32> to vector<8x32xf32>
    %354 = arith.mulf %351, %331 : vector<8x32xf32>
    %355 = arith.mulf %350, %352 : vector<8x32xf32>
    %356 = arith.addf %354, %355 : vector<8x32xf32>
    %357 = math.tanh %356 : vector<8x32xf32>
    %358 = arith.mulf %353, %357 : vector<8x32xf32>
    %359 = arith.index_cast %c4_i32_104 : i32 to index
    %c0_108 = arith.constant 0 : index
    %c0_109 = arith.constant 0 : index
    %360 = vector.load %arg19[%359, %c0_108, %c0_109] : memref<8x8x32xf32, #tpu.memory_space<vmem>>, vector<1x8x32xf32>
    %361 = vector.shape_cast %360 : vector<1x8x32xf32> to vector<8x32xf32>
    %362 = vector.shape_cast %358 : vector<8x32xf32> to vector<1x8x32xf32>
    tpu.vector_store %arg19[%359, %c0_108, %c0_109], %362 {strides = array<i32>} : memref<8x8x32xf32, #tpu.memory_space<vmem>>, vector<1x8x32xf32>,
    %c5_i32_110 = arith.constant 5 : i32
    %363 = arith.index_cast %c5_i32_110 : i32 to index
    %c0_111 = arith.constant 0 : index
    %c0_112 = arith.constant 0 : index
    %364 = vector.load %arg20[%363, %c0_111, %c0_112] : memref<8x8x128xf32, #tpu.memory_space<vmem>>, vector<1x8x128xf32>
    %365 = vector.shape_cast %364 : vector<1x8x128xf32> to vector<8x128xf32>
    %cst_113 = arith.constant dense<0.000000e+00> : vector<8x128xf32>
    %366 = tpu.matmul %358, %235, %cst_113 {dimension_numbers = #tpu.dot_dimension_numbers<[1], [0], [0], [1], [0, 0, 1, 1], [], []>} : vector<8x32xf32>, vector<32x128xf32>, vector<8x128xf32> -> vector<8x128xf32>
    %367 = arith.addf %365, %366 : vector<8x128xf32>
    %368 = vector.broadcast %8 : vector<1x128xf32> to vector<8x128xf32>
    %369 = arith.mulf %367, %368 : vector<8x128xf32>
    %370 = math.tanh %369 : vector<8x128xf32>
    %371 = vector.broadcast %8 : vector<1x128xf32> to vector<8x128xf32>
    %372 = arith.mulf %370, %371 : vector<8x128xf32>
    %373 = vector.broadcast %11 : vector<1x128xf32> to vector<8x128xf32>
    %374 = arith.addf %372, %373 : vector<8x128xf32>
    %375 = vector.extract_strided_slice %374 {offsets = [0, 0], sizes = [8, 32], strides = [1, 1]} : vector<8x128xf32> to vector<8x32xf32>
    %376 = vector.extract_strided_slice %374 {offsets = [0, 32], sizes = [8, 32], strides = [1, 1]} : vector<8x128xf32> to vector<8x32xf32>
    %377 = vector.extract_strided_slice %374 {offsets = [0, 64], sizes = [8, 32], strides = [1, 1]} : vector<8x128xf32> to vector<8x32xf32>
    %378 = vector.extract_strided_slice %374 {offsets = [0, 96], sizes = [8, 32], strides = [1, 1]} : vector<8x128xf32> to vector<8x32xf32>
    %379 = arith.mulf %376, %356 : vector<8x32xf32>
    %380 = arith.mulf %375, %377 : vector<8x32xf32>
    %381 = arith.addf %379, %380 : vector<8x32xf32>
    %382 = math.tanh %381 : vector<8x32xf32>
    %383 = arith.mulf %378, %382 : vector<8x32xf32>
    %384 = arith.index_cast %c5_i32_110 : i32 to index
    %c0_114 = arith.constant 0 : index
    %c0_115 = arith.constant 0 : index
    %385 = vector.load %arg19[%384, %c0_114, %c0_115] : memref<8x8x32xf32, #tpu.memory_space<vmem>>, vector<1x8x32xf32>
    %386 = vector.shape_cast %385 : vector<1x8x32xf32> to vector<8x32xf32>
    %387 = vector.shape_cast %383 : vector<8x32xf32> to vector<1x8x32xf32>
    tpu.vector_store %arg19[%384, %c0_114, %c0_115], %387 {strides = array<i32>} : memref<8x8x32xf32, #tpu.memory_space<vmem>>, vector<1x8x32xf32>,
    %c6_i32_116 = arith.constant 6 : i32
    %388 = arith.index_cast %c6_i32_116 : i32 to index
    %c0_117 = arith.constant 0 : index
    %c0_118 = arith.constant 0 : index
    %389 = vector.load %arg20[%388, %c0_117, %c0_118] : memref<8x8x128xf32, #tpu.memory_space<vmem>>, vector<1x8x128xf32>
    %390 = vector.shape_cast %389 : vector<1x8x128xf32> to vector<8x128xf32>
    %cst_119 = arith.constant dense<0.000000e+00> : vector<8x128xf32>
    %391 = tpu.matmul %383, %235, %cst_119 {dimension_numbers = #tpu.dot_dimension_numbers<[1], [0], [0], [1], [0, 0, 1, 1], [], []>} : vector<8x32xf32>, vector<32x128xf32>, vector<8x128xf32> -> vector<8x128xf32>
    %392 = arith.addf %390, %391 : vector<8x128xf32>
    %393 = vector.broadcast %8 : vector<1x128xf32> to vector<8x128xf32>
    %394 = arith.mulf %392, %393 : vector<8x128xf32>
    %395 = math.tanh %394 : vector<8x128xf32>
    %396 = vector.broadcast %8 : vector<1x128xf32> to vector<8x128xf32>
    %397 = arith.mulf %395, %396 : vector<8x128xf32>
    %398 = vector.broadcast %11 : vector<1x128xf32> to vector<8x128xf32>
    %399 = arith.addf %397, %398 : vector<8x128xf32>
    %400 = vector.extract_strided_slice %399 {offsets = [0, 0], sizes = [8, 32], strides = [1, 1]} : vector<8x128xf32> to vector<8x32xf32>
    %401 = vector.extract_strided_slice %399 {offsets = [0, 32], sizes = [8, 32], strides = [1, 1]} : vector<8x128xf32> to vector<8x32xf32>
    %402 = vector.extract_strided_slice %399 {offsets = [0, 64], sizes = [8, 32], strides = [1, 1]} : vector<8x128xf32> to vector<8x32xf32>
    %403 = vector.extract_strided_slice %399 {offsets = [0, 96], sizes = [8, 32], strides = [1, 1]} : vector<8x128xf32> to vector<8x32xf32>
    %404 = arith.mulf %401, %381 : vector<8x32xf32>
    %405 = arith.mulf %400, %402 : vector<8x32xf32>
    %406 = arith.addf %404, %405 : vector<8x32xf32>
    %407 = math.tanh %406 : vector<8x32xf32>
    %408 = arith.mulf %403, %407 : vector<8x32xf32>
    %409 = arith.index_cast %c6_i32_116 : i32 to index
    %c0_120 = arith.constant 0 : index
    %c0_121 = arith.constant 0 : index
    %410 = vector.load %arg19[%409, %c0_120, %c0_121] : memref<8x8x32xf32, #tpu.memory_space<vmem>>, vector<1x8x32xf32>
    %411 = vector.shape_cast %410 : vector<1x8x32xf32> to vector<8x32xf32>
    %412 = vector.shape_cast %408 : vector<8x32xf32> to vector<1x8x32xf32>
    tpu.vector_store %arg19[%409, %c0_120, %c0_121], %412 {strides = array<i32>} : memref<8x8x32xf32, #tpu.memory_space<vmem>>, vector<1x8x32xf32>,
    %c7_i32_122 = arith.constant 7 : i32
    %413 = arith.index_cast %c7_i32_122 : i32 to index
    %c0_123 = arith.constant 0 : index
    %c0_124 = arith.constant 0 : index
    %414 = vector.load %arg20[%413, %c0_123, %c0_124] : memref<8x8x128xf32, #tpu.memory_space<vmem>>, vector<1x8x128xf32>
    %415 = vector.shape_cast %414 : vector<1x8x128xf32> to vector<8x128xf32>
    %cst_125 = arith.constant dense<0.000000e+00> : vector<8x128xf32>
    %416 = tpu.matmul %408, %235, %cst_125 {dimension_numbers = #tpu.dot_dimension_numbers<[1], [0], [0], [1], [0, 0, 1, 1], [], []>} : vector<8x32xf32>, vector<32x128xf32>, vector<8x128xf32> -> vector<8x128xf32>
    %417 = arith.addf %415, %416 : vector<8x128xf32>
    %418 = vector.broadcast %8 : vector<1x128xf32> to vector<8x128xf32>
    %419 = arith.mulf %417, %418 : vector<8x128xf32>
    %420 = math.tanh %419 : vector<8x128xf32>
    %421 = vector.broadcast %8 : vector<1x128xf32> to vector<8x128xf32>
    %422 = arith.mulf %420, %421 : vector<8x128xf32>
    %423 = vector.broadcast %11 : vector<1x128xf32> to vector<8x128xf32>
    %424 = arith.addf %422, %423 : vector<8x128xf32>
    %425 = vector.extract_strided_slice %424 {offsets = [0, 0], sizes = [8, 32], strides = [1, 1]} : vector<8x128xf32> to vector<8x32xf32>
    %426 = vector.extract_strided_slice %424 {offsets = [0, 32], sizes = [8, 32], strides = [1, 1]} : vector<8x128xf32> to vector<8x32xf32>
    %427 = vector.extract_strided_slice %424 {offsets = [0, 64], sizes = [8, 32], strides = [1, 1]} : vector<8x128xf32> to vector<8x32xf32>
    %428 = vector.extract_strided_slice %424 {offsets = [0, 96], sizes = [8, 32], strides = [1, 1]} : vector<8x128xf32> to vector<8x32xf32>
    %429 = arith.mulf %426, %406 : vector<8x32xf32>
    %430 = arith.mulf %425, %427 : vector<8x32xf32>
    %431 = arith.addf %429, %430 : vector<8x32xf32>
    %432 = math.tanh %431 : vector<8x32xf32>
    %433 = arith.mulf %428, %432 : vector<8x32xf32>
    %434 = arith.index_cast %c7_i32_122 : i32 to index
    %c0_126 = arith.constant 0 : index
    %c0_127 = arith.constant 0 : index
    %435 = vector.load %arg19[%434, %c0_126, %c0_127] : memref<8x8x32xf32, #tpu.memory_space<vmem>>, vector<1x8x32xf32>
    %436 = vector.shape_cast %435 : vector<1x8x32xf32> to vector<8x32xf32>
    %437 = vector.shape_cast %433 : vector<8x32xf32> to vector<1x8x32xf32>
    tpu.vector_store %arg19[%434, %c0_126, %c0_127], %437 {strides = array<i32>} : memref<8x8x32xf32, #tpu.memory_space<vmem>>, vector<1x8x32xf32>,
    %c8_i32_128 = arith.constant 8 : i32
    %c0_129 = arith.constant 0 : index
    %c0_130 = arith.constant 0 : index
    %c0_131 = arith.constant 0 : index
    %438 = vector.load %arg19[%c0_129, %c0_130, %c0_131] : memref<8x8x32xf32, #tpu.memory_space<vmem>>, vector<8x8x32xf32>
    %439 = vector.shape_cast %438 : vector<8x8x32xf32> to vector<64x32xf32>
    %c0_132 = arith.constant 0 : index
    %c0_133 = arith.constant 0 : index
    %440 = vector.load %arg11[%c0_132, %c0_133] : memref<32x128xf32, #tpu.memory_space<vmem>>, vector<32x128xf32>
    %cst_134 = arith.constant dense<0.000000e+00> : vector<64x128xf32>
    %441 = tpu.matmul %439, %440, %cst_134 {dimension_numbers = #tpu.dot_dimension_numbers<[1], [0], [0], [1], [0, 0, 1, 1], [], []>} : vector<64x32xf32>, vector<32x128xf32>, vector<64x128xf32> -> vector<64x128xf32>
    %c0_135 = arith.constant 0 : index
    %c0_136 = arith.constant 0 : index
    %442 = vector.load %arg13[%c0_135, %c0_136] : memref<1x128xf32, #tpu.memory_space<vmem>>, vector<1x128xf32>
    %443 = vector.broadcast %442 : vector<1x128xf32> to vector<64x128xf32>
    %444 = arith.addf %441, %443 : vector<64x128xf32>
    %445 = vector.shape_cast %444 : vector<64x128xf32> to vector<8x8x128xf32>
    %c0_137 = arith.constant 0 : index
    %c0_138 = arith.constant 0 : index
    %c0_139 = arith.constant 0 : index
    %446 = vector.load %arg20[%c0_137, %c0_138, %c0_139] : memref<8x8x128xf32, #tpu.memory_space<vmem>>, vector<8x8x128xf32>
    tpu.vector_store %arg20[%c0_137, %c0_138, %c0_139], %445 {strides = array<i32>} : memref<8x8x128xf32, #tpu.memory_space<vmem>>, vector<8x8x128xf32>,
    %c0_140 = arith.constant 0 : index
    %c0_141 = arith.constant 0 : index
    %447 = vector.load %arg12[%c0_140, %c0_141] : memref<32x128xf32, #tpu.memory_space<vmem>>, vector<32x128xf32>
    %c0_142 = arith.constant 0 : index
    %c0_143 = arith.constant 0 : index
    %448 = vector.load %arg14[%c0_142, %c0_143] : memref<8x32xf32, #tpu.memory_space<vmem>>, vector<8x32xf32>
    %c0_144 = arith.constant 0 : index
    %c0_145 = arith.constant 0 : index
    %449 = vector.load %arg15[%c0_144, %c0_145] : memref<8x32xf32, #tpu.memory_space<vmem>>, vector<8x32xf32>
    %c0_i32_146 = arith.constant 0 : i32
    %450 = arith.index_cast %c0_i32_146 : i32 to index
    %c0_147 = arith.constant 0 : index
    %c0_148 = arith.constant 0 : index
    %451 = vector.load %arg20[%450, %c0_147, %c0_148] : memref<8x8x128xf32, #tpu.memory_space<vmem>>, vector<1x8x128xf32>
    %452 = vector.shape_cast %451 : vector<1x8x128xf32> to vector<8x128xf32>
    %cst_149 = arith.constant dense<0.000000e+00> : vector<8x128xf32>
    %453 = tpu.matmul %448, %447, %cst_149 {dimension_numbers = #tpu.dot_dimension_numbers<[1], [0], [0], [1], [0, 0, 1, 1], [], []>} : vector<8x32xf32>, vector<32x128xf32>, vector<8x128xf32> -> vector<8x128xf32>
    %454 = arith.addf %452, %453 : vector<8x128xf32>
    %455 = vector.broadcast %8 : vector<1x128xf32> to vector<8x128xf32>
    %456 = arith.mulf %454, %455 : vector<8x128xf32>
    %457 = math.tanh %456 : vector<8x128xf32>
    %458 = vector.broadcast %8 : vector<1x128xf32> to vector<8x128xf32>
    %459 = arith.mulf %457, %458 : vector<8x128xf32>
    %460 = vector.broadcast %11 : vector<1x128xf32> to vector<8x128xf32>
    %461 = arith.addf %459, %460 : vector<8x128xf32>
    %462 = vector.extract_strided_slice %461 {offsets = [0, 0], sizes = [8, 32], strides = [1, 1]} : vector<8x128xf32> to vector<8x32xf32>
    %463 = vector.extract_strided_slice %461 {offsets = [0, 32], sizes = [8, 32], strides = [1, 1]} : vector<8x128xf32> to vector<8x32xf32>
    %464 = vector.extract_strided_slice %461 {offsets = [0, 64], sizes = [8, 32], strides = [1, 1]} : vector<8x128xf32> to vector<8x32xf32>
    %465 = vector.extract_strided_slice %461 {offsets = [0, 96], sizes = [8, 32], strides = [1, 1]} : vector<8x128xf32> to vector<8x32xf32>
    %466 = arith.mulf %463, %449 : vector<8x32xf32>
    %467 = arith.mulf %462, %464 : vector<8x32xf32>
    %468 = arith.addf %466, %467 : vector<8x32xf32>
    %469 = math.tanh %468 : vector<8x32xf32>
    %470 = arith.mulf %465, %469 : vector<8x32xf32>
    %471 = vector.broadcast %12 : vector<1x32xf32> to vector<8x32xf32>
    %472 = arith.mulf %470, %471 : vector<8x32xf32>
    %cst_150 = arith.constant dense<0.000000e+00> : vector<8xf32>
    %473 = vector.multi_reduction <add>, %472, %cst_150 [1] : vector<8x32xf32> to vector<8xf32>
    %474 = vector.shape_cast %473 : vector<8xf32> to vector<8x1xf32>
    %475 = vector.broadcast %13 : vector<1x1xf32> to vector<8x1xf32>
    %476 = arith.addf %474, %475 : vector<8x1xf32>
    %cst_151 = arith.constant 5.000000e-01 : f32
    %477 = vector.broadcast %cst_151 : f32 to vector<8x1xf32>
    %478 = arith.mulf %477, %476 : vector<8x1xf32>
    %479 = math.tanh %478 : vector<8x1xf32>
    %cst_152 = arith.constant 5.000000e-01 : f32
    %480 = vector.broadcast %cst_152 : f32 to vector<8x1xf32>
    %481 = arith.mulf %480, %479 : vector<8x1xf32>
    %cst_153 = arith.constant 5.000000e-01 : f32
    %482 = vector.broadcast %cst_153 : f32 to vector<8x1xf32>
    %483 = arith.addf %481, %482 : vector<8x1xf32>
    %484 = arith.index_cast %c0_i32_146 : i32 to index
    %c0_154 = arith.constant 0 : index
    %c0_155 = arith.constant 0 : index
    %485 = vector.load %arg18[%484, %c0_154, %c0_155] : memref<8x8x1xf32, #tpu.memory_space<vmem>>, vector<1x8x1xf32>
    %486 = vector.shape_cast %485 : vector<1x8x1xf32> to vector<8x1xf32>
    %487 = vector.shape_cast %483 : vector<8x1xf32> to vector<1x8x1xf32>
    tpu.vector_store %arg18[%484, %c0_154, %c0_155], %487 {strides = array<i32>} : memref<8x8x1xf32, #tpu.memory_space<vmem>>, vector<1x8x1xf32>,
    %c1_i32_156 = arith.constant 1 : i32
    %488 = arith.index_cast %c1_i32_156 : i32 to index
    %c0_157 = arith.constant 0 : index
    %c0_158 = arith.constant 0 : index
    %489 = vector.load %arg20[%488, %c0_157, %c0_158] : memref<8x8x128xf32, #tpu.memory_space<vmem>>, vector<1x8x128xf32>
    %490 = vector.shape_cast %489 : vector<1x8x128xf32> to vector<8x128xf32>
    %cst_159 = arith.constant dense<0.000000e+00> : vector<8x128xf32>
    %491 = tpu.matmul %470, %447, %cst_159 {dimension_numbers = #tpu.dot_dimension_numbers<[1], [0], [0], [1], [0, 0, 1, 1], [], []>} : vector<8x32xf32>, vector<32x128xf32>, vector<8x128xf32> -> vector<8x128xf32>
    %492 = arith.addf %490, %491 : vector<8x128xf32>
    %493 = vector.broadcast %8 : vector<1x128xf32> to vector<8x128xf32>
    %494 = arith.mulf %492, %493 : vector<8x128xf32>
    %495 = math.tanh %494 : vector<8x128xf32>
    %496 = vector.broadcast %8 : vector<1x128xf32> to vector<8x128xf32>
    %497 = arith.mulf %495, %496 : vector<8x128xf32>
    %498 = vector.broadcast %11 : vector<1x128xf32> to vector<8x128xf32>
    %499 = arith.addf %497, %498 : vector<8x128xf32>
    %500 = vector.extract_strided_slice %499 {offsets = [0, 0], sizes = [8, 32], strides = [1, 1]} : vector<8x128xf32> to vector<8x32xf32>
    %501 = vector.extract_strided_slice %499 {offsets = [0, 32], sizes = [8, 32], strides = [1, 1]} : vector<8x128xf32> to vector<8x32xf32>
    %502 = vector.extract_strided_slice %499 {offsets = [0, 64], sizes = [8, 32], strides = [1, 1]} : vector<8x128xf32> to vector<8x32xf32>
    %503 = vector.extract_strided_slice %499 {offsets = [0, 96], sizes = [8, 32], strides = [1, 1]} : vector<8x128xf32> to vector<8x32xf32>
    %504 = arith.mulf %501, %468 : vector<8x32xf32>
    %505 = arith.mulf %500, %502 : vector<8x32xf32>
    %506 = arith.addf %504, %505 : vector<8x32xf32>
    %507 = math.tanh %506 : vector<8x32xf32>
    %508 = arith.mulf %503, %507 : vector<8x32xf32>
    %509 = vector.broadcast %12 : vector<1x32xf32> to vector<8x32xf32>
    %510 = arith.mulf %508, %509 : vector<8x32xf32>
    %cst_160 = arith.constant dense<0.000000e+00> : vector<8xf32>
    %511 = vector.multi_reduction <add>, %510, %cst_160 [1] : vector<8x32xf32> to vector<8xf32>
    %512 = vector.shape_cast %511 : vector<8xf32> to vector<8x1xf32>
    %513 = vector.broadcast %13 : vector<1x1xf32> to vector<8x1xf32>
    %514 = arith.addf %512, %513 : vector<8x1xf32>
    %cst_161 = arith.constant 5.000000e-01 : f32
    %515 = vector.broadcast %cst_161 : f32 to vector<8x1xf32>
    %516 = arith.mulf %515, %514 : vector<8x1xf32>
    %517 = math.tanh %516 : vector<8x1xf32>
    %cst_162 = arith.constant 5.000000e-01 : f32
    %518 = vector.broadcast %cst_162 : f32 to vector<8x1xf32>
    %519 = arith.mulf %518, %517 : vector<8x1xf32>
    %cst_163 = arith.constant 5.000000e-01 : f32
    %520 = vector.broadcast %cst_163 : f32 to vector<8x1xf32>
    %521 = arith.addf %519, %520 : vector<8x1xf32>
    %522 = arith.index_cast %c1_i32_156 : i32 to index
    %c0_164 = arith.constant 0 : index
    %c0_165 = arith.constant 0 : index
    %523 = vector.load %arg18[%522, %c0_164, %c0_165] : memref<8x8x1xf32, #tpu.memory_space<vmem>>, vector<1x8x1xf32>
    %524 = vector.shape_cast %523 : vector<1x8x1xf32> to vector<8x1xf32>
    %525 = vector.shape_cast %521 : vector<8x1xf32> to vector<1x8x1xf32>
    tpu.vector_store %arg18[%522, %c0_164, %c0_165], %525 {strides = array<i32>} : memref<8x8x1xf32, #tpu.memory_space<vmem>>, vector<1x8x1xf32>,
    %c2_i32_166 = arith.constant 2 : i32
    %526 = arith.index_cast %c2_i32_166 : i32 to index
    %c0_167 = arith.constant 0 : index
    %c0_168 = arith.constant 0 : index
    %527 = vector.load %arg20[%526, %c0_167, %c0_168] : memref<8x8x128xf32, #tpu.memory_space<vmem>>, vector<1x8x128xf32>
    %528 = vector.shape_cast %527 : vector<1x8x128xf32> to vector<8x128xf32>
    %cst_169 = arith.constant dense<0.000000e+00> : vector<8x128xf32>
    %529 = tpu.matmul %508, %447, %cst_169 {dimension_numbers = #tpu.dot_dimension_numbers<[1], [0], [0], [1], [0, 0, 1, 1], [], []>} : vector<8x32xf32>, vector<32x128xf32>, vector<8x128xf32> -> vector<8x128xf32>
    %530 = arith.addf %528, %529 : vector<8x128xf32>
    %531 = vector.broadcast %8 : vector<1x128xf32> to vector<8x128xf32>
    %532 = arith.mulf %530, %531 : vector<8x128xf32>
    %533 = math.tanh %532 : vector<8x128xf32>
    %534 = vector.broadcast %8 : vector<1x128xf32> to vector<8x128xf32>
    %535 = arith.mulf %533, %534 : vector<8x128xf32>
    %536 = vector.broadcast %11 : vector<1x128xf32> to vector<8x128xf32>
    %537 = arith.addf %535, %536 : vector<8x128xf32>
    %538 = vector.extract_strided_slice %537 {offsets = [0, 0], sizes = [8, 32], strides = [1, 1]} : vector<8x128xf32> to vector<8x32xf32>
    %539 = vector.extract_strided_slice %537 {offsets = [0, 32], sizes = [8, 32], strides = [1, 1]} : vector<8x128xf32> to vector<8x32xf32>
    %540 = vector.extract_strided_slice %537 {offsets = [0, 64], sizes = [8, 32], strides = [1, 1]} : vector<8x128xf32> to vector<8x32xf32>
    %541 = vector.extract_strided_slice %537 {offsets = [0, 96], sizes = [8, 32], strides = [1, 1]} : vector<8x128xf32> to vector<8x32xf32>
    %542 = arith.mulf %539, %506 : vector<8x32xf32>
    %543 = arith.mulf %538, %540 : vector<8x32xf32>
    %544 = arith.addf %542, %543 : vector<8x32xf32>
    %545 = math.tanh %544 : vector<8x32xf32>
    %546 = arith.mulf %541, %545 : vector<8x32xf32>
    %547 = vector.broadcast %12 : vector<1x32xf32> to vector<8x32xf32>
    %548 = arith.mulf %546, %547 : vector<8x32xf32>
    %cst_170 = arith.constant dense<0.000000e+00> : vector<8xf32>
    %549 = vector.multi_reduction <add>, %548, %cst_170 [1] : vector<8x32xf32> to vector<8xf32>
    %550 = vector.shape_cast %549 : vector<8xf32> to vector<8x1xf32>
    %551 = vector.broadcast %13 : vector<1x1xf32> to vector<8x1xf32>
    %552 = arith.addf %550, %551 : vector<8x1xf32>
    %cst_171 = arith.constant 5.000000e-01 : f32
    %553 = vector.broadcast %cst_171 : f32 to vector<8x1xf32>
    %554 = arith.mulf %553, %552 : vector<8x1xf32>
    %555 = math.tanh %554 : vector<8x1xf32>
    %cst_172 = arith.constant 5.000000e-01 : f32
    %556 = vector.broadcast %cst_172 : f32 to vector<8x1xf32>
    %557 = arith.mulf %556, %555 : vector<8x1xf32>
    %cst_173 = arith.constant 5.000000e-01 : f32
    %558 = vector.broadcast %cst_173 : f32 to vector<8x1xf32>
    %559 = arith.addf %557, %558 : vector<8x1xf32>
    %560 = arith.index_cast %c2_i32_166 : i32 to index
    %c0_174 = arith.constant 0 : index
    %c0_175 = arith.constant 0 : index
    %561 = vector.load %arg18[%560, %c0_174, %c0_175] : memref<8x8x1xf32, #tpu.memory_space<vmem>>, vector<1x8x1xf32>
    %562 = vector.shape_cast %561 : vector<1x8x1xf32> to vector<8x1xf32>
    %563 = vector.shape_cast %559 : vector<8x1xf32> to vector<1x8x1xf32>
    tpu.vector_store %arg18[%560, %c0_174, %c0_175], %563 {strides = array<i32>} : memref<8x8x1xf32, #tpu.memory_space<vmem>>, vector<1x8x1xf32>,
    %c3_i32_176 = arith.constant 3 : i32
    %564 = arith.index_cast %c3_i32_176 : i32 to index
    %c0_177 = arith.constant 0 : index
    %c0_178 = arith.constant 0 : index
    %565 = vector.load %arg20[%564, %c0_177, %c0_178] : memref<8x8x128xf32, #tpu.memory_space<vmem>>, vector<1x8x128xf32>
    %566 = vector.shape_cast %565 : vector<1x8x128xf32> to vector<8x128xf32>
    %cst_179 = arith.constant dense<0.000000e+00> : vector<8x128xf32>
    %567 = tpu.matmul %546, %447, %cst_179 {dimension_numbers = #tpu.dot_dimension_numbers<[1], [0], [0], [1], [0, 0, 1, 1], [], []>} : vector<8x32xf32>, vector<32x128xf32>, vector<8x128xf32> -> vector<8x128xf32>
    %568 = arith.addf %566, %567 : vector<8x128xf32>
    %569 = vector.broadcast %8 : vector<1x128xf32> to vector<8x128xf32>
    %570 = arith.mulf %568, %569 : vector<8x128xf32>
    %571 = math.tanh %570 : vector<8x128xf32>
    %572 = vector.broadcast %8 : vector<1x128xf32> to vector<8x128xf32>
    %573 = arith.mulf %571, %572 : vector<8x128xf32>
    %574 = vector.broadcast %11 : vector<1x128xf32> to vector<8x128xf32>
    %575 = arith.addf %573, %574 : vector<8x128xf32>
    %576 = vector.extract_strided_slice %575 {offsets = [0, 0], sizes = [8, 32], strides = [1, 1]} : vector<8x128xf32> to vector<8x32xf32>
    %577 = vector.extract_strided_slice %575 {offsets = [0, 32], sizes = [8, 32], strides = [1, 1]} : vector<8x128xf32> to vector<8x32xf32>
    %578 = vector.extract_strided_slice %575 {offsets = [0, 64], sizes = [8, 32], strides = [1, 1]} : vector<8x128xf32> to vector<8x32xf32>
    %579 = vector.extract_strided_slice %575 {offsets = [0, 96], sizes = [8, 32], strides = [1, 1]} : vector<8x128xf32> to vector<8x32xf32>
    %580 = arith.mulf %577, %544 : vector<8x32xf32>
    %581 = arith.mulf %576, %578 : vector<8x32xf32>
    %582 = arith.addf %580, %581 : vector<8x32xf32>
    %583 = math.tanh %582 : vector<8x32xf32>
    %584 = arith.mulf %579, %583 : vector<8x32xf32>
    %585 = vector.broadcast %12 : vector<1x32xf32> to vector<8x32xf32>
    %586 = arith.mulf %584, %585 : vector<8x32xf32>
    %cst_180 = arith.constant dense<0.000000e+00> : vector<8xf32>
    %587 = vector.multi_reduction <add>, %586, %cst_180 [1] : vector<8x32xf32> to vector<8xf32>
    %588 = vector.shape_cast %587 : vector<8xf32> to vector<8x1xf32>
    %589 = vector.broadcast %13 : vector<1x1xf32> to vector<8x1xf32>
    %590 = arith.addf %588, %589 : vector<8x1xf32>
    %cst_181 = arith.constant 5.000000e-01 : f32
    %591 = vector.broadcast %cst_181 : f32 to vector<8x1xf32>
    %592 = arith.mulf %591, %590 : vector<8x1xf32>
    %593 = math.tanh %592 : vector<8x1xf32>
    %cst_182 = arith.constant 5.000000e-01 : f32
    %594 = vector.broadcast %cst_182 : f32 to vector<8x1xf32>
    %595 = arith.mulf %594, %593 : vector<8x1xf32>
    %cst_183 = arith.constant 5.000000e-01 : f32
    %596 = vector.broadcast %cst_183 : f32 to vector<8x1xf32>
    %597 = arith.addf %595, %596 : vector<8x1xf32>
    %598 = arith.index_cast %c3_i32_176 : i32 to index
    %c0_184 = arith.constant 0 : index
    %c0_185 = arith.constant 0 : index
    %599 = vector.load %arg18[%598, %c0_184, %c0_185] : memref<8x8x1xf32, #tpu.memory_space<vmem>>, vector<1x8x1xf32>
    %600 = vector.shape_cast %599 : vector<1x8x1xf32> to vector<8x1xf32>
    %601 = vector.shape_cast %597 : vector<8x1xf32> to vector<1x8x1xf32>
    tpu.vector_store %arg18[%598, %c0_184, %c0_185], %601 {strides = array<i32>} : memref<8x8x1xf32, #tpu.memory_space<vmem>>, vector<1x8x1xf32>,
    %c4_i32_186 = arith.constant 4 : i32
    %602 = arith.index_cast %c4_i32_186 : i32 to index
    %c0_187 = arith.constant 0 : index
    %c0_188 = arith.constant 0 : index
    %603 = vector.load %arg20[%602, %c0_187, %c0_188] : memref<8x8x128xf32, #tpu.memory_space<vmem>>, vector<1x8x128xf32>
    %604 = vector.shape_cast %603 : vector<1x8x128xf32> to vector<8x128xf32>
    %cst_189 = arith.constant dense<0.000000e+00> : vector<8x128xf32>
    %605 = tpu.matmul %584, %447, %cst_189 {dimension_numbers = #tpu.dot_dimension_numbers<[1], [0], [0], [1], [0, 0, 1, 1], [], []>} : vector<8x32xf32>, vector<32x128xf32>, vector<8x128xf32> -> vector<8x128xf32>
    %606 = arith.addf %604, %605 : vector<8x128xf32>
    %607 = vector.broadcast %8 : vector<1x128xf32> to vector<8x128xf32>
    %608 = arith.mulf %606, %607 : vector<8x128xf32>
    %609 = math.tanh %608 : vector<8x128xf32>
    %610 = vector.broadcast %8 : vector<1x128xf32> to vector<8x128xf32>
    %611 = arith.mulf %609, %610 : vector<8x128xf32>
    %612 = vector.broadcast %11 : vector<1x128xf32> to vector<8x128xf32>
    %613 = arith.addf %611, %612 : vector<8x128xf32>
    %614 = vector.extract_strided_slice %613 {offsets = [0, 0], sizes = [8, 32], strides = [1, 1]} : vector<8x128xf32> to vector<8x32xf32>
    %615 = vector.extract_strided_slice %613 {offsets = [0, 32], sizes = [8, 32], strides = [1, 1]} : vector<8x128xf32> to vector<8x32xf32>
    %616 = vector.extract_strided_slice %613 {offsets = [0, 64], sizes = [8, 32], strides = [1, 1]} : vector<8x128xf32> to vector<8x32xf32>
    %617 = vector.extract_strided_slice %613 {offsets = [0, 96], sizes = [8, 32], strides = [1, 1]} : vector<8x128xf32> to vector<8x32xf32>
    %618 = arith.mulf %615, %582 : vector<8x32xf32>
    %619 = arith.mulf %614, %616 : vector<8x32xf32>
    %620 = arith.addf %618, %619 : vector<8x32xf32>
    %621 = math.tanh %620 : vector<8x32xf32>
    %622 = arith.mulf %617, %621 : vector<8x32xf32>
    %623 = vector.broadcast %12 : vector<1x32xf32> to vector<8x32xf32>
    %624 = arith.mulf %622, %623 : vector<8x32xf32>
    %cst_190 = arith.constant dense<0.000000e+00> : vector<8xf32>
    %625 = vector.multi_reduction <add>, %624, %cst_190 [1] : vector<8x32xf32> to vector<8xf32>
    %626 = vector.shape_cast %625 : vector<8xf32> to vector<8x1xf32>
    %627 = vector.broadcast %13 : vector<1x1xf32> to vector<8x1xf32>
    %628 = arith.addf %626, %627 : vector<8x1xf32>
    %cst_191 = arith.constant 5.000000e-01 : f32
    %629 = vector.broadcast %cst_191 : f32 to vector<8x1xf32>
    %630 = arith.mulf %629, %628 : vector<8x1xf32>
    %631 = math.tanh %630 : vector<8x1xf32>
    %cst_192 = arith.constant 5.000000e-01 : f32
    %632 = vector.broadcast %cst_192 : f32 to vector<8x1xf32>
    %633 = arith.mulf %632, %631 : vector<8x1xf32>
    %cst_193 = arith.constant 5.000000e-01 : f32
    %634 = vector.broadcast %cst_193 : f32 to vector<8x1xf32>
    %635 = arith.addf %633, %634 : vector<8x1xf32>
    %636 = arith.index_cast %c4_i32_186 : i32 to index
    %c0_194 = arith.constant 0 : index
    %c0_195 = arith.constant 0 : index
    %637 = vector.load %arg18[%636, %c0_194, %c0_195] : memref<8x8x1xf32, #tpu.memory_space<vmem>>, vector<1x8x1xf32>
    %638 = vector.shape_cast %637 : vector<1x8x1xf32> to vector<8x1xf32>
    %639 = vector.shape_cast %635 : vector<8x1xf32> to vector<1x8x1xf32>
    tpu.vector_store %arg18[%636, %c0_194, %c0_195], %639 {strides = array<i32>} : memref<8x8x1xf32, #tpu.memory_space<vmem>>, vector<1x8x1xf32>,
    %c5_i32_196 = arith.constant 5 : i32
    %640 = arith.index_cast %c5_i32_196 : i32 to index
    %c0_197 = arith.constant 0 : index
    %c0_198 = arith.constant 0 : index
    %641 = vector.load %arg20[%640, %c0_197, %c0_198] : memref<8x8x128xf32, #tpu.memory_space<vmem>>, vector<1x8x128xf32>
    %642 = vector.shape_cast %641 : vector<1x8x128xf32> to vector<8x128xf32>
    %cst_199 = arith.constant dense<0.000000e+00> : vector<8x128xf32>
    %643 = tpu.matmul %622, %447, %cst_199 {dimension_numbers = #tpu.dot_dimension_numbers<[1], [0], [0], [1], [0, 0, 1, 1], [], []>} : vector<8x32xf32>, vector<32x128xf32>, vector<8x128xf32> -> vector<8x128xf32>
    %644 = arith.addf %642, %643 : vector<8x128xf32>
    %645 = vector.broadcast %8 : vector<1x128xf32> to vector<8x128xf32>
    %646 = arith.mulf %644, %645 : vector<8x128xf32>
    %647 = math.tanh %646 : vector<8x128xf32>
    %648 = vector.broadcast %8 : vector<1x128xf32> to vector<8x128xf32>
    %649 = arith.mulf %647, %648 : vector<8x128xf32>
    %650 = vector.broadcast %11 : vector<1x128xf32> to vector<8x128xf32>
    %651 = arith.addf %649, %650 : vector<8x128xf32>
    %652 = vector.extract_strided_slice %651 {offsets = [0, 0], sizes = [8, 32], strides = [1, 1]} : vector<8x128xf32> to vector<8x32xf32>
    %653 = vector.extract_strided_slice %651 {offsets = [0, 32], sizes = [8, 32], strides = [1, 1]} : vector<8x128xf32> to vector<8x32xf32>
    %654 = vector.extract_strided_slice %651 {offsets = [0, 64], sizes = [8, 32], strides = [1, 1]} : vector<8x128xf32> to vector<8x32xf32>
    %655 = vector.extract_strided_slice %651 {offsets = [0, 96], sizes = [8, 32], strides = [1, 1]} : vector<8x128xf32> to vector<8x32xf32>
    %656 = arith.mulf %653, %620 : vector<8x32xf32>
    %657 = arith.mulf %652, %654 : vector<8x32xf32>
    %658 = arith.addf %656, %657 : vector<8x32xf32>
    %659 = math.tanh %658 : vector<8x32xf32>
    %660 = arith.mulf %655, %659 : vector<8x32xf32>
    %661 = vector.broadcast %12 : vector<1x32xf32> to vector<8x32xf32>
    %662 = arith.mulf %660, %661 : vector<8x32xf32>
    %cst_200 = arith.constant dense<0.000000e+00> : vector<8xf32>
    %663 = vector.multi_reduction <add>, %662, %cst_200 [1] : vector<8x32xf32> to vector<8xf32>
    %664 = vector.shape_cast %663 : vector<8xf32> to vector<8x1xf32>
    %665 = vector.broadcast %13 : vector<1x1xf32> to vector<8x1xf32>
    %666 = arith.addf %664, %665 : vector<8x1xf32>
    %cst_201 = arith.constant 5.000000e-01 : f32
    %667 = vector.broadcast %cst_201 : f32 to vector<8x1xf32>
    %668 = arith.mulf %667, %666 : vector<8x1xf32>
    %669 = math.tanh %668 : vector<8x1xf32>
    %cst_202 = arith.constant 5.000000e-01 : f32
    %670 = vector.broadcast %cst_202 : f32 to vector<8x1xf32>
    %671 = arith.mulf %670, %669 : vector<8x1xf32>
    %cst_203 = arith.constant 5.000000e-01 : f32
    %672 = vector.broadcast %cst_203 : f32 to vector<8x1xf32>
    %673 = arith.addf %671, %672 : vector<8x1xf32>
    %674 = arith.index_cast %c5_i32_196 : i32 to index
    %c0_204 = arith.constant 0 : index
    %c0_205 = arith.constant 0 : index
    %675 = vector.load %arg18[%674, %c0_204, %c0_205] : memref<8x8x1xf32, #tpu.memory_space<vmem>>, vector<1x8x1xf32>
    %676 = vector.shape_cast %675 : vector<1x8x1xf32> to vector<8x1xf32>
    %677 = vector.shape_cast %673 : vector<8x1xf32> to vector<1x8x1xf32>
    tpu.vector_store %arg18[%674, %c0_204, %c0_205], %677 {strides = array<i32>} : memref<8x8x1xf32, #tpu.memory_space<vmem>>, vector<1x8x1xf32>,
    %c6_i32_206 = arith.constant 6 : i32
    %678 = arith.index_cast %c6_i32_206 : i32 to index
    %c0_207 = arith.constant 0 : index
    %c0_208 = arith.constant 0 : index
    %679 = vector.load %arg20[%678, %c0_207, %c0_208] : memref<8x8x128xf32, #tpu.memory_space<vmem>>, vector<1x8x128xf32>
    %680 = vector.shape_cast %679 : vector<1x8x128xf32> to vector<8x128xf32>
    %cst_209 = arith.constant dense<0.000000e+00> : vector<8x128xf32>
    %681 = tpu.matmul %660, %447, %cst_209 {dimension_numbers = #tpu.dot_dimension_numbers<[1], [0], [0], [1], [0, 0, 1, 1], [], []>} : vector<8x32xf32>, vector<32x128xf32>, vector<8x128xf32> -> vector<8x128xf32>
    %682 = arith.addf %680, %681 : vector<8x128xf32>
    %683 = vector.broadcast %8 : vector<1x128xf32> to vector<8x128xf32>
    %684 = arith.mulf %682, %683 : vector<8x128xf32>
    %685 = math.tanh %684 : vector<8x128xf32>
    %686 = vector.broadcast %8 : vector<1x128xf32> to vector<8x128xf32>
    %687 = arith.mulf %685, %686 : vector<8x128xf32>
    %688 = vector.broadcast %11 : vector<1x128xf32> to vector<8x128xf32>
    %689 = arith.addf %687, %688 : vector<8x128xf32>
    %690 = vector.extract_strided_slice %689 {offsets = [0, 0], sizes = [8, 32], strides = [1, 1]} : vector<8x128xf32> to vector<8x32xf32>
    %691 = vector.extract_strided_slice %689 {offsets = [0, 32], sizes = [8, 32], strides = [1, 1]} : vector<8x128xf32> to vector<8x32xf32>
    %692 = vector.extract_strided_slice %689 {offsets = [0, 64], sizes = [8, 32], strides = [1, 1]} : vector<8x128xf32> to vector<8x32xf32>
    %693 = vector.extract_strided_slice %689 {offsets = [0, 96], sizes = [8, 32], strides = [1, 1]} : vector<8x128xf32> to vector<8x32xf32>
    %694 = arith.mulf %691, %658 : vector<8x32xf32>
    %695 = arith.mulf %690, %692 : vector<8x32xf32>
    %696 = arith.addf %694, %695 : vector<8x32xf32>
    %697 = math.tanh %696 : vector<8x32xf32>
    %698 = arith.mulf %693, %697 : vector<8x32xf32>
    %699 = vector.broadcast %12 : vector<1x32xf32> to vector<8x32xf32>
    %700 = arith.mulf %698, %699 : vector<8x32xf32>
    %cst_210 = arith.constant dense<0.000000e+00> : vector<8xf32>
    %701 = vector.multi_reduction <add>, %700, %cst_210 [1] : vector<8x32xf32> to vector<8xf32>
    %702 = vector.shape_cast %701 : vector<8xf32> to vector<8x1xf32>
    %703 = vector.broadcast %13 : vector<1x1xf32> to vector<8x1xf32>
    %704 = arith.addf %702, %703 : vector<8x1xf32>
    %cst_211 = arith.constant 5.000000e-01 : f32
    %705 = vector.broadcast %cst_211 : f32 to vector<8x1xf32>
    %706 = arith.mulf %705, %704 : vector<8x1xf32>
    %707 = math.tanh %706 : vector<8x1xf32>
    %cst_212 = arith.constant 5.000000e-01 : f32
    %708 = vector.broadcast %cst_212 : f32 to vector<8x1xf32>
    %709 = arith.mulf %708, %707 : vector<8x1xf32>
    %cst_213 = arith.constant 5.000000e-01 : f32
    %710 = vector.broadcast %cst_213 : f32 to vector<8x1xf32>
    %711 = arith.addf %709, %710 : vector<8x1xf32>
    %712 = arith.index_cast %c6_i32_206 : i32 to index
    %c0_214 = arith.constant 0 : index
    %c0_215 = arith.constant 0 : index
    %713 = vector.load %arg18[%712, %c0_214, %c0_215] : memref<8x8x1xf32, #tpu.memory_space<vmem>>, vector<1x8x1xf32>
    %714 = vector.shape_cast %713 : vector<1x8x1xf32> to vector<8x1xf32>
    %715 = vector.shape_cast %711 : vector<8x1xf32> to vector<1x8x1xf32>
    tpu.vector_store %arg18[%712, %c0_214, %c0_215], %715 {strides = array<i32>} : memref<8x8x1xf32, #tpu.memory_space<vmem>>, vector<1x8x1xf32>,
    %c7_i32_216 = arith.constant 7 : i32
    %716 = arith.index_cast %c7_i32_216 : i32 to index
    %c0_217 = arith.constant 0 : index
    %c0_218 = arith.constant 0 : index
    %717 = vector.load %arg20[%716, %c0_217, %c0_218] : memref<8x8x128xf32, #tpu.memory_space<vmem>>, vector<1x8x128xf32>
    %718 = vector.shape_cast %717 : vector<1x8x128xf32> to vector<8x128xf32>
    %cst_219 = arith.constant dense<0.000000e+00> : vector<8x128xf32>
    %719 = tpu.matmul %698, %447, %cst_219 {dimension_numbers = #tpu.dot_dimension_numbers<[1], [0], [0], [1], [0, 0, 1, 1], [], []>} : vector<8x32xf32>, vector<32x128xf32>, vector<8x128xf32> -> vector<8x128xf32>
    %720 = arith.addf %718, %719 : vector<8x128xf32>
    %721 = vector.broadcast %8 : vector<1x128xf32> to vector<8x128xf32>
    %722 = arith.mulf %720, %721 : vector<8x128xf32>
    %723 = math.tanh %722 : vector<8x128xf32>
    %724 = vector.broadcast %8 : vector<1x128xf32> to vector<8x128xf32>
    %725 = arith.mulf %723, %724 : vector<8x128xf32>
    %726 = vector.broadcast %11 : vector<1x128xf32> to vector<8x128xf32>
    %727 = arith.addf %725, %726 : vector<8x128xf32>
    %728 = vector.extract_strided_slice %727 {offsets = [0, 0], sizes = [8, 32], strides = [1, 1]} : vector<8x128xf32> to vector<8x32xf32>
    %729 = vector.extract_strided_slice %727 {offsets = [0, 32], sizes = [8, 32], strides = [1, 1]} : vector<8x128xf32> to vector<8x32xf32>
    %730 = vector.extract_strided_slice %727 {offsets = [0, 64], sizes = [8, 32], strides = [1, 1]} : vector<8x128xf32> to vector<8x32xf32>
    %731 = vector.extract_strided_slice %727 {offsets = [0, 96], sizes = [8, 32], strides = [1, 1]} : vector<8x128xf32> to vector<8x32xf32>
    %732 = arith.mulf %729, %696 : vector<8x32xf32>
    %733 = arith.mulf %728, %730 : vector<8x32xf32>
    %734 = arith.addf %732, %733 : vector<8x32xf32>
    %735 = math.tanh %734 : vector<8x32xf32>
    %736 = arith.mulf %731, %735 : vector<8x32xf32>
    %737 = vector.broadcast %12 : vector<1x32xf32> to vector<8x32xf32>
    %738 = arith.mulf %736, %737 : vector<8x32xf32>
    %cst_220 = arith.constant dense<0.000000e+00> : vector<8xf32>
    %739 = vector.multi_reduction <add>, %738, %cst_220 [1] : vector<8x32xf32> to vector<8xf32>
    %740 = vector.shape_cast %739 : vector<8xf32> to vector<8x1xf32>
    %741 = vector.broadcast %13 : vector<1x1xf32> to vector<8x1xf32>
    %742 = arith.addf %740, %741 : vector<8x1xf32>
    %cst_221 = arith.constant 5.000000e-01 : f32
    %743 = vector.broadcast %cst_221 : f32 to vector<8x1xf32>
    %744 = arith.mulf %743, %742 : vector<8x1xf32>
    %745 = math.tanh %744 : vector<8x1xf32>
    %cst_222 = arith.constant 5.000000e-01 : f32
    %746 = vector.broadcast %cst_222 : f32 to vector<8x1xf32>
    %747 = arith.mulf %746, %745 : vector<8x1xf32>
    %cst_223 = arith.constant 5.000000e-01 : f32
    %748 = vector.broadcast %cst_223 : f32 to vector<8x1xf32>
    %749 = arith.addf %747, %748 : vector<8x1xf32>
    %750 = arith.index_cast %c7_i32_216 : i32 to index
    %c0_224 = arith.constant 0 : index
    %c0_225 = arith.constant 0 : index
    %751 = vector.load %arg18[%750, %c0_224, %c0_225] : memref<8x8x1xf32, #tpu.memory_space<vmem>>, vector<1x8x1xf32>
    %752 = vector.shape_cast %751 : vector<1x8x1xf32> to vector<8x1xf32>
    %753 = vector.shape_cast %749 : vector<8x1xf32> to vector<1x8x1xf32>
    tpu.vector_store %arg18[%750, %c0_224, %c0_225], %753 {strides = array<i32>} : memref<8x8x1xf32, #tpu.memory_space<vmem>>, vector<1x8x1xf32>,
    %c8_i32_226 = arith.constant 8 : i32
    return
  }
}

</mosaic_0001>

<llo_original>
// kernel: rnn_char_tagger_forward.1
$region0: #{rnn_char_tagger_forward.1}
  #allocation0 [shape = 'u32[]', space=smem, size = 0x4, offset = 0x4, fixed_abs, tag = 'smem constant byte address 0x4 - core index']
  #allocation1 [shape = 'u32[144,128]{1,0:T(1,128)}', space=vmem, size = 0x12000, scoped, tag = 'internal scratch']
  #allocation2 [shape = 'f32[8,8,32]{2,1,0:T(8,128)}', space=vmem, size = 0x8000, scoped, tag = 'scratch operand']
  #allocation3 [shape = 'f32[8,8,128]{2,1,0:T(8,128)}', space=vmem, size = 0x8000, scoped, tag = 'scratch operand']
  #allocation4 [shape = 'f32[1,1]{1,0:T(1,128)S(1)}', space=vmem, size = 0x200, scoped, tag = 'scoped memory for rnn_char_tagger_forward.1']
  %s0 = inlined_call_operand.vmem [shape: f32[8,8,16], index: 0, kind: input, shape index: {}]
  %s1 = inlined_call_operand.vmem [shape: f32[16,128], index: 1, kind: input, shape index: {}]
  %s2 = inlined_call_operand.vmem [shape: f32[32,128], index: 2, kind: input, shape index: {}]
  %s3 = inlined_call_operand.vmem [shape: f32[1,128], index: 3, kind: input, shape index: {}]
  %s4 = inlined_call_operand.vmem [shape: f32[8,32], index: 4, kind: input, shape index: {}]
  %s5 = inlined_call_operand.vmem [shape: f32[8,32], index: 5, kind: input, shape index: {}]
  %s6 = inlined_call_operand.vmem [shape: f32[32,128], index: 6, kind: input, shape index: {}]
  %s7 = inlined_call_operand.vmem [shape: f32[32,128], index: 7, kind: input, shape index: {}]
  %s8 = inlined_call_operand.vmem [shape: f32[1,128], index: 8, kind: input, shape index: {}]
  %s9 = inlined_call_operand.vmem [shape: f32[8,32], index: 9, kind: input, shape index: {}]
  %s10 = inlined_call_operand.vmem [shape: f32[8,32], index: 10, kind: input, shape index: {}]
  %s11 = inlined_call_operand.vmem [shape: f32[32,128], index: 11, kind: input, shape index: {}]
  %s12 = inlined_call_operand.vmem [shape: f32[32,128], index: 12, kind: input, shape index: {}]
  %s13 = inlined_call_operand.vmem [shape: f32[1,128], index: 13, kind: input, shape index: {}]
  %s14 = inlined_call_operand.vmem [shape: f32[8,32], index: 14, kind: input, shape index: {}]
  %s15 = inlined_call_operand.vmem [shape: f32[8,32], index: 15, kind: input, shape index: {}]
  %s16 = inlined_call_operand.hbm [shape: f32[1,32], index: 16, kind: input, shape index: {}]
  %s17 = inlined_call_operand.<no memory space> [shape: f32[1,1], index: 17, kind: input, shape index: {}]
  %s18 = inlined_call_operand.vmem [shape: f32[8,8,1], index: 18, kind: output, shape index: {}]
  %s19 = sld [smem:[#allocation0]]
  $region86: #{rnn_char_tagger_forward.1} parent=0
    _
  %s21 = ssub.s32 1, %s19
  %s22 = scalar_select 0, %s21, %s19
  %v23 = vstv %s17
  %24 = vst [vmem:[#allocation4] sm:$0x1] %v23
  $region1: #{rnn_char_tagger_forward.1} parent=0
    #allocation5 [shape = 'u8[512]{0}', space=vmem, size = 0x400, scoped, tag = 'input window, operand 16, single buffered']
    #allocation6 [shape = 's32[1]{0}', space=sflag, size = 0x4, scoped, tag = 'scoped memory for rnn_char_tagger_forward.1']
    %25 = vsyncpa [#allocation6], 0
    // Predicated region
    $region2: #{rnn_char_tagger_forward.1} parent=1 // pred_check
      _
    $region3: #{rnn_char_tagger_forward.1} parent=1 // pred_check_branch
      %27 = sbr.rel (0) target = $region5
    $region4: #{rnn_char_tagger_forward.1} parent=1 // pred_region
      _
    $region5: #{rnn_char_tagger_forward.1} parent=1 // pred_fallthru
      _
    // Predicated region
    $region6: #{rnn_char_tagger_forward.1} parent=1 // pred_check
      _
    $region7: #{rnn_char_tagger_forward.1} parent=1 // pred_check_branch
      %29 = sbr.rel (0) target = $region9
    $region8: #{rnn_char_tagger_forward.1} parent=1 // pred_region
      _
    $region9: #{rnn_char_tagger_forward.1} parent=1 // pred_fallthru
      _
    // Predicated region
    $region10: #{rnn_char_tagger_forward.1} parent=1 // pred_check
      _
    $region11: #{rnn_char_tagger_forward.1} parent=1 // pred_check_branch
      %31 = sbr.rel (0) target = $region13
    $region12: #{rnn_char_tagger_forward.1} parent=1 // pred_region
      _
    $region13: #{rnn_char_tagger_forward.1} parent=1 // pred_fallthru
      _
    // Predicated region
    $region14: #{rnn_char_tagger_forward.1} parent=1 // pred_check
      _
    $region15: #{rnn_char_tagger_forward.1} parent=1 // pred_check_branch
      %33 = sbr.rel (0) target = $region17
    $region16: #{rnn_char_tagger_forward.1} parent=1 // pred_region
      _
    $region17: #{rnn_char_tagger_forward.1} parent=1 // pred_fallthru
      _
    // Predicated region
    $region18: #{rnn_char_tagger_forward.1} parent=1 // pred_check
      _
    $region19: #{rnn_char_tagger_forward.1} parent=1 // pred_check_branch
      %35 = sbr.rel (0) target = $region21
    $region20: #{rnn_char_tagger_forward.1} parent=1 // pred_region
      _
    $region21: #{rnn_char_tagger_forward.1} parent=1 // pred_fallthru
      _
    // Predicated region
    $region22: #{rnn_char_tagger_forward.1} parent=1 // pred_check
      _
    $region23: #{rnn_char_tagger_forward.1} parent=1 // pred_check_branch
      %37 = sbr.rel (0) target = $region25
    $region24: #{rnn_char_tagger_forward.1} parent=1 // pred_region
      _
    $region25: #{rnn_char_tagger_forward.1} parent=1 // pred_fallthru
      _
    // Predicated region
    $region26: #{rnn_char_tagger_forward.1} parent=1 // pred_check
      _
    $region27: #{rnn_char_tagger_forward.1} parent=1 // pred_check_branch
      %39 = sbr.rel (0) target = $region29
    $region28: #{rnn_char_tagger_forward.1} parent=1 // pred_region
      _
    $region29: #{rnn_char_tagger_forward.1} parent=1 // pred_fallthru
      _
    // Predicated region
    $region30: #{rnn_char_tagger_forward.1} parent=1 // pred_check
      _
    $region31: #{rnn_char_tagger_forward.1} parent=1 // pred_check_branch
      %41 = sbr.rel (0) target = $region33
    $region32: #{rnn_char_tagger_forward.1} parent=1 // pred_region
      _
    $region33: #{rnn_char_tagger_forward.1} parent=1 // pred_fallthru
      _
    // Predicated region
    $region34: #{rnn_char_tagger_forward.1} parent=1 // pred_check
      _
    $region35: #{rnn_char_tagger_forward.1} parent=1 // pred_check_branch
      %43 = sbr.rel (0) target = $region37
    $region36: #{rnn_char_tagger_forward.1} parent=1 // pred_region
      _
    $region37: #{rnn_char_tagger_forward.1} parent=1 // pred_fallthru
      _
    // Predicated region
    $region38: #{rnn_char_tagger_forward.1} parent=1 // pred_check
      _
    $region39: #{rnn_char_tagger_forward.1} parent=1 // pred_check_branch
      %45 = sbr.rel (0) target = $region41
    $region40: #{rnn_char_tagger_forward.1} parent=1 // pred_region
      _
    $region41: #{rnn_char_tagger_forward.1} parent=1 // pred_fallthru
      _
    // Predicated region
    $region42: #{rnn_char_tagger_forward.1} parent=1 // pred_check
      _
    $region43: #{rnn_char_tagger_forward.1} parent=1 // pred_check_branch
      %47 = sbr.rel (0) target = $region45
    $region44: #{rnn_char_tagger_forward.1} parent=1 // pred_region
      _
    $region45: #{rnn_char_tagger_forward.1} parent=1 // pred_fallthru
      _
    // Predicated region
    $region46: #{rnn_char_tagger_forward.1} parent=1 // pred_check
      _
    $region47: #{rnn_char_tagger_forward.1} parent=1 // pred_check_branch
      %49 = sbr.rel (0) target = $region49
    $region48: #{rnn_char_tagger_forward.1} parent=1 // pred_region
      _
    $region49: #{rnn_char_tagger_forward.1} parent=1 // pred_fallthru
      _
    // Predicated region
    $region50: #{rnn_char_tagger_forward.1} parent=1 // pred_check
      _
    $region51: #{rnn_char_tagger_forward.1} parent=1 // pred_check_branch
      %51 = sbr.rel (0) target = $region53
    $region52: #{rnn_char_tagger_forward.1} parent=1 // pred_region
      _
    $region53: #{rnn_char_tagger_forward.1} parent=1 // pred_fallthru
      _
    // Predicated region
    $region54: #{rnn_char_tagger_forward.1} parent=1 // pred_check
      _
    $region55: #{rnn_char_tagger_forward.1} parent=1 // pred_check_branch
      %53 = sbr.rel (0) target = $region57
    $region56: #{rnn_char_tagger_forward.1} parent=1 // pred_region
      _
    $region57: #{rnn_char_tagger_forward.1} parent=1 // pred_fallthru
      _
    // Predicated region
    $region58: #{rnn_char_tagger_forward.1} parent=1 // pred_check
      _
    $region59: #{rnn_char_tagger_forward.1} parent=1 // pred_check_branch
      %55 = sbr.rel (0) target = $region61
    $region60: #{rnn_char_tagger_forward.1} parent=1 // pred_region
      _
    $region61: #{rnn_char_tagger_forward.1} parent=1 // pred_fallthru
      _
    // Predicated region
    $region62: #{rnn_char_tagger_forward.1} parent=1 // pred_check
      _
    $region63: #{rnn_char_tagger_forward.1} parent=1 // pred_check_branch
      %57 = sbr.rel (0) target = $region65
    $region64: #{rnn_char_tagger_forward.1} parent=1 // pred_region
      _
    $region65: #{rnn_char_tagger_forward.1} parent=1 // pred_fallthru
      _
    // Predicated region
    $region66: #{rnn_char_tagger_forward.1} parent=1 // pred_check
      _
    $region67: #{rnn_char_tagger_forward.1} parent=1 // pred_check_branch
      %59 = sbr.rel (0) target = $region69
    $region68: #{rnn_char_tagger_forward.1} parent=1 // pred_region
      %s61 = ssub.s32 16, 16
      %62 = vsyncadd [#allocation6], %s61
      %s64 = sshll.u32 [#allocation5], 4
      %s65 = int_to_ptr.vmem [resolvable:$true] %s64
      %67 = dma.hbm_to_vmem [thread:$0]  %s16, 16, %s65, [#allocation6]
    $region69: #{rnn_char_tagger_forward.1} parent=1 // pred_fallthru
      _
    // Predicated region
    $region70: #{rnn_char_tagger_forward.1} parent=1 // pred_check
      _
    $region71: #{rnn_char_tagger_forward.1} parent=1 // pred_check_branch
      %69 = sbr.rel (0) target = $region73
    $region72: #{rnn_char_tagger_forward.1} parent=1 // pred_region
      _
    $region73: #{rnn_char_tagger_forward.1} parent=1 // pred_fallthru
      _
    // Predicated region
    $region74: #{rnn_char_tagger_forward.1} parent=1 // pred_check
      _
    $region75: #{rnn_char_tagger_forward.1} parent=1 // pred_check_branch
      %71 = sbr.rel (0) target = $region77
    $region76: #{rnn_char_tagger_forward.1} parent=1 // pred_region
      %72 = dma.done [#allocation6], 16
    $region77: #{rnn_char_tagger_forward.1} parent=1 // pred_fallthru
      _
    %v73 = vlaneseq
    %v74 = vand.u32 %v73, 127
    %vm75 = vcmp.ge.s32.totalorder %v74, 64
    %vm76 = vcmp.lt.s32.totalorder %v74, 96
    %vm77 = vmand %vm75, %vm76
    %v78 = vsel %vm77, 1.0, 0.5
    %v79 = vsel %vm77, 0.0, 0.5
    %v80 = vld [vmem:[#allocation5] sm:$0x1]
    %v81 = vld [vmem:[#allocation4] sm:$0x1]
    %v82 = vld [vmem:[%s0] sm:$0xff]
    %v83 = vld [vmem:[%s0 + $0x8] sm:$0xff]
    %v84 = vld [vmem:[%s0 + $0x10] sm:$0xff]
    %v85 = vld [vmem:[%s0 + $0x18] sm:$0xff]
    %v86 = vld [vmem:[%s0 + $0x20] sm:$0xff]
    %v87 = vld [vmem:[%s0 + $0x28] sm:$0xff]
    %v88 = vld [vmem:[%s0 + $0x30] sm:$0xff]
    %v89 = vld [vmem:[%s0 + $0x38] sm:$0xff]
    %v90 = vld [vmem:[%s1] sm:$0xff]
    %v91 = vld [vmem:[%s1 + $0x8] sm:$0xff]
    %v92 = vld [vmem:[%s3] sm:$0x1]
    %v94 = vlaneseq
    %v95 = vshrl.u32 %v94, 7
    %v96 = vsub.s32 0, %v95
    %v97 = vrot.slane %v92, %v96
    %vm99 = vcmask 130048
    %v101 = vsel %vm99, %v82, 0
    %v104 = vsel %vm99, %v83, 0
    %v107 = vsel %vm99, %v84, 0
    %v110 = vsel %vm99, %v85, 0
    %v113 = vsel %vm99, %v86, 0
    %v116 = vsel %vm99, %v87, 0
    %v119 = vsel %vm99, %v88, 0
    %v122 = vsel %vm99, %v89, 0
    %124 = vmatprep.subr.mxu0 0.0
    %125 = vmatpush1.msra.mxu0 %v90
    %126 = vmatprep.subr.mxu0 0.0
    %127 = vmatpush1.msra.mxu0 %v91
    %128 = vmatprep.subr.mxu0 0.0
    %129 = vmatpush1.msra.mxu0 0.0
    %130 = vmatprep.subr.mxu0 0.0
    %131 = vmatpush1.msra.mxu0 0.0
    %132 = vmatprep.subr.mxu0 0.0
    %133 = vmatpush1.msra.mxu0 0.0
    %134 = vmatprep.subr.mxu0 0.0
    %135 = vmatpush1.msra.mxu0 0.0
    %136 = vmatprep.subr.mxu0 0.0
    %137 = vmatpush1.msra.mxu0 0.0
    %138 = vmatprep.subr.mxu0 0.0
    %139 = vmatpush1.msra.mxu0 0.0
    %140 = vmatprep.subr.mxu0 0.0
    %141 = vmatpush1.msra.mxu0 0.0
    %142 = vmatprep.subr.mxu0 0.0
    %143 = vmatpush1.msra.mxu0 0.0
    %144 = vmatprep.subr.mxu0 0.0
    %145 = vmatpush1.msra.mxu0 0.0
    %146 = vmatprep.subr.mxu0 0.0
    %147 = vmatpush1.msra.mxu0 0.0
    %148 = vmatprep.subr.mxu0 0.0
    %149 = vmatpush1.msra.mxu0 0.0
    %150 = vmatprep.subr.mxu0 0.0
    %151 = vmatpush1.msra.mxu0 0.0
    %152 = vmatprep.subr.mxu0 0.0
    %153 = vmatpush1.msra.mxu0 0.0
    %154 = vmatprep.subr.mxu0 0.0
    %155 = vmatpush1.msra.mxu0 0.0
    %156 = vmatprep.subr.mxu0 0.0
    %157 = vmatpush1.msra.mxu0 0.0
    %158 = vmatprep.subr.mxu0 0.0
    %159 = vmatpush1.msra.mxu0 0.0
    %160 = vmatprep.subr.mxu0 0.0
    %161 = vmatpush1.msra.mxu0 0.0
    %162 = vmatprep.subr.mxu0 0.0
    %163 = vmatpush1.msra.mxu0 0.0
    %164 = vmatprep.subr.mxu0 0.0
    %165 = vmatpush1.msra.mxu0 0.0
    %166 = vmatprep.subr.mxu0 0.0
    %167 = vmatpush1.msra.mxu0 0.0
    %168 = vmatprep.subr.mxu0 0.0
    %169 = vmatpush1.msra.mxu0 0.0
    %170 = vmatprep.subr.mxu0 0.0
    %171 = vmatpush1.msra.mxu0 0.0
    %172 = vmatprep.subr.mxu0 0.0
    %173 = vmatpush1.msra.mxu0 0.0
    %174 = vmatprep.subr.mxu0 0.0
    %175 = vmatpush1.msra.mxu0 0.0
    %176 = vmatprep.subr.mxu0 0.0
    %177 = vmatpush1.msra.mxu0 0.0
    %178 = vmatprep.subr.mxu0 0.0
    %179 = vmatpush1.msra.mxu0 0.0
    %180 = vmatprep.subr.mxu0 0.0
    %181 = vmatpush1.msra.mxu0 0.0
    %182 = vmatprep.subr.mxu0 0.0
    %183 = vmatpush1.msra.mxu0 0.0
    %184 = vmatprep.subr.mxu0 0.0
    %185 = vmatpush1.msra.mxu0 0.0
    %186 = vmatprep.subr.mxu0 0.0
    %187 = vmatpush1.msra.mxu0 0.0
    %188 = vmatprep.mubr.f32.mxu0 0.0
    %189 = vmatmul.mubr.f32.gmra.mrb[0].mxu0 %v101
    %v190 = vpop.f32.mrb[0].mxu0
    %v191 = vadd.f32 %v97, %v190
    %v192 = vpop.f32.mrb[0].mxu0
    %193 = vmatprep.mubr.f32.mxu0 0.0
    %194 = vmatmul.mubr.f32.gmra.mrb[0].mxu0 %v104
    %v195 = vpop.f32.mrb[0].mxu0
    %v196 = vadd.f32 %v97, %v195
    %v197 = vpop.f32.mrb[0].mxu0
    %198 = vmatprep.mubr.f32.mxu0 0.0
    %199 = vmatmul.mubr.f32.gmra.mrb[0].mxu0 %v107
    %v200 = vpop.f32.mrb[0].mxu0
    %v201 = vadd.f32 %v97, %v200
    %v202 = vpop.f32.mrb[0].mxu0
    %203 = vmatprep.mubr.f32.mxu0 0.0
    %204 = vmatmul.mubr.f32.gmra.mrb[0].mxu0 %v110
    %v205 = vpop.f32.mrb[0].mxu0
    %v206 = vadd.f32 %v97, %v205
    %v207 = vpop.f32.mrb[0].mxu0
    %208 = vmatprep.mubr.f32.mxu0 0.0
    %209 = vmatmul.mubr.f32.gmra.mrb[0].mxu0 %v113
    %v210 = vpop.f32.mrb[0].mxu0
    %v211 = vadd.f32 %v97, %v210
    %v212 = vpop.f32.mrb[0].mxu0
    %213 = vmatprep.mubr.f32.mxu0 0.0
    %214 = vmatmul.mubr.f32.gmra.mrb[0].mxu0 %v116
    %v215 = vpop.f32.mrb[0].mxu0
    %v216 = vadd.f32 %v97, %v215
    %v217 = vpop.f32.mrb[0].mxu0
    %218 = vmatprep.mubr.f32.mxu0 0.0
    %219 = vmatmul.mubr.f32.gmra.mrb[0].mxu0 %v119
    %v220 = vpop.f32.mrb[0].mxu0
    %v221 = vadd.f32 %v97, %v220
    %v222 = vpop.f32.mrb[0].mxu0
    %223 = vmatprep.mubr.f32.mxu0 0.0
    %224 = vmatmul.mubr.f32.gmra.mrb[0].mxu0 %v122
    %v225 = vpop.f32.mrb[0].mxu0
    %v226 = vadd.f32 %v97, %v225
    %v227 = vpop.f32.mrb[0].mxu0
    %228 = vdwg.mxu0
    %229 = vst [vmem:[#allocation3] sm:$0xff] %v191
    %230 = vst [vmem:[#allocation3 + $0x8] sm:$0xff] %v196
    %231 = vst [vmem:[#allocation3 + $0x10] sm:$0xff] %v201
    %232 = vst [vmem:[#allocation3 + $0x18] sm:$0xff] %v206
    %233 = vst [vmem:[#allocation3 + $0x20] sm:$0xff] %v211
    %234 = vst [vmem:[#allocation3 + $0x28] sm:$0xff] %v216
    %235 = vst [vmem:[#allocation3 + $0x30] sm:$0xff] %v221
    %236 = vst [vmem:[#allocation3 + $0x38] sm:$0xff] %v226
    %v237 = vld [vmem:[%s2] sm:$0xff]
    %v238 = vld [vmem:[%s2 + $0x8] sm:$0xff]
    %v239 = vld [vmem:[%s2 + $0x10] sm:$0xff]
    %v240 = vld [vmem:[%s2 + $0x18] sm:$0xff]
    %v241 = vld [vmem:[%s4] sm:$0xff]
    %v242 = vld [vmem:[%s5] sm:$0xff]
    %v243 = vld [vmem:[#allocation3] sm:$0xff]
    %vm244 = vcmask 261120
    %v246 = vsel %vm244, %v241, 0
    %248 = vmatprep.subr.mxu0 0.0
    %249 = vmatpush1.msra.mxu0 %v237
    %250 = vmatprep.subr.mxu0 0.0
    %251 = vmatpush1.msra.mxu0 %v238
    %252 = vmatprep.subr.mxu0 0.0
    %253 = vmatpush1.msra.mxu0 %v239
    %254 = vmatprep.subr.mxu0 0.0
    %255 = vmatpush1.msra.mxu0 %v240
    %256 = vmatprep.subr.mxu0 0.0
    %257 = vmatpush1.msra.mxu0 0.0
    %258 = vmatprep.subr.mxu0 0.0
    %259 = vmatpush1.msra.mxu0 0.0
    %260 = vmatprep.subr.mxu0 0.0
    %261 = vmatpush1.msra.mxu0 0.0
    %262 = vmatprep.subr.mxu0 0.0
    %263 = vmatpush1.msra.mxu0 0.0
    %264 = vmatprep.subr.mxu0 0.0
    %265 = vmatpush1.msra.mxu0 0.0
    %266 = vmatprep.subr.mxu0 0.0
    %267 = vmatpush1.msra.mxu0 0.0
    %268 = vmatprep.subr.mxu0 0.0
    %269 = vmatpush1.msra.mxu0 0.0
    %270 = vmatprep.subr.mxu0 0.0
    %271 = vmatpush1.msra.mxu0 0.0
    %272 = vmatprep.subr.mxu0 0.0
    %273 = vmatpush1.msra.mxu0 0.0
    %274 = vmatprep.subr.mxu0 0.0
    %275 = vmatpush1.msra.mxu0 0.0
    %276 = vmatprep.subr.mxu0 0.0
    %277 = vmatpush1.msra.mxu0 0.0
    %278 = vmatprep.subr.mxu0 0.0
    %279 = vmatpush1.msra.mxu0 0.0
    %280 = vmatprep.subr.mxu0 0.0
    %281 = vmatpush1.msra.mxu0 0.0
    %282 = vmatprep.subr.mxu0 0.0
    %283 = vmatpush1.msra.mxu0 0.0
    %284 = vmatprep.subr.mxu0 0.0
    %285 = vmatpush1.msra.mxu0 0.0
    %286 = vmatprep.subr.mxu0 0.0
    %287 = vmatpush1.msra.mxu0 0.0
    %288 = vmatprep.subr.mxu0 0.0
    %289 = vmatpush1.msra.mxu0 0.0
    %290 = vmatprep.subr.mxu0 0.0
    %291 = vmatpush1.msra.mxu0 0.0
    %292 = vmatprep.subr.mxu0 0.0
    %293 = vmatpush1.msra.mxu0 0.0
    %294 = vmatprep.subr.mxu0 0.0
    %295 = vmatpush1.msra.mxu0 0.0
    %296 = vmatprep.subr.mxu0 0.0
    %297 = vmatpush1.msra.mxu0 0.0
    %298 = vmatprep.subr.mxu0 0.0
    %299 = vmatpush1.msra.mxu0 0.0
    %300 = vmatprep.subr.mxu0 0.0
    %301 = vmatpush1.msra.mxu0 0.0
    %302 = vmatprep.subr.mxu0 0.0
    %303 = vmatpush1.msra.mxu0 0.0
    %304 = vmatprep.subr.mxu0 0.0
    %305 = vmatpush1.msra.mxu0 0.0
    %306 = vmatprep.subr.mxu0 0.0
    %307 = vmatpush1.msra.mxu0 0.0
    %308 = vmatprep.subr.mxu0 0.0
    %309 = vmatpush1.msra.mxu0 0.0
    %310 = vmatprep.subr.mxu0 0.0
    %311 = vmatpush1.msra.mxu0 0.0
    %312 = vmatprep.mubr.f32.mxu0 0.0
    %313 = vmatmul.mubr.f32.gmra.mrb[0].mxu0 %v246
    %v314 = vpop.f32.mrb[0].mxu0
    %v315 = vadd.f32 0.0, %v314
    %v316 = vpop.f32.mrb[0].mxu0
    %317 = vdwg.mxu0
    %v318 = vadd.f32 %v243, %v315
    %v319 = vmul.f32 %v318, %v78
    %v320 = vtanh.pop %v319
    %v321 = vmul.f32 %v320, %v78
    %v322 = vadd.f32 %v321, %v79
    %324 = vrot.lane.b32.xlu0 %v242, 32
    %v325 = vpop.permute.xlu0 %324
    %v327 = vmul.f32 %v322, %v325
    %329 = vrot.lane.b32.xlu0 %v322, 64
    %v330 = vpop.permute.xlu0 %329
    %v332 = vmul.f32 %v322, %v330
    %334 = vrot.lane.b32.xlu0 %v332, 32
    %v335 = vpop.permute.xlu0 %334
    %v337 = vadd.f32 %v327, %v335
    %v338 = vtanh.pop %v337
    %340 = vrot.lane.b32.xlu0 %v338, 64
    %v341 = vpop.permute.xlu0 %340
    %v343 = vmul.f32 %v322, %v341
    %345 = vrot.lane.b32.xlu0 %v343, 32
    %v346 = vpop.permute.xlu0 %345
    %348 = vst.msk [vmem:[#allocation2] sm:$0xff] %vm244, %v346
    %s349 = scalar_lea.vmem [#allocation3], 8
    %v350 = vld [vmem:[%s349] sm:$0xff]
    %v351 = vsel %vm244, %v346, 0
    %353 = vmatprep.subr.mxu0 0.0
    %354 = vmatpush1.msra.mxu0 %v237
    %355 = vmatprep.subr.mxu0 0.0
    %356 = vmatpush1.msra.mxu0 %v238
    %357 = vmatprep.subr.mxu0 0.0
    %358 = vmatpush1.msra.mxu0 %v239
    %359 = vmatprep.subr.mxu0 0.0
    %360 = vmatpush1.msra.mxu0 %v240
    %361 = vmatprep.subr.mxu0 0.0
    %362 = vmatpush1.msra.mxu0 0.0
    %363 = vmatprep.subr.mxu0 0.0
    %364 = vmatpush1.msra.mxu0 0.0
    %365 = vmatprep.subr.mxu0 0.0
    %366 = vmatpush1.msra.mxu0 0.0
    %367 = vmatprep.subr.mxu0 0.0
    %368 = vmatpush1.msra.mxu0 0.0
    %369 = vmatprep.subr.mxu0 0.0
    %370 = vmatpush1.msra.mxu0 0.0
    %371 = vmatprep.subr.mxu0 0.0
    %372 = vmatpush1.msra.mxu0 0.0
    %373 = vmatprep.subr.mxu0 0.0
    %374 = vmatpush1.msra.mxu0 0.0
    %375 = vmatprep.subr.mxu0 0.0
    %376 = vmatpush1.msra.mxu0 0.0
    %377 = vmatprep.subr.mxu0 0.0
    %378 = vmatpush1.msra.mxu0 0.0
    %379 = vmatprep.subr.mxu0 0.0
    %380 = vmatpush1.msra.mxu0 0.0
    %381 = vmatprep.subr.mxu0 0.0
    %382 = vmatpush1.msra.mxu0 0.0
    %383 = vmatprep.subr.mxu0 0.0
    %384 = vmatpush1.msra.mxu0 0.0
    %385 = vmatprep.subr.mxu0 0.0
    %386 = vmatpush1.msra.mxu0 0.0
    %387 = vmatprep.subr.mxu0 0.0
    %388 = vmatpush1.msra.mxu0 0.0
    %389 = vmatprep.subr.mxu0 0.0
    %390 = vmatpush1.msra.mxu0 0.0
    %391 = vmatprep.subr.mxu0 0.0
    %392 = vmatpush1.msra.mxu0 0.0
    %393 = vmatprep.subr.mxu0 0.0
    %394 = vmatpush1.msra.mxu0 0.0
    %395 = vmatprep.subr.mxu0 0.0
    %396 = vmatpush1.msra.mxu0 0.0
    %397 = vmatprep.subr.mxu0 0.0
    %398 = vmatpush1.msra.mxu0 0.0
    %399 = vmatprep.subr.mxu0 0.0
    %400 = vmatpush1.msra.mxu0 0.0
    %401 = vmatprep.subr.mxu0 0.0
    %402 = vmatpush1.msra.mxu0 0.0
    %403 = vmatprep.subr.mxu0 0.0
    %404 = vmatpush1.msra.mxu0 0.0
    %405 = vmatprep.subr.mxu0 0.0
    %406 = vmatpush1.msra.mxu0 0.0
    %407 = vmatprep.subr.mxu0 0.0
    %408 = vmatpush1.msra.mxu0 0.0
    %409 = vmatprep.subr.mxu0 0.0
    %410 = vmatpush1.msra.mxu0 0.0
    %411 = vmatprep.subr.mxu0 0.0
    %412 = vmatpush1.msra.mxu0 0.0
    %413 = vmatprep.subr.mxu0 0.0
    %414 = vmatpush1.msra.mxu0 0.0
    %415 = vmatprep.subr.mxu0 0.0
    %416 = vmatpush1.msra.mxu0 0.0
    %417 = vmatprep.mubr.f32.mxu0 0.0
    %418 = vmatmul.mubr.f32.gmra.mrb[0].mxu0 %v351
    %v419 = vpop.f32.mrb[0].mxu0
    %v420 = vadd.f32 0.0, %v419
    %v421 = vpop.f32.mrb[0].mxu0
    %422 = vdwg.mxu0
    %v423 = vadd.f32 %v350, %v420
    %v424 = vmul.f32 %v423, %v78
    %v425 = vtanh.pop %v424
    %v426 = vmul.f32 %v425, %v78
    %v427 = vadd.f32 %v426, %v79
    %v428 = vmul.f32 %v427, %v337
    %430 = vrot.lane.b32.xlu0 %v427, 64
    %v431 = vpop.permute.xlu0 %430
    %v433 = vmul.f32 %v427, %v431
    %435 = vrot.lane.b32.xlu0 %v433, 32
    %v436 = vpop.permute.xlu0 %435
    %v438 = vadd.f32 %v428, %v436
    %v439 = vtanh.pop %v438
    %441 = vrot.lane.b32.xlu0 %v439, 64
    %v442 = vpop.permute.xlu0 %441
    %v444 = vmul.f32 %v427, %v442
    %446 = vrot.lane.b32.xlu0 %v444, 32
    %v447 = vpop.permute.xlu0 %446
    %s449 = scalar_lea.vmem [#allocation2], 8
    %450 = vst.msk [vmem:[%s449] sm:$0xff] %vm244, %v447
    %s451 = scalar_lea.vmem [#allocation3], 16
    %v452 = vld [vmem:[%s451] sm:$0xff]
    %v453 = vsel %vm244, %v447, 0
    %455 = vmatprep.subr.mxu0 0.0
    %456 = vmatpush1.msra.mxu0 %v237
    %457 = vmatprep.subr.mxu0 0.0
    %458 = vmatpush1.msra.mxu0 %v238
    %459 = vmatprep.subr.mxu0 0.0
    %460 = vmatpush1.msra.mxu0 %v239
    %461 = vmatprep.subr.mxu0 0.0
    %462 = vmatpush1.msra.mxu0 %v240
    %463 = vmatprep.subr.mxu0 0.0
    %464 = vmatpush1.msra.mxu0 0.0
    %465 = vmatprep.subr.mxu0 0.0
    %466 = vmatpush1.msra.mxu0 0.0
    %467 = vmatprep.subr.mxu0 0.0
    %468 = vmatpush1.msra.mxu0 0.0
    %469 = vmatprep.subr.mxu0 0.0
    %470 = vmatpush1.msra.mxu0 0.0
    %471 = vmatprep.subr.mxu0 0.0
    %472 = vmatpush1.msra.mxu0 0.0
    %473 = vmatprep.subr.mxu0 0.0
    %474 = vmatpush1.msra.mxu0 0.0
    %475 = vmatprep.subr.mxu0 0.0
    %476 = vmatpush1.msra.mxu0 0.0
    %477 = vmatprep.subr.mxu0 0.0
    %478 = vmatpush1.msra.mxu0 0.0
    %479 = vmatprep.subr.mxu0 0.0
    %480 = vmatpush1.msra.mxu0 0.0
    %481 = vmatprep.subr.mxu0 0.0
    %482 = vmatpush1.msra.mxu0 0.0
    %483 = vmatprep.subr.mxu0 0.0
    %484 = vmatpush1.msra.mxu0 0.0
    %485 = vmatprep.subr.mxu0 0.0
    %486 = vmatpush1.msra.mxu0 0.0
    %487 = vmatprep.subr.mxu0 0.0
    %488 = vmatpush1.msra.mxu0 0.0
    %489 = vmatprep.subr.mxu0 0.0
    %490 = vmatpush1.msra.mxu0 0.0
    %491 = vmatprep.subr.mxu0 0.0
    %492 = vmatpush1.msra.mxu0 0.0
    %493 = vmatprep.subr.mxu0 0.0
    %494 = vmatpush1.msra.mxu0 0.0
    %495 = vmatprep.subr.mxu0 0.0
    %496 = vmatpush1.msra.mxu0 0.0
    %497 = vmatprep.subr.mxu0 0.0
    %498 = vmatpush1.msra.mxu0 0.0
    %499 = vmatprep.subr.mxu0 0.0
    %500 = vmatpush1.msra.mxu0 0.0
    %501 = vmatprep.subr.mxu0 0.0
    %502 = vmatpush1.msra.mxu0 0.0
    %503 = vmatprep.subr.mxu0 0.0
    %504 = vmatpush1.msra.mxu0 0.0
    %505 = vmatprep.subr.mxu0 0.0
    %506 = vmatpush1.msra.mxu0 0.0
    %507 = vmatprep.subr.mxu0 0.0
    %508 = vmatpush1.msra.mxu0 0.0
    %509 = vmatprep.subr.mxu0 0.0
    %510 = vmatpush1.msra.mxu0 0.0
    %511 = vmatprep.subr.mxu0 0.0
    %512 = vmatpush1.msra.mxu0 0.0
    %513 = vmatprep.subr.mxu0 0.0
    %514 = vmatpush1.msra.mxu0 0.0
    %515 = vmatprep.subr.mxu0 0.0
    %516 = vmatpush1.msra.mxu0 0.0
    %517 = vmatprep.subr.mxu0 0.0
    %518 = vmatpush1.msra.mxu0 0.0
    %519 = vmatprep.mubr.f32.mxu0 0.0
    %520 = vmatmul.mubr.f32.gmra.mrb[0].mxu0 %v453
    %v521 = vpop.f32.mrb[0].mxu0
    %v522 = vadd.f32 0.0, %v521
    %v523 = vpop.f32.mrb[0].mxu0
    %524 = vdwg.mxu0
    %v525 = vadd.f32 %v452, %v522
    %v526 = vmul.f32 %v525, %v78
    %v527 = vtanh.pop %v526
    %v528 = vmul.f32 %v527, %v78
    %v529 = vadd.f32 %v528, %v79
    %v530 = vmul.f32 %v529, %v438
    %532 = vrot.lane.b32.xlu0 %v529, 64
    %v533 = vpop.permute.xlu0 %532
    %v535 = vmul.f32 %v529, %v533
    %537 = vrot.lane.b32.xlu0 %v535, 32
    %v538 = vpop.permute.xlu0 %537
    %v540 = vadd.f32 %v530, %v538
    %v541 = vtanh.pop %v540
    %543 = vrot.lane.b32.xlu0 %v541, 64
    %v544 = vpop.permute.xlu0 %543
    %v546 = vmul.f32 %v529, %v544
    %548 = vrot.lane.b32.xlu0 %v546, 32
    %v549 = vpop.permute.xlu0 %548
    %s551 = scalar_lea.vmem [#allocation2], 16
    %552 = vst.msk [vmem:[%s551] sm:$0xff] %vm244, %v549
    %s553 = scalar_lea.vmem [#allocation3], 24
    %v554 = vld [vmem:[%s553] sm:$0xff]
    %v555 = vsel %vm244, %v549, 0
    %557 = vmatprep.subr.mxu0 0.0
    %558 = vmatpush1.msra.mxu0 %v237
    %559 = vmatprep.subr.mxu0 0.0
    %560 = vmatpush1.msra.mxu0 %v238
    %561 = vmatprep.subr.mxu0 0.0
    %562 = vmatpush1.msra.mxu0 %v239
    %563 = vmatprep.subr.mxu0 0.0
    %564 = vmatpush1.msra.mxu0 %v240
    %565 = vmatprep.subr.mxu0 0.0
    %566 = vmatpush1.msra.mxu0 0.0
    %567 = vmatprep.subr.mxu0 0.0
    %568 = vmatpush1.msra.mxu0 0.0
    %569 = vmatprep.subr.mxu0 0.0
    %570 = vmatpush1.msra.mxu0 0.0
    %571 = vmatprep.subr.mxu0 0.0
    %572 = vmatpush1.msra.mxu0 0.0
    %573 = vmatprep.subr.mxu0 0.0
    %574 = vmatpush1.msra.mxu0 0.0
    %575 = vmatprep.subr.mxu0 0.0
    %576 = vmatpush1.msra.mxu0 0.0
    %577 = vmatprep.subr.mxu0 0.0
    %578 = vmatpush1.msra.mxu0 0.0
    %579 = vmatprep.subr.mxu0 0.0
    %580 = vmatpush1.msra.mxu0 0.0
    %581 = vmatprep.subr.mxu0 0.0
    %582 = vmatpush1.msra.mxu0 0.0
    %583 = vmatprep.subr.mxu0 0.0
    %584 = vmatpush1.msra.mxu0 0.0
    %585 = vmatprep.subr.mxu0 0.0
    %586 = vmatpush1.msra.mxu0 0.0
    %587 = vmatprep.subr.mxu0 0.0
    %588 = vmatpush1.msra.mxu0 0.0
    %589 = vmatprep.subr.mxu0 0.0
    %590 = vmatpush1.msra.mxu0 0.0
    %591 = vmatprep.subr.mxu0 0.0
    %592 = vmatpush1.msra.mxu0 0.0
    %593 = vmatprep.subr.mxu0 0.0
    %594 = vmatpush1.msra.mxu0 0.0
    %595 = vmatprep.subr.mxu0 0.0
    %596 = vmatpush1.msra.mxu0 0.0
    %597 = vmatprep.subr.mxu0 0.0
    %598 = vmatpush1.msra.mxu0 0.0
    %599 = vmatprep.subr.mxu0 0.0
    %600 = vmatpush1.msra.mxu0 0.0
    %601 = vmatprep.subr.mxu0 0.0
    %602 = vmatpush1.msra.mxu0 0.0
    %603 = vmatprep.subr.mxu0 0.0
    %604 = vmatpush1.msra.mxu0 0.0
    %605 = vmatprep.subr.mxu0 0.0
    %606 = vmatpush1.msra.mxu0 0.0
    %607 = vmatprep.subr.mxu0 0.0
    %608 = vmatpush1.msra.mxu0 0.0
    %609 = vmatprep.subr.mxu0 0.0
    %610 = vmatpush1.msra.mxu0 0.0
    %611 = vmatprep.subr.mxu0 0.0
    %612 = vmatpush1.msra.mxu0 0.0
    %613 = vmatprep.subr.mxu0 0.0
    %614 = vmatpush1.msra.mxu0 0.0
    %615 = vmatprep.subr.mxu0 0.0
    %616 = vmatpush1.msra.mxu0 0.0
    %617 = vmatprep.subr.mxu0 0.0
    %618 = vmatpush1.msra.mxu0 0.0
    %619 = vmatprep.subr.mxu0 0.0
    %620 = vmatpush1.msra.mxu0 0.0
    %621 = vmatprep.mubr.f32.mxu0 0.0
    %622 = vmatmul.mubr.f32.gmra.mrb[0].mxu0 %v555
    %v623 = vpop.f32.mrb[0].mxu0
    %v624 = vadd.f32 0.0, %v623
    %v625 = vpop.f32.mrb[0].mxu0
    %626 = vdwg.mxu0
    %v627 = vadd.f32 %v554, %v624
    %v628 = vmul.f32 %v627, %v78
    %v629 = vtanh.pop %v628
    %v630 = vmul.f32 %v629, %v78
    %v631 = vadd.f32 %v630, %v79
    %v632 = vmul.f32 %v631, %v540
    %634 = vrot.lane.b32.xlu0 %v631, 64
    %v635 = vpop.permute.xlu0 %634
    %v637 = vmul.f32 %v631, %v635
    %639 = vrot.lane.b32.xlu0 %v637, 32
    %v640 = vpop.permute.xlu0 %639
    %v642 = vadd.f32 %v632, %v640
    %v643 = vtanh.pop %v642
    %645 = vrot.lane.b32.xlu0 %v643, 64
    %v646 = vpop.permute.xlu0 %645
    %v648 = vmul.f32 %v631, %v646
    %650 = vrot.lane.b32.xlu0 %v648, 32
    %v651 = vpop.permute.xlu0 %650
    %s653 = scalar_lea.vmem [#allocation2], 24
    %654 = vst.msk [vmem:[%s653] sm:$0xff] %vm244, %v651
    %s655 = scalar_lea.vmem [#allocation3], 32
    %v656 = vld [vmem:[%s655] sm:$0xff]
    %v657 = vsel %vm244, %v651, 0
    %659 = vmatprep.subr.mxu0 0.0
    %660 = vmatpush1.msra.mxu0 %v237
    %661 = vmatprep.subr.mxu0 0.0
    %662 = vmatpush1.msra.mxu0 %v238
    %663 = vmatprep.subr.mxu0 0.0
    %664 = vmatpush1.msra.mxu0 %v239
    %665 = vmatprep.subr.mxu0 0.0
    %666 = vmatpush1.msra.mxu0 %v240
    %667 = vmatprep.subr.mxu0 0.0
    %668 = vmatpush1.msra.mxu0 0.0
    %669 = vmatprep.subr.mxu0 0.0
    %670 = vmatpush1.msra.mxu0 0.0
    %671 = vmatprep.subr.mxu0 0.0
    %672 = vmatpush1.msra.mxu0 0.0
    %673 = vmatprep.subr.mxu0 0.0
    %674 = vmatpush1.msra.mxu0 0.0
    %675 = vmatprep.subr.mxu0 0.0
    %676 = vmatpush1.msra.mxu0 0.0
    %677 = vmatprep.subr.mxu0 0.0
    %678 = vmatpush1.msra.mxu0 0.0
    %679 = vmatprep.subr.mxu0 0.0
    %680 = vmatpush1.msra.mxu0 0.0
    %681 = vmatprep.subr.mxu0 0.0
    %682 = vmatpush1.msra.mxu0 0.0
    %683 = vmatprep.subr.mxu0 0.0
    %684 = vmatpush1.msra.mxu0 0.0
    %685 = vmatprep.subr.mxu0 0.0
    %686 = vmatpush1.msra.mxu0 0.0
    %687 = vmatprep.subr.mxu0 0.0
    %688 = vmatpush1.msra.mxu0 0.0
    %689 = vmatprep.subr.mxu0 0.0
    %690 = vmatpush1.msra.mxu0 0.0
    %691 = vmatprep.subr.mxu0 0.0
    %692 = vmatpush1.msra.mxu0 0.0
    %693 = vmatprep.subr.mxu0 0.0
    %694 = vmatpush1.msra.mxu0 0.0
    %695 = vmatprep.subr.mxu0 0.0
    %696 = vmatpush1.msra.mxu0 0.0
    %697 = vmatprep.subr.mxu0 0.0
    %698 = vmatpush1.msra.mxu0 0.0
    %699 = vmatprep.subr.mxu0 0.0
    %700 = vmatpush1.msra.mxu0 0.0
    %701 = vmatprep.subr.mxu0 0.0
    %702 = vmatpush1.msra.mxu0 0.0
    %703 = vmatprep.subr.mxu0 0.0
    %704 = vmatpush1.msra.mxu0 0.0
    %705 = vmatprep.subr.mxu0 0.0
    %706 = vmatpush1.msra.mxu0 0.0
    %707 = vmatprep.subr.mxu0 0.0
    %708 = vmatpush1.msra.mxu0 0.0
    %709 = vmatprep.subr.mxu0 0.0
    %710 = vmatpush1.msra.mxu0 0.0
    %711 = vmatprep.subr.mxu0 0.0
    %712 = vmatpush1.msra.mxu0 0.0
    %713 = vmatprep.subr.mxu0 0.0
    %714 = vmatpush1.msra.mxu0 0.0
    %715 = vmatprep.subr.mxu0 0.0
    %716 = vmatpush1.msra.mxu0 0.0
    %717 = vmatprep.subr.mxu0 0.0
    %718 = vmatpush1.msra.mxu0 0.0
    %719 = vmatprep.subr.mxu0 0.0
    %720 = vmatpush1.msra.mxu0 0.0
    %721 = vmatprep.subr.mxu0 0.0
    %722 = vmatpush1.msra.mxu0 0.0
    %723 = vmatprep.mubr.f32.mxu0 0.0
    %724 = vmatmul.mubr.f32.gmra.mrb[0].mxu0 %v657
    %v725 = vpop.f32.mrb[0].mxu0
    %v726 = vadd.f32 0.0, %v725
    %v727 = vpop.f32.mrb[0].mxu0
    %728 = vdwg.mxu0
    %v729 = vadd.f32 %v656, %v726
    %v730 = vmul.f32 %v729, %v78
    %v731 = vtanh.pop %v730
    %v732 = vmul.f32 %v731, %v78
    %v733 = vadd.f32 %v732, %v79
    %v734 = vmul.f32 %v733, %v642
    %736 = vrot.lane.b32.xlu0 %v733, 64
    %v737 = vpop.permute.xlu0 %736
    %v739 = vmul.f32 %v733, %v737
    %741 = vrot.lane.b32.xlu0 %v739, 32
    %v742 = vpop.permute.xlu0 %741
    %v744 = vadd.f32 %v734, %v742
    %v745 = vtanh.pop %v744
    %747 = vrot.lane.b32.xlu0 %v745, 64
    %v748 = vpop.permute.xlu0 %747
    %v750 = vmul.f32 %v733, %v748
    %752 = vrot.lane.b32.xlu0 %v750, 32
    %v753 = vpop.permute.xlu0 %752
    %s755 = scalar_lea.vmem [#allocation2], 32
    %756 = vst.msk [vmem:[%s755] sm:$0xff] %vm244, %v753
    %s757 = scalar_lea.vmem [#allocation3], 40
    %v758 = vld [vmem:[%s757] sm:$0xff]
    %v759 = vsel %vm244, %v753, 0
    %761 = vmatprep.subr.mxu0 0.0
    %762 = vmatpush1.msra.mxu0 %v237
    %763 = vmatprep.subr.mxu0 0.0
    %764 = vmatpush1.msra.mxu0 %v238
    %765 = vmatprep.subr.mxu0 0.0
    %766 = vmatpush1.msra.mxu0 %v239
    %767 = vmatprep.subr.mxu0 0.0
    %768 = vmatpush1.msra.mxu0 %v240
    %769 = vmatprep.subr.mxu0 0.0
    %770 = vmatpush1.msra.mxu0 0.0
    %771 = vmatprep.subr.mxu0 0.0
    %772 = vmatpush1.msra.mxu0 0.0
    %773 = vmatprep.subr.mxu0 0.0
    %774 = vmatpush1.msra.mxu0 0.0
    %775 = vmatprep.subr.mxu0 0.0
    %776 = vmatpush1.msra.mxu0 0.0
    %777 = vmatprep.subr.mxu0 0.0
    %778 = vmatpush1.msra.mxu0 0.0
    %779 = vmatprep.subr.mxu0 0.0
    %780 = vmatpush1.msra.mxu0 0.0
    %781 = vmatprep.subr.mxu0 0.0
    %782 = vmatpush1.msra.mxu0 0.0
    %783 = vmatprep.subr.mxu0 0.0
    %784 = vmatpush1.msra.mxu0 0.0
    %785 = vmatprep.subr.mxu0 0.0
    %786 = vmatpush1.msra.mxu0 0.0
    %787 = vmatprep.subr.mxu0 0.0
    %788 = vmatpush1.msra.mxu0 0.0
    %789 = vmatprep.subr.mxu0 0.0
    %790 = vmatpush1.msra.mxu0 0.0
    %791 = vmatprep.subr.mxu0 0.0
    %792 = vmatpush1.msra.mxu0 0.0
    %793 = vmatprep.subr.mxu0 0.0
    %794 = vmatpush1.msra.mxu0 0.0
    %795 = vmatprep.subr.mxu0 0.0
    %796 = vmatpush1.msra.mxu0 0.0
    %797 = vmatprep.subr.mxu0 0.0
    %798 = vmatpush1.msra.mxu0 0.0
    %799 = vmatprep.subr.mxu0 0.0
    %800 = vmatpush1.msra.mxu0 0.0
    %801 = vmatprep.subr.mxu0 0.0
    %802 = vmatpush1.msra.mxu0 0.0
    %803 = vmatprep.subr.mxu0 0.0
    %804 = vmatpush1.msra.mxu0 0.0
    %805 = vmatprep.subr.mxu0 0.0
    %806 = vmatpush1.msra.mxu0 0.0
    %807 = vmatprep.subr.mxu0 0.0
    %808 = vmatpush1.msra.mxu0 0.0
    %809 = vmatprep.subr.mxu0 0.0
    %810 = vmatpush1.msra.mxu0 0.0
    %811 = vmatprep.subr.mxu0 0.0
    %812 = vmatpush1.msra.mxu0 0.0
    %813 = vmatprep.subr.mxu0 0.0
    %814 = vmatpush1.msra.mxu0 0.0
    %815 = vmatprep.subr.mxu0 0.0
    %816 = vmatpush1.msra.mxu0 0.0
    %817 = vmatprep.subr.mxu0 0.0
    %818 = vmatpush1.msra.mxu0 0.0
    %819 = vmatprep.subr.mxu0 0.0
    %820 = vmatpush1.msra.mxu0 0.0
    %821 = vmatprep.subr.mxu0 0.0
    %822 = vmatpush1.msra.mxu0 0.0
    %823 = vmatprep.subr.mxu0 0.0
    %824 = vmatpush1.msra.mxu0 0.0
    %825 = vmatprep.mubr.f32.mxu0 0.0
    %826 = vmatmul.mubr.f32.gmra.mrb[0].mxu0 %v759
    %v827 = vpop.f32.mrb[0].mxu0
    %v828 = vadd.f32 0.0, %v827
    %v829 = vpop.f32.mrb[0].mxu0
    %830 = vdwg.mxu0
    %v831 = vadd.f32 %v758, %v828
    %v832 = vmul.f32 %v831, %v78
    %v833 = vtanh.pop %v832
    %v834 = vmul.f32 %v833, %v78
    %v835 = vadd.f32 %v834, %v79
    %v836 = vmul.f32 %v835, %v744
    %838 = vrot.lane.b32.xlu0 %v835, 64
    %v839 = vpop.permute.xlu0 %838
    %v841 = vmul.f32 %v835, %v839
    %843 = vrot.lane.b32.xlu0 %v841, 32
    %v844 = vpop.permute.xlu0 %843
    %v846 = vadd.f32 %v836, %v844
    %v847 = vtanh.pop %v846
    %849 = vrot.lane.b32.xlu0 %v847, 64
    %v850 = vpop.permute.xlu0 %849
    %v852 = vmul.f32 %v835, %v850
    %854 = vrot.lane.b32.xlu0 %v852, 32
    %v855 = vpop.permute.xlu0 %854
    %s857 = scalar_lea.vmem [#allocation2], 40
    %858 = vst.msk [vmem:[%s857] sm:$0xff] %vm244, %v855
    %s859 = scalar_lea.vmem [#allocation3], 48
    %v860 = vld [vmem:[%s859] sm:$0xff]
    %v861 = vsel %vm244, %v855, 0
    %863 = vmatprep.subr.mxu0 0.0
    %864 = vmatpush1.msra.mxu0 %v237
    %865 = vmatprep.subr.mxu0 0.0
    %866 = vmatpush1.msra.mxu0 %v238
    %867 = vmatprep.subr.mxu0 0.0
    %868 = vmatpush1.msra.mxu0 %v239
    %869 = vmatprep.subr.mxu0 0.0
    %870 = vmatpush1.msra.mxu0 %v240
    %871 = vmatprep.subr.mxu0 0.0
    %872 = vmatpush1.msra.mxu0 0.0
    %873 = vmatprep.subr.mxu0 0.0
    %874 = vmatpush1.msra.mxu0 0.0
    %875 = vmatprep.subr.mxu0 0.0
    %876 = vmatpush1.msra.mxu0 0.0
    %877 = vmatprep.subr.mxu0 0.0
    %878 = vmatpush1.msra.mxu0 0.0
    %879 = vmatprep.subr.mxu0 0.0
    %880 = vmatpush1.msra.mxu0 0.0
    %881 = vmatprep.subr.mxu0 0.0
    %882 = vmatpush1.msra.mxu0 0.0
    %883 = vmatprep.subr.mxu0 0.0
    %884 = vmatpush1.msra.mxu0 0.0
    %885 = vmatprep.subr.mxu0 0.0
    %886 = vmatpush1.msra.mxu0 0.0
    %887 = vmatprep.subr.mxu0 0.0
    %888 = vmatpush1.msra.mxu0 0.0
    %889 = vmatprep.subr.mxu0 0.0
    %890 = vmatpush1.msra.mxu0 0.0
    %891 = vmatprep.subr.mxu0 0.0
    %892 = vmatpush1.msra.mxu0 0.0
    %893 = vmatprep.subr.mxu0 0.0
    %894 = vmatpush1.msra.mxu0 0.0
    %895 = vmatprep.subr.mxu0 0.0
    %896 = vmatpush1.msra.mxu0 0.0
    %897 = vmatprep.subr.mxu0 0.0
    %898 = vmatpush1.msra.mxu0 0.0
    %899 = vmatprep.subr.mxu0 0.0
    %900 = vmatpush1.msra.mxu0 0.0
    %901 = vmatprep.subr.mxu0 0.0
    %902 = vmatpush1.msra.mxu0 0.0
    %903 = vmatprep.subr.mxu0 0.0
    %904 = vmatpush1.msra.mxu0 0.0
    %905 = vmatprep.subr.mxu0 0.0
    %906 = vmatpush1.msra.mxu0 0.0
    %907 = vmatprep.subr.mxu0 0.0
    %908 = vmatpush1.msra.mxu0 0.0
    %909 = vmatprep.subr.mxu0 0.0
    %910 = vmatpush1.msra.mxu0 0.0
    %911 = vmatprep.subr.mxu0 0.0
    %912 = vmatpush1.msra.mxu0 0.0
    %913 = vmatprep.subr.mxu0 0.0
    %914 = vmatpush1.msra.mxu0 0.0
    %915 = vmatprep.subr.mxu0 0.0
    %916 = vmatpush1.msra.mxu0 0.0
    %917 = vmatprep.subr.mxu0 0.0
    %918 = vmatpush1.msra.mxu0 0.0
    %919 = vmatprep.subr.mxu0 0.0
    %920 = vmatpush1.msra.mxu0 0.0
    %921 = vmatprep.subr.mxu0 0.0
    %922 = vmatpush1.msra.mxu0 0.0
    %923 = vmatprep.subr.mxu0 0.0
    %924 = vmatpush1.msra.mxu0 0.0
    %925 = vmatprep.subr.mxu0 0.0
    %926 = vmatpush1.msra.mxu0 0.0
    %927 = vmatprep.mubr.f32.mxu0 0.0
    %928 = vmatmul.mubr.f32.gmra.mrb[0].mxu0 %v861
    %v929 = vpop.f32.mrb[0].mxu0
    %v930 = vadd.f32 0.0, %v929
    %v931 = vpop.f32.mrb[0].mxu0
    %932 = vdwg.mxu0
    %v933 = vadd.f32 %v860, %v930
    %v934 = vmul.f32 %v933, %v78
    %v935 = vtanh.pop %v934
    %v936 = vmul.f32 %v935, %v78
    %v937 = vadd.f32 %v936, %v79
    %v938 = vmul.f32 %v937, %v846
    %940 = vrot.lane.b32.xlu0 %v937, 64
    %v941 = vpop.permute.xlu0 %940
    %v943 = vmul.f32 %v937, %v941
    %945 = vrot.lane.b32.xlu0 %v943, 32
    %v946 = vpop.permute.xlu0 %945
    %v948 = vadd.f32 %v938, %v946
    %v949 = vtanh.pop %v948
    %951 = vrot.lane.b32.xlu0 %v949, 64
    %v952 = vpop.permute.xlu0 %951
    %v954 = vmul.f32 %v937, %v952
    %956 = vrot.lane.b32.xlu0 %v954, 32
    %v957 = vpop.permute.xlu0 %956
    %s959 = scalar_lea.vmem [#allocation2], 48
    %960 = vst.msk [vmem:[%s959] sm:$0xff] %vm244, %v957
    %s961 = scalar_lea.vmem [#allocation3], 56
    %v962 = vld [vmem:[%s961] sm:$0xff]
    %v963 = vsel %vm244, %v957, 0
    %965 = vmatprep.subr.mxu0 0.0
    %966 = vmatpush1.msra.mxu0 %v237
    %967 = vmatprep.subr.mxu0 0.0
    %968 = vmatpush1.msra.mxu0 %v238
    %969 = vmatprep.subr.mxu0 0.0
    %970 = vmatpush1.msra.mxu0 %v239
    %971 = vmatprep.subr.mxu0 0.0
    %972 = vmatpush1.msra.mxu0 %v240
    %973 = vmatprep.subr.mxu0 0.0
    %974 = vmatpush1.msra.mxu0 0.0
    %975 = vmatprep.subr.mxu0 0.0
    %976 = vmatpush1.msra.mxu0 0.0
    %977 = vmatprep.subr.mxu0 0.0
    %978 = vmatpush1.msra.mxu0 0.0
    %979 = vmatprep.subr.mxu0 0.0
    %980 = vmatpush1.msra.mxu0 0.0
    %981 = vmatprep.subr.mxu0 0.0
    %982 = vmatpush1.msra.mxu0 0.0
    %983 = vmatprep.subr.mxu0 0.0
    %984 = vmatpush1.msra.mxu0 0.0
    %985 = vmatprep.subr.mxu0 0.0
    %986 = vmatpush1.msra.mxu0 0.0
    %987 = vmatprep.subr.mxu0 0.0
    %988 = vmatpush1.msra.mxu0 0.0
    %989 = vmatprep.subr.mxu0 0.0
    %990 = vmatpush1.msra.mxu0 0.0
    %991 = vmatprep.subr.mxu0 0.0
    %992 = vmatpush1.msra.mxu0 0.0
    %993 = vmatprep.subr.mxu0 0.0
    %994 = vmatpush1.msra.mxu0 0.0
    %995 = vmatprep.subr.mxu0 0.0
    %996 = vmatpush1.msra.mxu0 0.0
    %997 = vmatprep.subr.mxu0 0.0
    %998 = vmatpush1.msra.mxu0 0.0
    %999 = vmatprep.subr.mxu0 0.0
    %1000 = vmatpush1.msra.mxu0 0.0
    %1001 = vmatprep.subr.mxu0 0.0
    %1002 = vmatpush1.msra.mxu0 0.0
    %1003 = vmatprep.subr.mxu0 0.0
    %1004 = vmatpush1.msra.mxu0 0.0
    %1005 = vmatprep.subr.mxu0 0.0
    %1006 = vmatpush1.msra.mxu0 0.0
    %1007 = vmatprep.subr.mxu0 0.0
    %1008 = vmatpush1.msra.mxu0 0.0
    %1009 = vmatprep.subr.mxu0 0.0
    %1010 = vmatpush1.msra.mxu0 0.0
    %1011 = vmatprep.subr.mxu0 0.0
    %1012 = vmatpush1.msra.mxu0 0.0
    %1013 = vmatprep.subr.mxu0 0.0
    %1014 = vmatpush1.msra.mxu0 0.0
    %1015 = vmatprep.subr.mxu0 0.0
    %1016 = vmatpush1.msra.mxu0 0.0
    %1017 = vmatprep.subr.mxu0 0.0
    %1018 = vmatpush1.msra.mxu0 0.0
    %1019 = vmatprep.subr.mxu0 0.0
    %1020 = vmatpush1.msra.mxu0 0.0
    %1021 = vmatprep.subr.mxu0 0.0
    %1022 = vmatpush1.msra.mxu0 0.0
    %1023 = vmatprep.subr.mxu0 0.0
    %1024 = vmatpush1.msra.mxu0 0.0
    %1025 = vmatprep.subr.mxu0 0.0
    %1026 = vmatpush1.msra.mxu0 0.0
    %1027 = vmatprep.subr.mxu0 0.0
    %1028 = vmatpush1.msra.mxu0 0.0
    %1029 = vmatprep.mubr.f32.mxu0 0.0
    %1030 = vmatmul.mubr.f32.gmra.mrb[0].mxu0 %v963
    %v1031 = vpop.f32.mrb[0].mxu0
    %v1032 = vadd.f32 0.0, %v1031
    %v1033 = vpop.f32.mrb[0].mxu0
    %1034 = vdwg.mxu0
    %v1035 = vadd.f32 %v962, %v1032
    %v1036 = vmul.f32 %v1035, %v78
    %v1037 = vtanh.pop %v1036
    %v1038 = vmul.f32 %v1037, %v78
    %v1039 = vadd.f32 %v1038, %v79
    %v1040 = vmul.f32 %v1039, %v948
    %1042 = vrot.lane.b32.xlu0 %v1039, 64
    %v1043 = vpop.permute.xlu0 %1042
    %v1045 = vmul.f32 %v1039, %v1043
    %1047 = vrot.lane.b32.xlu0 %v1045, 32
    %v1048 = vpop.permute.xlu0 %1047
    %v1050 = vadd.f32 %v1040, %v1048
    %v1051 = vtanh.pop %v1050
    %1053 = vrot.lane.b32.xlu0 %v1051, 64
    %v1054 = vpop.permute.xlu0 %1053
    %v1056 = vmul.f32 %v1039, %v1054
    %1058 = vrot.lane.b32.xlu0 %v1056, 32
    %v1059 = vpop.permute.xlu0 %1058
    %s1061 = scalar_lea.vmem [#allocation2], 56
    %1062 = vst.msk [vmem:[%s1061] sm:$0xff] %vm244, %v1059
    %v1063 = vld [vmem:[#allocation2] sm:$0xff]
    %v1064 = vld [vmem:[#allocation2 + $0x8] sm:$0xff]
    %v1065 = vld [vmem:[#allocation2 + $0x10] sm:$0xff]
    %v1066 = vld [vmem:[#allocation2 + $0x18] sm:$0xff]
    %v1067 = vld [vmem:[#allocation2 + $0x20] sm:$0xff]
    %v1068 = vld [vmem:[#allocation2 + $0x28] sm:$0xff]
    %v1069 = vld [vmem:[#allocation2 + $0x30] sm:$0xff]
    %v1070 = vld [vmem:[#allocation2 + $0x38] sm:$0xff]
    %v1071 = vld [vmem:[%s6] sm:$0xff]
    %v1072 = vld [vmem:[%s6 + $0x8] sm:$0xff]
    %v1073 = vld [vmem:[%s6 + $0x10] sm:$0xff]
    %v1074 = vld [vmem:[%s6 + $0x18] sm:$0xff]
    %v1075 = vld [vmem:[%s8] sm:$0x1]
    %v1077 = vlaneseq
    %v1078 = vshrl.u32 %v1077, 7
    %v1079 = vsub.s32 0, %v1078
    %v1080 = vrot.slane %v1075, %v1079
    %v1083 = vsel %vm244, %v1063, 0
    %v1086 = vsel %vm244, %v1064, 0
    %v1089 = vsel %vm244, %v1065, 0
    %v1092 = vsel %vm244, %v1066, 0
    %v1095 = vsel %vm244, %v1067, 0
    %v1098 = vsel %vm244, %v1068, 0
    %v1101 = vsel %vm244, %v1069, 0
    %v1104 = vsel %vm244, %v1070, 0
    %1106 = vmatprep.subr.mxu0 0.0
    %1107 = vmatpush1.msra.mxu0 %v1071
    %1108 = vmatprep.subr.mxu0 0.0
    %1109 = vmatpush1.msra.mxu0 %v1072
    %1110 = vmatprep.subr.mxu0 0.0
    %1111 = vmatpush1.msra.mxu0 %v1073
    %1112 = vmatprep.subr.mxu0 0.0
    %1113 = vmatpush1.msra.mxu0 %v1074
    %1114 = vmatprep.subr.mxu0 0.0
    %1115 = vmatpush1.msra.mxu0 0.0
    %1116 = vmatprep.subr.mxu0 0.0
    %1117 = vmatpush1.msra.mxu0 0.0
    %1118 = vmatprep.subr.mxu0 0.0
    %1119 = vmatpush1.msra.mxu0 0.0
    %1120 = vmatprep.subr.mxu0 0.0
    %1121 = vmatpush1.msra.mxu0 0.0
    %1122 = vmatprep.subr.mxu0 0.0
    %1123 = vmatpush1.msra.mxu0 0.0
    %1124 = vmatprep.subr.mxu0 0.0
    %1125 = vmatpush1.msra.mxu0 0.0
    %1126 = vmatprep.subr.mxu0 0.0
    %1127 = vmatpush1.msra.mxu0 0.0
    %1128 = vmatprep.subr.mxu0 0.0
    %1129 = vmatpush1.msra.mxu0 0.0
    %1130 = vmatprep.subr.mxu0 0.0
    %1131 = vmatpush1.msra.mxu0 0.0
    %1132 = vmatprep.subr.mxu0 0.0
    %1133 = vmatpush1.msra.mxu0 0.0
    %1134 = vmatprep.subr.mxu0 0.0
    %1135 = vmatpush1.msra.mxu0 0.0
    %1136 = vmatprep.subr.mxu0 0.0
    %1137 = vmatpush1.msra.mxu0 0.0
    %1138 = vmatprep.subr.mxu0 0.0
    %1139 = vmatpush1.msra.mxu0 0.0
    %1140 = vmatprep.subr.mxu0 0.0
    %1141 = vmatpush1.msra.mxu0 0.0
    %1142 = vmatprep.subr.mxu0 0.0
    %1143 = vmatpush1.msra.mxu0 0.0
    %1144 = vmatprep.subr.mxu0 0.0
    %1145 = vmatpush1.msra.mxu0 0.0
    %1146 = vmatprep.subr.mxu0 0.0
    %1147 = vmatpush1.msra.mxu0 0.0
    %1148 = vmatprep.subr.mxu0 0.0
    %1149 = vmatpush1.msra.mxu0 0.0
    %1150 = vmatprep.subr.mxu0 0.0
    %1151 = vmatpush1.msra.mxu0 0.0
    %1152 = vmatprep.subr.mxu0 0.0
    %1153 = vmatpush1.msra.mxu0 0.0
    %1154 = vmatprep.subr.mxu0 0.0
    %1155 = vmatpush1.msra.mxu0 0.0
    %1156 = vmatprep.subr.mxu0 0.0
    %1157 = vmatpush1.msra.mxu0 0.0
    %1158 = vmatprep.subr.mxu0 0.0
    %1159 = vmatpush1.msra.mxu0 0.0
    %1160 = vmatprep.subr.mxu0 0.0
    %1161 = vmatpush1.msra.mxu0 0.0
    %1162 = vmatprep.subr.mxu0 0.0
    %1163 = vmatpush1.msra.mxu0 0.0
    %1164 = vmatprep.subr.mxu0 0.0
    %1165 = vmatpush1.msra.mxu0 0.0
    %1166 = vmatprep.subr.mxu0 0.0
    %1167 = vmatpush1.msra.mxu0 0.0
    %1168 = vmatprep.subr.mxu0 0.0
    %1169 = vmatpush1.msra.mxu0 0.0
    %1170 = vmatprep.mubr.f32.mxu0 0.0
    %1171 = vmatmul.mubr.f32.gmra.mrb[0].mxu0 %v1083
    %v1172 = vpop.f32.mrb[0].mxu0
    %v1173 = vadd.f32 %v1080, %v1172
    %v1174 = vpop.f32.mrb[0].mxu0
    %1175 = vmatprep.mubr.f32.mxu0 0.0
    %1176 = vmatmul.mubr.f32.gmra.mrb[0].mxu0 %v1086
    %v1177 = vpop.f32.mrb[0].mxu0
    %v1178 = vadd.f32 %v1080, %v1177
    %v1179 = vpop.f32.mrb[0].mxu0
    %1180 = vmatprep.mubr.f32.mxu0 0.0
    %1181 = vmatmul.mubr.f32.gmra.mrb[0].mxu0 %v1089
    %v1182 = vpop.f32.mrb[0].mxu0
    %v1183 = vadd.f32 %v1080, %v1182
    %v1184 = vpop.f32.mrb[0].mxu0
    %1185 = vmatprep.mubr.f32.mxu0 0.0
    %1186 = vmatmul.mubr.f32.gmra.mrb[0].mxu0 %v1092
    %v1187 = vpop.f32.mrb[0].mxu0
    %v1188 = vadd.f32 %v1080, %v1187
    %v1189 = vpop.f32.mrb[0].mxu0
    %1190 = vmatprep.mubr.f32.mxu0 0.0
    %1191 = vmatmul.mubr.f32.gmra.mrb[0].mxu0 %v1095
    %v1192 = vpop.f32.mrb[0].mxu0
    %v1193 = vadd.f32 %v1080, %v1192
    %v1194 = vpop.f32.mrb[0].mxu0
    %1195 = vmatprep.mubr.f32.mxu0 0.0
    %1196 = vmatmul.mubr.f32.gmra.mrb[0].mxu0 %v1098
    %v1197 = vpop.f32.mrb[0].mxu0
    %v1198 = vadd.f32 %v1080, %v1197
    %v1199 = vpop.f32.mrb[0].mxu0
    %1200 = vmatprep.mubr.f32.mxu0 0.0
    %1201 = vmatmul.mubr.f32.gmra.mrb[0].mxu0 %v1101
    %v1202 = vpop.f32.mrb[0].mxu0
    %v1203 = vadd.f32 %v1080, %v1202
    %v1204 = vpop.f32.mrb[0].mxu0
    %1205 = vmatprep.mubr.f32.mxu0 0.0
    %1206 = vmatmul.mubr.f32.gmra.mrb[0].mxu0 %v1104
    %v1207 = vpop.f32.mrb[0].mxu0
    %v1208 = vadd.f32 %v1080, %v1207
    %v1209 = vpop.f32.mrb[0].mxu0
    %1210 = vdwg.mxu0
    %1211 = vst [vmem:[#allocation3] sm:$0xff] %v1173
    %1212 = vst [vmem:[#allocation3 + $0x8] sm:$0xff] %v1178
    %1213 = vst [vmem:[#allocation3 + $0x10] sm:$0xff] %v1183
    %1214 = vst [vmem:[#allocation3 + $0x18] sm:$0xff] %v1188
    %1215 = vst [vmem:[#allocation3 + $0x20] sm:$0xff] %v1193
    %1216 = vst [vmem:[#allocation3 + $0x28] sm:$0xff] %v1198
    %1217 = vst [vmem:[#allocation3 + $0x30] sm:$0xff] %v1203
    %1218 = vst [vmem:[#allocation3 + $0x38] sm:$0xff] %v1208
    %v1219 = vld [vmem:[%s7] sm:$0xff]
    %v1220 = vld [vmem:[%s7 + $0x8] sm:$0xff]
    %v1221 = vld [vmem:[%s7 + $0x10] sm:$0xff]
    %v1222 = vld [vmem:[%s7 + $0x18] sm:$0xff]
    %v1223 = vld [vmem:[%s9] sm:$0xff]
    %v1224 = vld [vmem:[%s10] sm:$0xff]
    %v1225 = vld [vmem:[#allocation3] sm:$0xff]
    %v1227 = vsel %vm244, %v1223, 0
    %1229 = vmatprep.subr.mxu0 0.0
    %1230 = vmatpush1.msra.mxu0 %v1219
    %1231 = vmatprep.subr.mxu0 0.0
    %1232 = vmatpush1.msra.mxu0 %v1220
    %1233 = vmatprep.subr.mxu0 0.0
    %1234 = vmatpush1.msra.mxu0 %v1221
    %1235 = vmatprep.subr.mxu0 0.0
    %1236 = vmatpush1.msra.mxu0 %v1222
    %1237 = vmatprep.subr.mxu0 0.0
    %1238 = vmatpush1.msra.mxu0 0.0
    %1239 = vmatprep.subr.mxu0 0.0
    %1240 = vmatpush1.msra.mxu0 0.0
    %1241 = vmatprep.subr.mxu0 0.0
    %1242 = vmatpush1.msra.mxu0 0.0
    %1243 = vmatprep.subr.mxu0 0.0
    %1244 = vmatpush1.msra.mxu0 0.0
    %1245 = vmatprep.subr.mxu0 0.0
    %1246 = vmatpush1.msra.mxu0 0.0
    %1247 = vmatprep.subr.mxu0 0.0
    %1248 = vmatpush1.msra.mxu0 0.0
    %1249 = vmatprep.subr.mxu0 0.0
    %1250 = vmatpush1.msra.mxu0 0.0
    %1251 = vmatprep.subr.mxu0 0.0
    %1252 = vmatpush1.msra.mxu0 0.0
    %1253 = vmatprep.subr.mxu0 0.0
    %1254 = vmatpush1.msra.mxu0 0.0
    %1255 = vmatprep.subr.mxu0 0.0
    %1256 = vmatpush1.msra.mxu0 0.0
    %1257 = vmatprep.subr.mxu0 0.0
    %1258 = vmatpush1.msra.mxu0 0.0
    %1259 = vmatprep.subr.mxu0 0.0
    %1260 = vmatpush1.msra.mxu0 0.0
    %1261 = vmatprep.subr.mxu0 0.0
    %1262 = vmatpush1.msra.mxu0 0.0
    %1263 = vmatprep.subr.mxu0 0.0
    %1264 = vmatpush1.msra.mxu0 0.0
    %1265 = vmatprep.subr.mxu0 0.0
    %1266 = vmatpush1.msra.mxu0 0.0
    %1267 = vmatprep.subr.mxu0 0.0
    %1268 = vmatpush1.msra.mxu0 0.0
    %1269 = vmatprep.subr.mxu0 0.0
    %1270 = vmatpush1.msra.mxu0 0.0
    %1271 = vmatprep.subr.mxu0 0.0
    %1272 = vmatpush1.msra.mxu0 0.0
    %1273 = vmatprep.subr.mxu0 0.0
    %1274 = vmatpush1.msra.mxu0 0.0
    %1275 = vmatprep.subr.mxu0 0.0
    %1276 = vmatpush1.msra.mxu0 0.0
    %1277 = vmatprep.subr.mxu0 0.0
    %1278 = vmatpush1.msra.mxu0 0.0
    %1279 = vmatprep.subr.mxu0 0.0
    %1280 = vmatpush1.msra.mxu0 0.0
    %1281 = vmatprep.subr.mxu0 0.0
    %1282 = vmatpush1.msra.mxu0 0.0
    %1283 = vmatprep.subr.mxu0 0.0
    %1284 = vmatpush1.msra.mxu0 0.0
    %1285 = vmatprep.subr.mxu0 0.0
    %1286 = vmatpush1.msra.mxu0 0.0
    %1287 = vmatprep.subr.mxu0 0.0
    %1288 = vmatpush1.msra.mxu0 0.0
    %1289 = vmatprep.subr.mxu0 0.0
    %1290 = vmatpush1.msra.mxu0 0.0
    %1291 = vmatprep.subr.mxu0 0.0
    %1292 = vmatpush1.msra.mxu0 0.0
    %1293 = vmatprep.mubr.f32.mxu0 0.0
    %1294 = vmatmul.mubr.f32.gmra.mrb[0].mxu0 %v1227
    %v1295 = vpop.f32.mrb[0].mxu0
    %v1296 = vadd.f32 0.0, %v1295
    %v1297 = vpop.f32.mrb[0].mxu0
    %1298 = vdwg.mxu0
    %v1299 = vadd.f32 %v1225, %v1296
    %v1300 = vmul.f32 %v1299, %v78
    %v1301 = vtanh.pop %v1300
    %v1302 = vmul.f32 %v1301, %v78
    %v1303 = vadd.f32 %v1302, %v79
    %1305 = vrot.lane.b32.xlu0 %v1224, 32
    %v1306 = vpop.permute.xlu0 %1305
    %v1308 = vmul.f32 %v1303, %v1306
    %1310 = vrot.lane.b32.xlu0 %v1303, 64
    %v1311 = vpop.permute.xlu0 %1310
    %v1313 = vmul.f32 %v1303, %v1311
    %1315 = vrot.lane.b32.xlu0 %v1313, 32
    %v1316 = vpop.permute.xlu0 %1315
    %v1318 = vadd.f32 %v1308, %v1316
    %v1319 = vtanh.pop %v1318
    %1321 = vrot.lane.b32.xlu0 %v1319, 64
    %v1322 = vpop.permute.xlu0 %1321
    %v1324 = vmul.f32 %v1303, %v1322
    %1326 = vrot.lane.b32.xlu0 %v1324, 32
    %v1327 = vpop.permute.xlu0 %1326
    %1329 = vst.msk [vmem:[#allocation2] sm:$0xff] %vm244, %v1327
    %v1330 = vld [vmem:[%s349] sm:$0xff]
    %v1331 = vsel %vm244, %v1327, 0
    %1333 = vmatprep.subr.mxu0 0.0
    %1334 = vmatpush1.msra.mxu0 %v1219
    %1335 = vmatprep.subr.mxu0 0.0
    %1336 = vmatpush1.msra.mxu0 %v1220
    %1337 = vmatprep.subr.mxu0 0.0
    %1338 = vmatpush1.msra.mxu0 %v1221
    %1339 = vmatprep.subr.mxu0 0.0
    %1340 = vmatpush1.msra.mxu0 %v1222
    %1341 = vmatprep.subr.mxu0 0.0
    %1342 = vmatpush1.msra.mxu0 0.0
    %1343 = vmatprep.subr.mxu0 0.0
    %1344 = vmatpush1.msra.mxu0 0.0
    %1345 = vmatprep.subr.mxu0 0.0
    %1346 = vmatpush1.msra.mxu0 0.0
    %1347 = vmatprep.subr.mxu0 0.0
    %1348 = vmatpush1.msra.mxu0 0.0
    %1349 = vmatprep.subr.mxu0 0.0
    %1350 = vmatpush1.msra.mxu0 0.0
    %1351 = vmatprep.subr.mxu0 0.0
    %1352 = vmatpush1.msra.mxu0 0.0
    %1353 = vmatprep.subr.mxu0 0.0
    %1354 = vmatpush1.msra.mxu0 0.0
    %1355 = vmatprep.subr.mxu0 0.0
    %1356 = vmatpush1.msra.mxu0 0.0
    %1357 = vmatprep.subr.mxu0 0.0
    %1358 = vmatpush1.msra.mxu0 0.0
    %1359 = vmatprep.subr.mxu0 0.0
    %1360 = vmatpush1.msra.mxu0 0.0
    %1361 = vmatprep.subr.mxu0 0.0
    %1362 = vmatpush1.msra.mxu0 0.0
    %1363 = vmatprep.subr.mxu0 0.0
    %1364 = vmatpush1.msra.mxu0 0.0
    %1365 = vmatprep.subr.mxu0 0.0
    %1366 = vmatpush1.msra.mxu0 0.0
    %1367 = vmatprep.subr.mxu0 0.0
    %1368 = vmatpush1.msra.mxu0 0.0
    %1369 = vmatprep.subr.mxu0 0.0
    %1370 = vmatpush1.msra.mxu0 0.0
    %1371 = vmatprep.subr.mxu0 0.0
    %1372 = vmatpush1.msra.mxu0 0.0
    %1373 = vmatprep.subr.mxu0 0.0
    %1374 = vmatpush1.msra.mxu0 0.0
    %1375 = vmatprep.subr.mxu0 0.0
    %1376 = vmatpush1.msra.mxu0 0.0
    %1377 = vmatprep.subr.mxu0 0.0
    %1378 = vmatpush1.msra.mxu0 0.0
    %1379 = vmatprep.subr.mxu0 0.0
    %1380 = vmatpush1.msra.mxu0 0.0
    %1381 = vmatprep.subr.mxu0 0.0
    %1382 = vmatpush1.msra.mxu0 0.0
    %1383 = vmatprep.subr.mxu0 0.0
    %1384 = vmatpush1.msra.mxu0 0.0
    %1385 = vmatprep.subr.mxu0 0.0
    %1386 = vmatpush1.msra.mxu0 0.0
    %1387 = vmatprep.subr.mxu0 0.0
    %1388 = vmatpush1.msra.mxu0 0.0
    %1389 = vmatprep.subr.mxu0 0.0
    %1390 = vmatpush1.msra.mxu0 0.0
    %1391 = vmatprep.subr.mxu0 0.0
    %1392 = vmatpush1.msra.mxu0 0.0
    %1393 = vmatprep.subr.mxu0 0.0
    %1394 = vmatpush1.msra.mxu0 0.0
    %1395 = vmatprep.subr.mxu0 0.0
    %1396 = vmatpush1.msra.mxu0 0.0
    %1397 = vmatprep.mubr.f32.mxu0 0.0
    %1398 = vmatmul.mubr.f32.gmra.mrb[0].mxu0 %v1331
    %v1399 = vpop.f32.mrb[0].mxu0
    %v1400 = vadd.f32 0.0, %v1399
    %v1401 = vpop.f32.mrb[0].mxu0
    %1402 = vdwg.mxu0
    %v1403 = vadd.f32 %v1330, %v1400
    %v1404 = vmul.f32 %v1403, %v78
    %v1405 = vtanh.pop %v1404
    %v1406 = vmul.f32 %v1405, %v78
    %v1407 = vadd.f32 %v1406, %v79
    %v1408 = vmul.f32 %v1407, %v1318
    %1410 = vrot.lane.b32.xlu0 %v1407, 64
    %v1411 = vpop.permute.xlu0 %1410
    %v1413 = vmul.f32 %v1407, %v1411
    %1415 = vrot.lane.b32.xlu0 %v1413, 32
    %v1416 = vpop.permute.xlu0 %1415
    %v1418 = vadd.f32 %v1408, %v1416
    %v1419 = vtanh.pop %v1418
    %1421 = vrot.lane.b32.xlu0 %v1419, 64
    %v1422 = vpop.permute.xlu0 %1421
    %v1424 = vmul.f32 %v1407, %v1422
    %1426 = vrot.lane.b32.xlu0 %v1424, 32
    %v1427 = vpop.permute.xlu0 %1426
    %1429 = vst.msk [vmem:[%s449] sm:$0xff] %vm244, %v1427
    %v1430 = vld [vmem:[%s451] sm:$0xff]
    %v1431 = vsel %vm244, %v1427, 0
    %1433 = vmatprep.subr.mxu0 0.0
    %1434 = vmatpush1.msra.mxu0 %v1219
    %1435 = vmatprep.subr.mxu0 0.0
    %1436 = vmatpush1.msra.mxu0 %v1220
    %1437 = vmatprep.subr.mxu0 0.0
    %1438 = vmatpush1.msra.mxu0 %v1221
    %1439 = vmatprep.subr.mxu0 0.0
    %1440 = vmatpush1.msra.mxu0 %v1222
    %1441 = vmatprep.subr.mxu0 0.0
    %1442 = vmatpush1.msra.mxu0 0.0
    %1443 = vmatprep.subr.mxu0 0.0
    %1444 = vmatpush1.msra.mxu0 0.0
    %1445 = vmatprep.subr.mxu0 0.0
    %1446 = vmatpush1.msra.mxu0 0.0
    %1447 = vmatprep.subr.mxu0 0.0
    %1448 = vmatpush1.msra.mxu0 0.0
    %1449 = vmatprep.subr.mxu0 0.0
    %1450 = vmatpush1.msra.mxu0 0.0
    %1451 = vmatprep.subr.mxu0 0.0
    %1452 = vmatpush1.msra.mxu0 0.0
    %1453 = vmatprep.subr.mxu0 0.0
    %1454 = vmatpush1.msra.mxu0 0.0
    %1455 = vmatprep.subr.mxu0 0.0
    %1456 = vmatpush1.msra.mxu0 0.0
    %1457 = vmatprep.subr.mxu0 0.0
    %1458 = vmatpush1.msra.mxu0 0.0
    %1459 = vmatprep.subr.mxu0 0.0
    %1460 = vmatpush1.msra.mxu0 0.0
    %1461 = vmatprep.subr.mxu0 0.0
    %1462 = vmatpush1.msra.mxu0 0.0
    %1463 = vmatprep.subr.mxu0 0.0
    %1464 = vmatpush1.msra.mxu0 0.0
    %1465 = vmatprep.subr.mxu0 0.0
    %1466 = vmatpush1.msra.mxu0 0.0
    %1467 = vmatprep.subr.mxu0 0.0
    %1468 = vmatpush1.msra.mxu0 0.0
    %1469 = vmatprep.subr.mxu0 0.0
    %1470 = vmatpush1.msra.mxu0 0.0
    %1471 = vmatprep.subr.mxu0 0.0
    %1472 = vmatpush1.msra.mxu0 0.0
    %1473 = vmatprep.subr.mxu0 0.0
    %1474 = vmatpush1.msra.mxu0 0.0
    %1475 = vmatprep.subr.mxu0 0.0
    %1476 = vmatpush1.msra.mxu0 0.0
    %1477 = vmatprep.subr.mxu0 0.0
    %1478 = vmatpush1.msra.mxu0 0.0
    %1479 = vmatprep.subr.mxu0 0.0
    %1480 = vmatpush1.msra.mxu0 0.0
    %1481 = vmatprep.subr.mxu0 0.0
    %1482 = vmatpush1.msra.mxu0 0.0
    %1483 = vmatprep.subr.mxu0 0.0
    %1484 = vmatpush1.msra.mxu0 0.0
    %1485 = vmatprep.subr.mxu0 0.0
    %1486 = vmatpush1.msra.mxu0 0.0
    %1487 = vmatprep.subr.mxu0 0.0
    %1488 = vmatpush1.msra.mxu0 0.0
    %1489 = vmatprep.subr.mxu0 0.0
    %1490 = vmatpush1.msra.mxu0 0.0
    %1491 = vmatprep.subr.mxu0 0.0
    %1492 = vmatpush1.msra.mxu0 0.0
    %1493 = vmatprep.subr.mxu0 0.0
    %1494 = vmatpush1.msra.mxu0 0.0
    %1495 = vmatprep.subr.mxu0 0.0
    %1496 = vmatpush1.msra.mxu0 0.0
    %1497 = vmatprep.mubr.f32.mxu0 0.0
    %1498 = vmatmul.mubr.f32.gmra.mrb[0].mxu0 %v1431
    %v1499 = vpop.f32.mrb[0].mxu0
    %v1500 = vadd.f32 0.0, %v1499
    %v1501 = vpop.f32.mrb[0].mxu0
    %1502 = vdwg.mxu0
    %v1503 = vadd.f32 %v1430, %v1500
    %v1504 = vmul.f32 %v1503, %v78
    %v1505 = vtanh.pop %v1504
    %v1506 = vmul.f32 %v1505, %v78
    %v1507 = vadd.f32 %v1506, %v79
    %v1508 = vmul.f32 %v1507, %v1418
    %1510 = vrot.lane.b32.xlu0 %v1507, 64
    %v1511 = vpop.permute.xlu0 %1510
    %v1513 = vmul.f32 %v1507, %v1511
    %1515 = vrot.lane.b32.xlu0 %v1513, 32
    %v1516 = vpop.permute.xlu0 %1515
    %v1518 = vadd.f32 %v1508, %v1516
    %v1519 = vtanh.pop %v1518
    %1521 = vrot.lane.b32.xlu0 %v1519, 64
    %v1522 = vpop.permute.xlu0 %1521
    %v1524 = vmul.f32 %v1507, %v1522
    %1526 = vrot.lane.b32.xlu0 %v1524, 32
    %v1527 = vpop.permute.xlu0 %1526
    %1529 = vst.msk [vmem:[%s551] sm:$0xff] %vm244, %v1527
    %v1530 = vld [vmem:[%s553] sm:$0xff]
    %v1531 = vsel %vm244, %v1527, 0
    %1533 = vmatprep.subr.mxu0 0.0
    %1534 = vmatpush1.msra.mxu0 %v1219
    %1535 = vmatprep.subr.mxu0 0.0
    %1536 = vmatpush1.msra.mxu0 %v1220
    %1537 = vmatprep.subr.mxu0 0.0
    %1538 = vmatpush1.msra.mxu0 %v1221
    %1539 = vmatprep.subr.mxu0 0.0
    %1540 = vmatpush1.msra.mxu0 %v1222
    %1541 = vmatprep.subr.mxu0 0.0
    %1542 = vmatpush1.msra.mxu0 0.0
    %1543 = vmatprep.subr.mxu0 0.0
    %1544 = vmatpush1.msra.mxu0 0.0
    %1545 = vmatprep.subr.mxu0 0.0
    %1546 = vmatpush1.msra.mxu0 0.0
    %1547 = vmatprep.subr.mxu0 0.0
    %1548 = vmatpush1.msra.mxu0 0.0
    %1549 = vmatprep.subr.mxu0 0.0
    %1550 = vmatpush1.msra.mxu0 0.0
    %1551 = vmatprep.subr.mxu0 0.0
    %1552 = vmatpush1.msra.mxu0 0.0
    %1553 = vmatprep.subr.mxu0 0.0
    %1554 = vmatpush1.msra.mxu0 0.0
    %1555 = vmatprep.subr.mxu0 0.0
    %1556 = vmatpush1.msra.mxu0 0.0
    %1557 = vmatprep.subr.mxu0 0.0
    %1558 = vmatpush1.msra.mxu0 0.0
    %1559 = vmatprep.subr.mxu0 0.0
    %1560 = vmatpush1.msra.mxu0 0.0
    %1561 = vmatprep.subr.mxu0 0.0
    %1562 = vmatpush1.msra.mxu0 0.0
    %1563 = vmatprep.subr.mxu0 0.0
    %1564 = vmatpush1.msra.mxu0 0.0
    %1565 = vmatprep.subr.mxu0 0.0
    %1566 = vmatpush1.msra.mxu0 0.0
    %1567 = vmatprep.subr.mxu0 0.0
    %1568 = vmatpush1.msra.mxu0 0.0
    %1569 = vmatprep.subr.mxu0 0.0
    %1570 = vmatpush1.msra.mxu0 0.0
    %1571 = vmatprep.subr.mxu0 0.0
    %1572 = vmatpush1.msra.mxu0 0.0
    %1573 = vmatprep.subr.mxu0 0.0
    %1574 = vmatpush1.msra.mxu0 0.0
    %1575 = vmatprep.subr.mxu0 0.0
    %1576 = vmatpush1.msra.mxu0 0.0
    %1577 = vmatprep.subr.mxu0 0.0
    %1578 = vmatpush1.msra.mxu0 0.0
    %1579 = vmatprep.subr.mxu0 0.0
    %1580 = vmatpush1.msra.mxu0 0.0
    %1581 = vmatprep.subr.mxu0 0.0
    %1582 = vmatpush1.msra.mxu0 0.0
    %1583 = vmatprep.subr.mxu0 0.0
    %1584 = vmatpush1.msra.mxu0 0.0
    %1585 = vmatprep.subr.mxu0 0.0
    %1586 = vmatpush1.msra.mxu0 0.0
    %1587 = vmatprep.subr.mxu0 0.0
    %1588 = vmatpush1.msra.mxu0 0.0
    %1589 = vmatprep.subr.mxu0 0.0
    %1590 = vmatpush1.msra.mxu0 0.0
    %1591 = vmatprep.subr.mxu0 0.0
    %1592 = vmatpush1.msra.mxu0 0.0
    %1593 = vmatprep.subr.mxu0 0.0
    %1594 = vmatpush1.msra.mxu0 0.0
    %1595 = vmatprep.subr.mxu0 0.0
    %1596 = vmatpush1.msra.mxu0 0.0
    %1597 = vmatprep.mubr.f32.mxu0 0.0
    %1598 = vmatmul.mubr.f32.gmra.mrb[0].mxu0 %v1531
    %v1599 = vpop.f32.mrb[0].mxu0
    %v1600 = vadd.f32 0.0, %v1599
    %v1601 = vpop.f32.mrb[0].mxu0
    %1602 = vdwg.mxu0
    %v1603 = vadd.f32 %v1530, %v1600
    %v1604 = vmul.f32 %v1603, %v78
    %v1605 = vtanh.pop %v1604
    %v1606 = vmul.f32 %v1605, %v78
    %v1607 = vadd.f32 %v1606, %v79
    %v1608 = vmul.f32 %v1607, %v1518
    %1610 = vrot.lane.b32.xlu0 %v1607, 64
    %v1611 = vpop.permute.xlu0 %1610
    %v1613 = vmul.f32 %v1607, %v1611
    %1615 = vrot.lane.b32.xlu0 %v1613, 32
    %v1616 = vpop.permute.xlu0 %1615
    %v1618 = vadd.f32 %v1608, %v1616
    %v1619 = vtanh.pop %v1618
    %1621 = vrot.lane.b32.xlu0 %v1619, 64
    %v1622 = vpop.permute.xlu0 %1621
    %v1624 = vmul.f32 %v1607, %v1622
    %1626 = vrot.lane.b32.xlu0 %v1624, 32
    %v1627 = vpop.permute.xlu0 %1626
    %1629 = vst.msk [vmem:[%s653] sm:$0xff] %vm244, %v1627
    %v1630 = vld [vmem:[%s655] sm:$0xff]
    %v1631 = vsel %vm244, %v1627, 0
    %1633 = vmatprep.subr.mxu0 0.0
    %1634 = vmatpush1.msra.mxu0 %v1219
    %1635 = vmatprep.subr.mxu0 0.0
    %1636 = vmatpush1.msra.mxu0 %v1220
    %1637 = vmatprep.subr.mxu0 0.0
    %1638 = vmatpush1.msra.mxu0 %v1221
    %1639 = vmatprep.subr.mxu0 0.0
    %1640 = vmatpush1.msra.mxu0 %v1222
    %1641 = vmatprep.subr.mxu0 0.0
    %1642 = vmatpush1.msra.mxu0 0.0
    %1643 = vmatprep.subr.mxu0 0.0
    %1644 = vmatpush1.msra.mxu0 0.0
    %1645 = vmatprep.subr.mxu0 0.0
    %1646 = vmatpush1.msra.mxu0 0.0
    %1647 = vmatprep.subr.mxu0 0.0
    %1648 = vmatpush1.msra.mxu0 0.0
    %1649 = vmatprep.subr.mxu0 0.0
    %1650 = vmatpush1.msra.mxu0 0.0
    %1651 = vmatprep.subr.mxu0 0.0
    %1652 = vmatpush1.msra.mxu0 0.0
    %1653 = vmatprep.subr.mxu0 0.0
    %1654 = vmatpush1.msra.mxu0 0.0
    %1655 = vmatprep.subr.mxu0 0.0
    %1656 = vmatpush1.msra.mxu0 0.0
    %1657 = vmatprep.subr.mxu0 0.0
    %1658 = vmatpush1.msra.mxu0 0.0
    %1659 = vmatprep.subr.mxu0 0.0
    %1660 = vmatpush1.msra.mxu0 0.0
    %1661 = vmatprep.subr.mxu0 0.0
    %1662 = vmatpush1.msra.mxu0 0.0
    %1663 = vmatprep.subr.mxu0 0.0
    %1664 = vmatpush1.msra.mxu0 0.0
    %1665 = vmatprep.subr.mxu0 0.0
    %1666 = vmatpush1.msra.mxu0 0.0
    %1667 = vmatprep.subr.mxu0 0.0
    %1668 = vmatpush1.msra.mxu0 0.0
    %1669 = vmatprep.subr.mxu0 0.0
    %1670 = vmatpush1.msra.mxu0 0.0
    %1671 = vmatprep.subr.mxu0 0.0
    %1672 = vmatpush1.msra.mxu0 0.0
    %1673 = vmatprep.subr.mxu0 0.0
    %1674 = vmatpush1.msra.mxu0 0.0
    %1675 = vmatprep.subr.mxu0 0.0
    %1676 = vmatpush1.msra.mxu0 0.0
    %1677 = vmatprep.subr.mxu0 0.0
    %1678 = vmatpush1.msra.mxu0 0.0
    %1679 = vmatprep.subr.mxu0 0.0
    %1680 = vmatpush1.msra.mxu0 0.0
    %1681 = vmatprep.subr.mxu0 0.0
    %1682 = vmatpush1.msra.mxu0 0.0
    %1683 = vmatprep.subr.mxu0 0.0
    %1684 = vmatpush1.msra.mxu0 0.0
    %1685 = vmatprep.subr.mxu0 0.0
    %1686 = vmatpush1.msra.mxu0 0.0
    %1687 = vmatprep.subr.mxu0 0.0
    %1688 = vmatpush1.msra.mxu0 0.0
    %1689 = vmatprep.subr.mxu0 0.0
    %1690 = vmatpush1.msra.mxu0 0.0
    %1691 = vmatprep.subr.mxu0 0.0
    %1692 = vmatpush1.msra.mxu0 0.0
    %1693 = vmatprep.subr.mxu0 0.0
    %1694 = vmatpush1.msra.mxu0 0.0
    %1695 = vmatprep.subr.mxu0 0.0
    %1696 = vmatpush1.msra.mxu0 0.0
    %1697 = vmatprep.mubr.f32.mxu0 0.0
    %1698 = vmatmul.mubr.f32.gmra.mrb[0].mxu0 %v1631
    %v1699 = vpop.f32.mrb[0].mxu0
    %v1700 = vadd.f32 0.0, %v1699
    %v1701 = vpop.f32.mrb[0].mxu0
    %1702 = vdwg.mxu0
    %v1703 = vadd.f32 %v1630, %v1700
    %v1704 = vmul.f32 %v1703, %v78
    %v1705 = vtanh.pop %v1704
    %v1706 = vmul.f32 %v1705, %v78
    %v1707 = vadd.f32 %v1706, %v79
    %v1708 = vmul.f32 %v1707, %v1618
    %1710 = vrot.lane.b32.xlu0 %v1707, 64
    %v1711 = vpop.permute.xlu0 %1710
    %v1713 = vmul.f32 %v1707, %v1711
    %1715 = vrot.lane.b32.xlu0 %v1713, 32
    %v1716 = vpop.permute.xlu0 %1715
    %v1718 = vadd.f32 %v1708, %v1716
    %v1719 = vtanh.pop %v1718
    %1721 = vrot.lane.b32.xlu0 %v1719, 64
    %v1722 = vpop.permute.xlu0 %1721
    %v1724 = vmul.f32 %v1707, %v1722
    %1726 = vrot.lane.b32.xlu0 %v1724, 32
    %v1727 = vpop.permute.xlu0 %1726
    %1729 = vst.msk [vmem:[%s755] sm:$0xff] %vm244, %v1727
    %v1730 = vld [vmem:[%s757] sm:$0xff]
    %v1731 = vsel %vm244, %v1727, 0
    %1733 = vmatprep.subr.mxu0 0.0
    %1734 = vmatpush1.msra.mxu0 %v1219
    %1735 = vmatprep.subr.mxu0 0.0
    %1736 = vmatpush1.msra.mxu0 %v1220
    %1737 = vmatprep.subr.mxu0 0.0
    %1738 = vmatpush1.msra.mxu0 %v1221
    %1739 = vmatprep.subr.mxu0 0.0
    %1740 = vmatpush1.msra.mxu0 %v1222
    %1741 = vmatprep.subr.mxu0 0.0
    %1742 = vmatpush1.msra.mxu0 0.0
    %1743 = vmatprep.subr.mxu0 0.0
    %1744 = vmatpush1.msra.mxu0 0.0
    %1745 = vmatprep.subr.mxu0 0.0
    %1746 = vmatpush1.msra.mxu0 0.0
    %1747 = vmatprep.subr.mxu0 0.0
    %1748 = vmatpush1.msra.mxu0 0.0
    %1749 = vmatprep.subr.mxu0 0.0
    %1750 = vmatpush1.msra.mxu0 0.0
    %1751 = vmatprep.subr.mxu0 0.0
    %1752 = vmatpush1.msra.mxu0 0.0
    %1753 = vmatprep.subr.mxu0 0.0
    %1754 = vmatpush1.msra.mxu0 0.0
    %1755 = vmatprep.subr.mxu0 0.0
    %1756 = vmatpush1.msra.mxu0 0.0
    %1757 = vmatprep.subr.mxu0 0.0
    %1758 = vmatpush1.msra.mxu0 0.0
    %1759 = vmatprep.subr.mxu0 0.0
    %1760 = vmatpush1.msra.mxu0 0.0
    %1761 = vmatprep.subr.mxu0 0.0
    %1762 = vmatpush1.msra.mxu0 0.0
    %1763 = vmatprep.subr.mxu0 0.0
    %1764 = vmatpush1.msra.mxu0 0.0
    %1765 = vmatprep.subr.mxu0 0.0
    %1766 = vmatpush1.msra.mxu0 0.0
    %1767 = vmatprep.subr.mxu0 0.0
    %1768 = vmatpush1.msra.mxu0 0.0
    %1769 = vmatprep.subr.mxu0 0.0
    %1770 = vmatpush1.msra.mxu0 0.0
    %1771 = vmatprep.subr.mxu0 0.0
    %1772 = vmatpush1.msra.mxu0 0.0
    %1773 = vmatprep.subr.mxu0 0.0
    %1774 = vmatpush1.msra.mxu0 0.0
    %1775 = vmatprep.subr.mxu0 0.0
    %1776 = vmatpush1.msra.mxu0 0.0
    %1777 = vmatprep.subr.mxu0 0.0
    %1778 = vmatpush1.msra.mxu0 0.0
    %1779 = vmatprep.subr.mxu0 0.0
    %1780 = vmatpush1.msra.mxu0 0.0
    %1781 = vmatprep.subr.mxu0 0.0
    %1782 = vmatpush1.msra.mxu0 0.0
    %1783 = vmatprep.subr.mxu0 0.0
    %1784 = vmatpush1.msra.mxu0 0.0
    %1785 = vmatprep.subr.mxu0 0.0
    %1786 = vmatpush1.msra.mxu0 0.0
    %1787 = vmatprep.subr.mxu0 0.0
    %1788 = vmatpush1.msra.mxu0 0.0
    %1789 = vmatprep.subr.mxu0 0.0
    %1790 = vmatpush1.msra.mxu0 0.0
    %1791 = vmatprep.subr.mxu0 0.0
    %1792 = vmatpush1.msra.mxu0 0.0
    %1793 = vmatprep.subr.mxu0 0.0
    %1794 = vmatpush1.msra.mxu0 0.0
    %1795 = vmatprep.subr.mxu0 0.0
    %1796 = vmatpush1.msra.mxu0 0.0
    %1797 = vmatprep.mubr.f32.mxu0 0.0
    %1798 = vmatmul.mubr.f32.gmra.mrb[0].mxu0 %v1731
    %v1799 = vpop.f32.mrb[0].mxu0
    %v1800 = vadd.f32 0.0, %v1799
    %v1801 = vpop.f32.mrb[0].mxu0
    %1802 = vdwg.mxu0
    %v1803 = vadd.f32 %v1730, %v1800
    %v1804 = vmul.f32 %v1803, %v78
    %v1805 = vtanh.pop %v1804
    %v1806 = vmul.f32 %v1805, %v78
    %v1807 = vadd.f32 %v1806, %v79
    %v1808 = vmul.f32 %v1807, %v1718
    %1810 = vrot.lane.b32.xlu0 %v1807, 64
    %v1811 = vpop.permute.xlu0 %1810
    %v1813 = vmul.f32 %v1807, %v1811
    %1815 = vrot.lane.b32.xlu0 %v1813, 32
    %v1816 = vpop.permute.xlu0 %1815
    %v1818 = vadd.f32 %v1808, %v1816
    %v1819 = vtanh.pop %v1818
    %1821 = vrot.lane.b32.xlu0 %v1819, 64
    %v1822 = vpop.permute.xlu0 %1821
    %v1824 = vmul.f32 %v1807, %v1822
    %1826 = vrot.lane.b32.xlu0 %v1824, 32
    %v1827 = vpop.permute.xlu0 %1826
    %1829 = vst.msk [vmem:[%s857] sm:$0xff] %vm244, %v1827
    %v1830 = vld [vmem:[%s859] sm:$0xff]
    %v1831 = vsel %vm244, %v1827, 0
    %1833 = vmatprep.subr.mxu0 0.0
    %1834 = vmatpush1.msra.mxu0 %v1219
    %1835 = vmatprep.subr.mxu0 0.0
    %1836 = vmatpush1.msra.mxu0 %v1220
    %1837 = vmatprep.subr.mxu0 0.0
    %1838 = vmatpush1.msra.mxu0 %v1221
    %1839 = vmatprep.subr.mxu0 0.0
    %1840 = vmatpush1.msra.mxu0 %v1222
    %1841 = vmatprep.subr.mxu0 0.0
    %1842 = vmatpush1.msra.mxu0 0.0
    %1843 = vmatprep.subr.mxu0 0.0
    %1844 = vmatpush1.msra.mxu0 0.0
    %1845 = vmatprep.subr.mxu0 0.0
    %1846 = vmatpush1.msra.mxu0 0.0
    %1847 = vmatprep.subr.mxu0 0.0
    %1848 = vmatpush1.msra.mxu0 0.0
    %1849 = vmatprep.subr.mxu0 0.0
    %1850 = vmatpush1.msra.mxu0 0.0
    %1851 = vmatprep.subr.mxu0 0.0
    %1852 = vmatpush1.msra.mxu0 0.0
    %1853 = vmatprep.subr.mxu0 0.0
    %1854 = vmatpush1.msra.mxu0 0.0
    %1855 = vmatprep.subr.mxu0 0.0
    %1856 = vmatpush1.msra.mxu0 0.0
    %1857 = vmatprep.subr.mxu0 0.0
    %1858 = vmatpush1.msra.mxu0 0.0
    %1859 = vmatprep.subr.mxu0 0.0
    %1860 = vmatpush1.msra.mxu0 0.0
    %1861 = vmatprep.subr.mxu0 0.0
    %1862 = vmatpush1.msra.mxu0 0.0
    %1863 = vmatprep.subr.mxu0 0.0
    %1864 = vmatpush1.msra.mxu0 0.0
    %1865 = vmatprep.subr.mxu0 0.0
    %1866 = vmatpush1.msra.mxu0 0.0
    %1867 = vmatprep.subr.mxu0 0.0
    %1868 = vmatpush1.msra.mxu0 0.0
    %1869 = vmatprep.subr.mxu0 0.0
    %1870 = vmatpush1.msra.mxu0 0.0
    %1871 = vmatprep.subr.mxu0 0.0
    %1872 = vmatpush1.msra.mxu0 0.0
    %1873 = vmatprep.subr.mxu0 0.0
    %1874 = vmatpush1.msra.mxu0 0.0
    %1875 = vmatprep.subr.mxu0 0.0
    %1876 = vmatpush1.msra.mxu0 0.0
    %1877 = vmatprep.subr.mxu0 0.0
    %1878 = vmatpush1.msra.mxu0 0.0
    %1879 = vmatprep.subr.mxu0 0.0
    %1880 = vmatpush1.msra.mxu0 0.0
    %1881 = vmatprep.subr.mxu0 0.0
    %1882 = vmatpush1.msra.mxu0 0.0
    %1883 = vmatprep.subr.mxu0 0.0
    %1884 = vmatpush1.msra.mxu0 0.0
    %1885 = vmatprep.subr.mxu0 0.0
    %1886 = vmatpush1.msra.mxu0 0.0
    %1887 = vmatprep.subr.mxu0 0.0
    %1888 = vmatpush1.msra.mxu0 0.0
    %1889 = vmatprep.subr.mxu0 0.0
    %1890 = vmatpush1.msra.mxu0 0.0
    %1891 = vmatprep.subr.mxu0 0.0
    %1892 = vmatpush1.msra.mxu0 0.0
    %1893 = vmatprep.subr.mxu0 0.0
    %1894 = vmatpush1.msra.mxu0 0.0
    %1895 = vmatprep.subr.mxu0 0.0
    %1896 = vmatpush1.msra.mxu0 0.0
    %1897 = vmatprep.mubr.f32.mxu0 0.0
    %1898 = vmatmul.mubr.f32.gmra.mrb[0].mxu0 %v1831
    %v1899 = vpop.f32.mrb[0].mxu0
    %v1900 = vadd.f32 0.0, %v1899
    %v1901 = vpop.f32.mrb[0].mxu0
    %1902 = vdwg.mxu0
    %v1903 = vadd.f32 %v1830, %v1900
    %v1904 = vmul.f32 %v1903, %v78
    %v1905 = vtanh.pop %v1904
    %v1906 = vmul.f32 %v1905, %v78
    %v1907 = vadd.f32 %v1906, %v79
    %v1908 = vmul.f32 %v1907, %v1818
    %1910 = vrot.lane.b32.xlu0 %v1907, 64
    %v1911 = vpop.permute.xlu0 %1910
    %v1913 = vmul.f32 %v1907, %v1911
    %1915 = vrot.lane.b32.xlu0 %v1913, 32
    %v1916 = vpop.permute.xlu0 %1915
    %v1918 = vadd.f32 %v1908, %v1916
    %v1919 = vtanh.pop %v1918
    %1921 = vrot.lane.b32.xlu0 %v1919, 64
    %v1922 = vpop.permute.xlu0 %1921
    %v1924 = vmul.f32 %v1907, %v1922
    %1926 = vrot.lane.b32.xlu0 %v1924, 32
    %v1927 = vpop.permute.xlu0 %1926
    %1929 = vst.msk [vmem:[%s959] sm:$0xff] %vm244, %v1927
    %v1930 = vld [vmem:[%s961] sm:$0xff]
    %v1931 = vsel %vm244, %v1927, 0
    %1933 = vmatprep.subr.mxu0 0.0
    %1934 = vmatpush1.msra.mxu0 %v1219
    %1935 = vmatprep.subr.mxu0 0.0
    %1936 = vmatpush1.msra.mxu0 %v1220
    %1937 = vmatprep.subr.mxu0 0.0
    %1938 = vmatpush1.msra.mxu0 %v1221
    %1939 = vmatprep.subr.mxu0 0.0
    %1940 = vmatpush1.msra.mxu0 %v1222
    %1941 = vmatprep.subr.mxu0 0.0
    %1942 = vmatpush1.msra.mxu0 0.0
    %1943 = vmatprep.subr.mxu0 0.0
    %1944 = vmatpush1.msra.mxu0 0.0
    %1945 = vmatprep.subr.mxu0 0.0
    %1946 = vmatpush1.msra.mxu0 0.0
    %1947 = vmatprep.subr.mxu0 0.0
    %1948 = vmatpush1.msra.mxu0 0.0
    %1949 = vmatprep.subr.mxu0 0.0
    %1950 = vmatpush1.msra.mxu0 0.0
    %1951 = vmatprep.subr.mxu0 0.0
    %1952 = vmatpush1.msra.mxu0 0.0
    %1953 = vmatprep.subr.mxu0 0.0
    %1954 = vmatpush1.msra.mxu0 0.0
    %1955 = vmatprep.subr.mxu0 0.0
    %1956 = vmatpush1.msra.mxu0 0.0
    %1957 = vmatprep.subr.mxu0 0.0
    %1958 = vmatpush1.msra.mxu0 0.0
    %1959 = vmatprep.subr.mxu0 0.0
    %1960 = vmatpush1.msra.mxu0 0.0
    %1961 = vmatprep.subr.mxu0 0.0
    %1962 = vmatpush1.msra.mxu0 0.0
    %1963 = vmatprep.subr.mxu0 0.0
    %1964 = vmatpush1.msra.mxu0 0.0
    %1965 = vmatprep.subr.mxu0 0.0
    %1966 = vmatpush1.msra.mxu0 0.0
    %1967 = vmatprep.subr.mxu0 0.0
    %1968 = vmatpush1.msra.mxu0 0.0
    %1969 = vmatprep.subr.mxu0 0.0
    %1970 = vmatpush1.msra.mxu0 0.0
    %1971 = vmatprep.subr.mxu0 0.0
    %1972 = vmatpush1.msra.mxu0 0.0
    %1973 = vmatprep.subr.mxu0 0.0
    %1974 = vmatpush1.msra.mxu0 0.0
    %1975 = vmatprep.subr.mxu0 0.0
    %1976 = vmatpush1.msra.mxu0 0.0
    %1977 = vmatprep.subr.mxu0 0.0
    %1978 = vmatpush1.msra.mxu0 0.0
    %1979 = vmatprep.subr.mxu0 0.0
    %1980 = vmatpush1.msra.mxu0 0.0
    %1981 = vmatprep.subr.mxu0 0.0
    %1982 = vmatpush1.msra.mxu0 0.0
    %1983 = vmatprep.subr.mxu0 0.0
    %1984 = vmatpush1.msra.mxu0 0.0
    %1985 = vmatprep.subr.mxu0 0.0
    %1986 = vmatpush1.msra.mxu0 0.0
    %1987 = vmatprep.subr.mxu0 0.0
    %1988 = vmatpush1.msra.mxu0 0.0
    %1989 = vmatprep.subr.mxu0 0.0
    %1990 = vmatpush1.msra.mxu0 0.0
    %1991 = vmatprep.subr.mxu0 0.0
    %1992 = vmatpush1.msra.mxu0 0.0
    %1993 = vmatprep.subr.mxu0 0.0
    %1994 = vmatpush1.msra.mxu0 0.0
    %1995 = vmatprep.subr.mxu0 0.0
    %1996 = vmatpush1.msra.mxu0 0.0
    %1997 = vmatprep.mubr.f32.mxu0 0.0
    %1998 = vmatmul.mubr.f32.gmra.mrb[0].mxu0 %v1931
    %v1999 = vpop.f32.mrb[0].mxu0
    %v2000 = vadd.f32 0.0, %v1999
    %v2001 = vpop.f32.mrb[0].mxu0
    %2002 = vdwg.mxu0
    %v2003 = vadd.f32 %v1930, %v2000
    %v2004 = vmul.f32 %v2003, %v78
    %v2005 = vtanh.pop %v2004
    %v2006 = vmul.f32 %v2005, %v78
    %v2007 = vadd.f32 %v2006, %v79
    %v2008 = vmul.f32 %v2007, %v1918
    %2010 = vrot.lane.b32.xlu0 %v2007, 64
    %v2011 = vpop.permute.xlu0 %2010
    %v2013 = vmul.f32 %v2007, %v2011
    %2015 = vrot.lane.b32.xlu0 %v2013, 32
    %v2016 = vpop.permute.xlu0 %2015
    %v2018 = vadd.f32 %v2008, %v2016
    %v2019 = vtanh.pop %v2018
    %2021 = vrot.lane.b32.xlu0 %v2019, 64
    %v2022 = vpop.permute.xlu0 %2021
    %v2024 = vmul.f32 %v2007, %v2022
    %2026 = vrot.lane.b32.xlu0 %v2024, 32
    %v2027 = vpop.permute.xlu0 %2026
    %2029 = vst.msk [vmem:[%s1061] sm:$0xff] %vm244, %v2027
    %v2030 = vld [vmem:[#allocation2] sm:$0xff]
    %v2031 = vld [vmem:[#allocation2 + $0x8] sm:$0xff]
    %v2032 = vld [vmem:[#allocation2 + $0x10] sm:$0xff]
    %v2033 = vld [vmem:[#allocation2 + $0x18] sm:$0xff]
    %v2034 = vld [vmem:[#allocation2 + $0x20] sm:$0xff]
    %v2035 = vld [vmem:[#allocation2 + $0x28] sm:$0xff]
    %v2036 = vld [vmem:[#allocation2 + $0x30] sm:$0xff]
    %v2037 = vld [vmem:[#allocation2 + $0x38] sm:$0xff]
    %v2038 = vld [vmem:[%s11] sm:$0xff]
    %v2039 = vld [vmem:[%s11 + $0x8] sm:$0xff]
    %v2040 = vld [vmem:[%s11 + $0x10] sm:$0xff]
    %v2041 = vld [vmem:[%s11 + $0x18] sm:$0xff]
    %v2042 = vld [vmem:[%s13] sm:$0x1]
    %v2044 = vlaneseq
    %v2045 = vshrl.u32 %v2044, 7
    %v2046 = vsub.s32 0, %v2045
    %v2047 = vrot.slane %v2042, %v2046
    %v2050 = vsel %vm244, %v2030, 0
    %v2053 = vsel %vm244, %v2031, 0
    %v2056 = vsel %vm244, %v2032, 0
    %v2059 = vsel %vm244, %v2033, 0
    %v2062 = vsel %vm244, %v2034, 0
    %v2065 = vsel %vm244, %v2035, 0
    %v2068 = vsel %vm244, %v2036, 0
    %v2071 = vsel %vm244, %v2037, 0
    %2073 = vmatprep.subr.mxu0 0.0
    %2074 = vmatpush1.msra.mxu0 %v2038
    %2075 = vmatprep.subr.mxu0 0.0
    %2076 = vmatpush1.msra.mxu0 %v2039
    %2077 = vmatprep.subr.mxu0 0.0
    %2078 = vmatpush1.msra.mxu0 %v2040
    %2079 = vmatprep.subr.mxu0 0.0
    %2080 = vmatpush1.msra.mxu0 %v2041
    %2081 = vmatprep.subr.mxu0 0.0
    %2082 = vmatpush1.msra.mxu0 0.0
    %2083 = vmatprep.subr.mxu0 0.0
    %2084 = vmatpush1.msra.mxu0 0.0
    %2085 = vmatprep.subr.mxu0 0.0
    %2086 = vmatpush1.msra.mxu0 0.0
    %2087 = vmatprep.subr.mxu0 0.0
    %2088 = vmatpush1.msra.mxu0 0.0
    %2089 = vmatprep.subr.mxu0 0.0
    %2090 = vmatpush1.msra.mxu0 0.0
    %2091 = vmatprep.subr.mxu0 0.0
    %2092 = vmatpush1.msra.mxu0 0.0
    %2093 = vmatprep.subr.mxu0 0.0
    %2094 = vmatpush1.msra.mxu0 0.0
    %2095 = vmatprep.subr.mxu0 0.0
    %2096 = vmatpush1.msra.mxu0 0.0
    %2097 = vmatprep.subr.mxu0 0.0
    %2098 = vmatpush1.msra.mxu0 0.0
    %2099 = vmatprep.subr.mxu0 0.0
    %2100 = vmatpush1.msra.mxu0 0.0
    %2101 = vmatprep.subr.mxu0 0.0
    %2102 = vmatpush1.msra.mxu0 0.0
    %2103 = vmatprep.subr.mxu0 0.0
    %2104 = vmatpush1.msra.mxu0 0.0
    %2105 = vmatprep.subr.mxu0 0.0
    %2106 = vmatpush1.msra.mxu0 0.0
    %2107 = vmatprep.subr.mxu0 0.0
    %2108 = vmatpush1.msra.mxu0 0.0
    %2109 = vmatprep.subr.mxu0 0.0
    %2110 = vmatpush1.msra.mxu0 0.0
    %2111 = vmatprep.subr.mxu0 0.0
    %2112 = vmatpush1.msra.mxu0 0.0
    %2113 = vmatprep.subr.mxu0 0.0
    %2114 = vmatpush1.msra.mxu0 0.0
    %2115 = vmatprep.subr.mxu0 0.0
    %2116 = vmatpush1.msra.mxu0 0.0
    %2117 = vmatprep.subr.mxu0 0.0
    %2118 = vmatpush1.msra.mxu0 0.0
    %2119 = vmatprep.subr.mxu0 0.0
    %2120 = vmatpush1.msra.mxu0 0.0
    %2121 = vmatprep.subr.mxu0 0.0
    %2122 = vmatpush1.msra.mxu0 0.0
    %2123 = vmatprep.subr.mxu0 0.0
    %2124 = vmatpush1.msra.mxu0 0.0
    %2125 = vmatprep.subr.mxu0 0.0
    %2126 = vmatpush1.msra.mxu0 0.0
    %2127 = vmatprep.subr.mxu0 0.0
    %2128 = vmatpush1.msra.mxu0 0.0
    %2129 = vmatprep.subr.mxu0 0.0
    %2130 = vmatpush1.msra.mxu0 0.0
    %2131 = vmatprep.subr.mxu0 0.0
    %2132 = vmatpush1.msra.mxu0 0.0
    %2133 = vmatprep.subr.mxu0 0.0
    %2134 = vmatpush1.msra.mxu0 0.0
    %2135 = vmatprep.subr.mxu0 0.0
    %2136 = vmatpush1.msra.mxu0 0.0
    %2137 = vmatprep.mubr.f32.mxu0 0.0
    %2138 = vmatmul.mubr.f32.gmra.mrb[0].mxu0 %v2050
    %v2139 = vpop.f32.mrb[0].mxu0
    %v2140 = vadd.f32 %v2047, %v2139
    %v2141 = vpop.f32.mrb[0].mxu0
    %2142 = vmatprep.mubr.f32.mxu0 0.0
    %2143 = vmatmul.mubr.f32.gmra.mrb[0].mxu0 %v2053
    %v2144 = vpop.f32.mrb[0].mxu0
    %v2145 = vadd.f32 %v2047, %v2144
    %v2146 = vpop.f32.mrb[0].mxu0
    %2147 = vmatprep.mubr.f32.mxu0 0.0
    %2148 = vmatmul.mubr.f32.gmra.mrb[0].mxu0 %v2056
    %v2149 = vpop.f32.mrb[0].mxu0
    %v2150 = vadd.f32 %v2047, %v2149
    %v2151 = vpop.f32.mrb[0].mxu0
    %2152 = vmatprep.mubr.f32.mxu0 0.0
    %2153 = vmatmul.mubr.f32.gmra.mrb[0].mxu0 %v2059
    %v2154 = vpop.f32.mrb[0].mxu0
    %v2155 = vadd.f32 %v2047, %v2154
    %v2156 = vpop.f32.mrb[0].mxu0
    %2157 = vmatprep.mubr.f32.mxu0 0.0
    %2158 = vmatmul.mubr.f32.gmra.mrb[0].mxu0 %v2062
    %v2159 = vpop.f32.mrb[0].mxu0
    %v2160 = vadd.f32 %v2047, %v2159
    %v2161 = vpop.f32.mrb[0].mxu0
    %2162 = vmatprep.mubr.f32.mxu0 0.0
    %2163 = vmatmul.mubr.f32.gmra.mrb[0].mxu0 %v2065
    %v2164 = vpop.f32.mrb[0].mxu0
    %v2165 = vadd.f32 %v2047, %v2164
    %v2166 = vpop.f32.mrb[0].mxu0
    %2167 = vmatprep.mubr.f32.mxu0 0.0
    %2168 = vmatmul.mubr.f32.gmra.mrb[0].mxu0 %v2068
    %v2169 = vpop.f32.mrb[0].mxu0
    %v2170 = vadd.f32 %v2047, %v2169
    %v2171 = vpop.f32.mrb[0].mxu0
    %2172 = vmatprep.mubr.f32.mxu0 0.0
    %2173 = vmatmul.mubr.f32.gmra.mrb[0].mxu0 %v2071
    %v2174 = vpop.f32.mrb[0].mxu0
    %v2175 = vadd.f32 %v2047, %v2174
    %v2176 = vpop.f32.mrb[0].mxu0
    %2177 = vdwg.mxu0
    %2178 = vst [vmem:[#allocation3] sm:$0xff] %v2140
    %2179 = vst [vmem:[#allocation3 + $0x8] sm:$0xff] %v2145
    %2180 = vst [vmem:[#allocation3 + $0x10] sm:$0xff] %v2150
    %2181 = vst [vmem:[#allocation3 + $0x18] sm:$0xff] %v2155
    %2182 = vst [vmem:[#allocation3 + $0x20] sm:$0xff] %v2160
    %2183 = vst [vmem:[#allocation3 + $0x28] sm:$0xff] %v2165
    %2184 = vst [vmem:[#allocation3 + $0x30] sm:$0xff] %v2170
    %2185 = vst [vmem:[#allocation3 + $0x38] sm:$0xff] %v2175
    %v2186 = vld [vmem:[%s12] sm:$0xff]
    %v2187 = vld [vmem:[%s12 + $0x8] sm:$0xff]
    %v2188 = vld [vmem:[%s12 + $0x10] sm:$0xff]
    %v2189 = vld [vmem:[%s12 + $0x18] sm:$0xff]
    %v2190 = vld [vmem:[%s14] sm:$0xff]
    %v2191 = vld [vmem:[%s15] sm:$0xff]
    %v2192 = vld [vmem:[#allocation3] sm:$0xff]
    %v2194 = vsel %vm244, %v2190, 0
    %2196 = vmatprep.subr.mxu0 0.0
    %2197 = vmatpush1.msra.mxu0 %v2186
    %2198 = vmatprep.subr.mxu0 0.0
    %2199 = vmatpush1.msra.mxu0 %v2187
    %2200 = vmatprep.subr.mxu0 0.0
    %2201 = vmatpush1.msra.mxu0 %v2188
    %2202 = vmatprep.subr.mxu0 0.0
    %2203 = vmatpush1.msra.mxu0 %v2189
    %2204 = vmatprep.subr.mxu0 0.0
    %2205 = vmatpush1.msra.mxu0 0.0
    %2206 = vmatprep.subr.mxu0 0.0
    %2207 = vmatpush1.msra.mxu0 0.0
    %2208 = vmatprep.subr.mxu0 0.0
    %2209 = vmatpush1.msra.mxu0 0.0
    %2210 = vmatprep.subr.mxu0 0.0
    %2211 = vmatpush1.msra.mxu0 0.0
    %2212 = vmatprep.subr.mxu0 0.0
    %2213 = vmatpush1.msra.mxu0 0.0
    %2214 = vmatprep.subr.mxu0 0.0
    %2215 = vmatpush1.msra.mxu0 0.0
    %2216 = vmatprep.subr.mxu0 0.0
    %2217 = vmatpush1.msra.mxu0 0.0
    %2218 = vmatprep.subr.mxu0 0.0
    %2219 = vmatpush1.msra.mxu0 0.0
    %2220 = vmatprep.subr.mxu0 0.0
    %2221 = vmatpush1.msra.mxu0 0.0
    %2222 = vmatprep.subr.mxu0 0.0
    %2223 = vmatpush1.msra.mxu0 0.0
    %2224 = vmatprep.subr.mxu0 0.0
    %2225 = vmatpush1.msra.mxu0 0.0
    %2226 = vmatprep.subr.mxu0 0.0
    %2227 = vmatpush1.msra.mxu0 0.0
    %2228 = vmatprep.subr.mxu0 0.0
    %2229 = vmatpush1.msra.mxu0 0.0
    %2230 = vmatprep.subr.mxu0 0.0
    %2231 = vmatpush1.msra.mxu0 0.0
    %2232 = vmatprep.subr.mxu0 0.0
    %2233 = vmatpush1.msra.mxu0 0.0
    %2234 = vmatprep.subr.mxu0 0.0
    %2235 = vmatpush1.msra.mxu0 0.0
    %2236 = vmatprep.subr.mxu0 0.0
    %2237 = vmatpush1.msra.mxu0 0.0
    %2238 = vmatprep.subr.mxu0 0.0
    %2239 = vmatpush1.msra.mxu0 0.0
    %2240 = vmatprep.subr.mxu0 0.0
    %2241 = vmatpush1.msra.mxu0 0.0
    %2242 = vmatprep.subr.mxu0 0.0
    %2243 = vmatpush1.msra.mxu0 0.0
    %2244 = vmatprep.subr.mxu0 0.0
    %2245 = vmatpush1.msra.mxu0 0.0
    %2246 = vmatprep.subr.mxu0 0.0
    %2247 = vmatpush1.msra.mxu0 0.0
    %2248 = vmatprep.subr.mxu0 0.0
    %2249 = vmatpush1.msra.mxu0 0.0
    %2250 = vmatprep.subr.mxu0 0.0
    %2251 = vmatpush1.msra.mxu0 0.0
    %2252 = vmatprep.subr.mxu0 0.0
    %2253 = vmatpush1.msra.mxu0 0.0
    %2254 = vmatprep.subr.mxu0 0.0
    %2255 = vmatpush1.msra.mxu0 0.0
    %2256 = vmatprep.subr.mxu0 0.0
    %2257 = vmatpush1.msra.mxu0 0.0
    %2258 = vmatprep.subr.mxu0 0.0
    %2259 = vmatpush1.msra.mxu0 0.0
    %2260 = vmatprep.mubr.f32.mxu0 0.0
    %2261 = vmatmul.mubr.f32.gmra.mrb[0].mxu0 %v2194
    %v2262 = vpop.f32.mrb[0].mxu0
    %v2263 = vadd.f32 0.0, %v2262
    %v2264 = vpop.f32.mrb[0].mxu0
    %2265 = vdwg.mxu0
    %v2266 = vadd.f32 %v2192, %v2263
    %v2267 = vmul.f32 %v2266, %v78
    %v2268 = vtanh.pop %v2267
    %v2269 = vmul.f32 %v2268, %v78
    %v2270 = vadd.f32 %v2269, %v79
    %2272 = vrot.lane.b32.xlu0 %v2191, 32
    %v2273 = vpop.permute.xlu0 %2272
    %v2275 = vmul.f32 %v2270, %v2273
    %2277 = vrot.lane.b32.xlu0 %v2270, 64
    %v2278 = vpop.permute.xlu0 %2277
    %v2280 = vmul.f32 %v2270, %v2278
    %2282 = vrot.lane.b32.xlu0 %v2280, 32
    %v2283 = vpop.permute.xlu0 %2282
    %v2285 = vadd.f32 %v2275, %v2283
    %v2286 = vtanh.pop %v2285
    %2288 = vrot.lane.b32.xlu0 %v2286, 64
    %v2289 = vpop.permute.xlu0 %2288
    %v2291 = vmul.f32 %v2270, %v2289
    %v2293 = vlaneseq
    %v2294 = vshrl.u32 %v2293, 7
    %v2295 = vsub.s32 0, %v2294
    %v2296 = vrot.slane %v80, %v2295
    %2297 = vrot.lane.b32.xlu0 %v2296, 96
    %v2298 = vpop.permute.xlu0 %2297
    %v2300 = vmul.f32 %v2291, %v2298
    %2302 = vrot.lane.b32.xlu0 %v2300, 32
    %v2303 = vpop.permute.xlu0 %2302
    %v2305 = vsel %vm244, %v2303, 0.0
    %2306 = vadd.xlane.f32.xlu0 %v2305
    %v2307 = vpop.xlane.xlu0 %2306
    %v2309 = vlaneseq
    %v2310 = vshrl.u32 %v2309, 7
    %v2311 = vsub.s32 0, %v2310
    %v2312 = vrot.slane %v81, %v2311
    %v2314 = vadd.f32 %v2307, %v2312
    %v2315 = vmul.f32 %v2314, 0.5
    %v2316 = vtanh.pop %v2315
    %v2317 = vmul.f32 %v2316, 0.5
    %v2318 = vadd.f32 %v2317, 0.5
    %vm2319 = vcmask 7168
    %2320 = vst.msk [vmem:[%s18] sm:$0xff] %vm2319, %v2318
    %v2321 = vld [vmem:[%s349] sm:$0xff]
    %2323 = vrot.lane.b32.xlu0 %v2291, 32
    %v2324 = vpop.permute.xlu0 %2323
    %v2325 = vsel %vm244, %v2324, 0
    %2327 = vmatprep.subr.mxu0 0.0
    %2328 = vmatpush1.msra.mxu0 %v2186
    %2329 = vmatprep.subr.mxu0 0.0
    %2330 = vmatpush1.msra.mxu0 %v2187
    %2331 = vmatprep.subr.mxu0 0.0
    %2332 = vmatpush1.msra.mxu0 %v2188
    %2333 = vmatprep.subr.mxu0 0.0
    %2334 = vmatpush1.msra.mxu0 %v2189
    %2335 = vmatprep.subr.mxu0 0.0
    %2336 = vmatpush1.msra.mxu0 0.0
    %2337 = vmatprep.subr.mxu0 0.0
    %2338 = vmatpush1.msra.mxu0 0.0
    %2339 = vmatprep.subr.mxu0 0.0
    %2340 = vmatpush1.msra.mxu0 0.0
    %2341 = vmatprep.subr.mxu0 0.0
    %2342 = vmatpush1.msra.mxu0 0.0
    %2343 = vmatprep.subr.mxu0 0.0
    %2344 = vmatpush1.msra.mxu0 0.0
    %2345 = vmatprep.subr.mxu0 0.0
    %2346 = vmatpush1.msra.mxu0 0.0
    %2347 = vmatprep.subr.mxu0 0.0
    %2348 = vmatpush1.msra.mxu0 0.0
    %2349 = vmatprep.subr.mxu0 0.0
    %2350 = vmatpush1.msra.mxu0 0.0
    %2351 = vmatprep.subr.mxu0 0.0
    %2352 = vmatpush1.msra.mxu0 0.0
    %2353 = vmatprep.subr.mxu0 0.0
    %2354 = vmatpush1.msra.mxu0 0.0
    %2355 = vmatprep.subr.mxu0 0.0
    %2356 = vmatpush1.msra.mxu0 0.0
    %2357 = vmatprep.subr.mxu0 0.0
    %2358 = vmatpush1.msra.mxu0 0.0
    %2359 = vmatprep.subr.mxu0 0.0
    %2360 = vmatpush1.msra.mxu0 0.0
    %2361 = vmatprep.subr.mxu0 0.0
    %2362 = vmatpush1.msra.mxu0 0.0
    %2363 = vmatprep.subr.mxu0 0.0
    %2364 = vmatpush1.msra.mxu0 0.0
    %2365 = vmatprep.subr.mxu0 0.0
    %2366 = vmatpush1.msra.mxu0 0.0
    %2367 = vmatprep.subr.mxu0 0.0
    %2368 = vmatpush1.msra.mxu0 0.0
    %2369 = vmatprep.subr.mxu0 0.0
    %2370 = vmatpush1.msra.mxu0 0.0
    %2371 = vmatprep.subr.mxu0 0.0
    %2372 = vmatpush1.msra.mxu0 0.0
    %2373 = vmatprep.subr.mxu0 0.0
    %2374 = vmatpush1.msra.mxu0 0.0
    %2375 = vmatprep.subr.mxu0 0.0
    %2376 = vmatpush1.msra.mxu0 0.0
    %2377 = vmatprep.subr.mxu0 0.0
    %2378 = vmatpush1.msra.mxu0 0.0
    %2379 = vmatprep.subr.mxu0 0.0
    %2380 = vmatpush1.msra.mxu0 0.0
    %2381 = vmatprep.subr.mxu0 0.0
    %2382 = vmatpush1.msra.mxu0 0.0
    %2383 = vmatprep.subr.mxu0 0.0
    %2384 = vmatpush1.msra.mxu0 0.0
    %2385 = vmatprep.subr.mxu0 0.0
    %2386 = vmatpush1.msra.mxu0 0.0
    %2387 = vmatprep.subr.mxu0 0.0
    %2388 = vmatpush1.msra.mxu0 0.0
    %2389 = vmatprep.subr.mxu0 0.0
    %2390 = vmatpush1.msra.mxu0 0.0
    %2391 = vmatprep.mubr.f32.mxu0 0.0
    %2392 = vmatmul.mubr.f32.gmra.mrb[0].mxu0 %v2325
    %v2393 = vpop.f32.mrb[0].mxu0
    %v2394 = vadd.f32 0.0, %v2393
    %v2395 = vpop.f32.mrb[0].mxu0
    %2396 = vdwg.mxu0
    %v2397 = vadd.f32 %v2321, %v2394
    %v2398 = vmul.f32 %v2397, %v78
    %v2399 = vtanh.pop %v2398
    %v2400 = vmul.f32 %v2399, %v78
    %v2401 = vadd.f32 %v2400, %v79
    %v2402 = vmul.f32 %v2401, %v2285
    %2404 = vrot.lane.b32.xlu0 %v2401, 64
    %v2405 = vpop.permute.xlu0 %2404
    %v2407 = vmul.f32 %v2401, %v2405
    %2409 = vrot.lane.b32.xlu0 %v2407, 32
    %v2410 = vpop.permute.xlu0 %2409
    %v2412 = vadd.f32 %v2402, %v2410
    %v2413 = vtanh.pop %v2412
    %2415 = vrot.lane.b32.xlu0 %v2413, 64
    %v2416 = vpop.permute.xlu0 %2415
    %v2418 = vmul.f32 %v2401, %v2416
    %v2419 = vmul.f32 %v2418, %v2298
    %2421 = vrot.lane.b32.xlu0 %v2419, 32
    %v2422 = vpop.permute.xlu0 %2421
    %v2424 = vsel %vm244, %v2422, 0.0
    %2425 = vadd.xlane.f32.xlu0 %v2424
    %v2426 = vpop.xlane.xlu0 %2425
    %v2427 = vadd.f32 %v2426, %v2312
    %v2428 = vmul.f32 %v2427, 0.5
    %v2429 = vtanh.pop %v2428
    %v2430 = vmul.f32 %v2429, 0.5
    %v2431 = vadd.f32 %v2430, 0.5
    %s2432 = scalar_lea.vmem %s18, 8
    %2433 = vst.msk [vmem:[%s2432] sm:$0xff] %vm2319, %v2431
    %v2434 = vld [vmem:[%s451] sm:$0xff]
    %2436 = vrot.lane.b32.xlu0 %v2418, 32
    %v2437 = vpop.permute.xlu0 %2436
    %v2438 = vsel %vm244, %v2437, 0
    %2440 = vmatprep.subr.mxu0 0.0
    %2441 = vmatpush1.msra.mxu0 %v2186
    %2442 = vmatprep.subr.mxu0 0.0
    %2443 = vmatpush1.msra.mxu0 %v2187
    %2444 = vmatprep.subr.mxu0 0.0
    %2445 = vmatpush1.msra.mxu0 %v2188
    %2446 = vmatprep.subr.mxu0 0.0
    %2447 = vmatpush1.msra.mxu0 %v2189
    %2448 = vmatprep.subr.mxu0 0.0
    %2449 = vmatpush1.msra.mxu0 0.0
    %2450 = vmatprep.subr.mxu0 0.0
    %2451 = vmatpush1.msra.mxu0 0.0
    %2452 = vmatprep.subr.mxu0 0.0
    %2453 = vmatpush1.msra.mxu0 0.0
    %2454 = vmatprep.subr.mxu0 0.0
    %2455 = vmatpush1.msra.mxu0 0.0
    %2456 = vmatprep.subr.mxu0 0.0
    %2457 = vmatpush1.msra.mxu0 0.0
    %2458 = vmatprep.subr.mxu0 0.0
    %2459 = vmatpush1.msra.mxu0 0.0
    %2460 = vmatprep.subr.mxu0 0.0
    %2461 = vmatpush1.msra.mxu0 0.0
    %2462 = vmatprep.subr.mxu0 0.0
    %2463 = vmatpush1.msra.mxu0 0.0
    %2464 = vmatprep.subr.mxu0 0.0
    %2465 = vmatpush1.msra.mxu0 0.0
    %2466 = vmatprep.subr.mxu0 0.0
    %2467 = vmatpush1.msra.mxu0 0.0
    %2468 = vmatprep.subr.mxu0 0.0
    %2469 = vmatpush1.msra.mxu0 0.0
    %2470 = vmatprep.subr.mxu0 0.0
    %2471 = vmatpush1.msra.mxu0 0.0
    %2472 = vmatprep.subr.mxu0 0.0
    %2473 = vmatpush1.msra.mxu0 0.0
    %2474 = vmatprep.subr.mxu0 0.0
    %2475 = vmatpush1.msra.mxu0 0.0
    %2476 = vmatprep.subr.mxu0 0.0
    %2477 = vmatpush1.msra.mxu0 0.0
    %2478 = vmatprep.subr.mxu0 0.0
    %2479 = vmatpush1.msra.mxu0 0.0
    %2480 = vmatprep.subr.mxu0 0.0
    %2481 = vmatpush1.msra.mxu0 0.0
    %2482 = vmatprep.subr.mxu0 0.0
    %2483 = vmatpush1.msra.mxu0 0.0
    %2484 = vmatprep.subr.mxu0 0.0
    %2485 = vmatpush1.msra.mxu0 0.0
    %2486 = vmatprep.subr.mxu0 0.0
    %2487 = vmatpush1.msra.mxu0 0.0
    %2488 = vmatprep.subr.mxu0 0.0
    %2489 = vmatpush1.msra.mxu0 0.0
    %2490 = vmatprep.subr.mxu0 0.0
    %2491 = vmatpush1.msra.mxu0 0.0
    %2492 = vmatprep.subr.mxu0 0.0
    %2493 = vmatpush1.msra.mxu0 0.0
    %2494 = vmatprep.subr.mxu0 0.0
    %2495 = vmatpush1.msra.mxu0 0.0
    %2496 = vmatprep.subr.mxu0 0.0
    %2497 = vmatpush1.msra.mxu0 0.0
    %2498 = vmatprep.subr.mxu0 0.0
    %2499 = vmatpush1.msra.mxu0 0.0
    %2500 = vmatprep.subr.mxu0 0.0
    %2501 = vmatpush1.msra.mxu0 0.0
    %2502 = vmatprep.subr.mxu0 0.0
    %2503 = vmatpush1.msra.mxu0 0.0
    %2504 = vmatprep.mubr.f32.mxu0 0.0
    %2505 = vmatmul.mubr.f32.gmra.mrb[0].mxu0 %v2438
    %v2506 = vpop.f32.mrb[0].mxu0
    %v2507 = vadd.f32 0.0, %v2506
    %v2508 = vpop.f32.mrb[0].mxu0
    %2509 = vdwg.mxu0
    %v2510 = vadd.f32 %v2434, %v2507
    %v2511 = vmul.f32 %v2510, %v78
    %v2512 = vtanh.pop %v2511
    %v2513 = vmul.f32 %v2512, %v78
    %v2514 = vadd.f32 %v2513, %v79
    %v2515 = vmul.f32 %v2514, %v2412
    %2517 = vrot.lane.b32.xlu0 %v2514, 64
    %v2518 = vpop.permute.xlu0 %2517
    %v2520 = vmul.f32 %v2514, %v2518
    %2522 = vrot.lane.b32.xlu0 %v2520, 32
    %v2523 = vpop.permute.xlu0 %2522
    %v2525 = vadd.f32 %v2515, %v2523
    %v2526 = vtanh.pop %v2525
    %2528 = vrot.lane.b32.xlu0 %v2526, 64
    %v2529 = vpop.permute.xlu0 %2528
    %v2531 = vmul.f32 %v2514, %v2529
    %v2532 = vmul.f32 %v2531, %v2298
    %2534 = vrot.lane.b32.xlu0 %v2532, 32
    %v2535 = vpop.permute.xlu0 %2534
    %v2537 = vsel %vm244, %v2535, 0.0
    %2538 = vadd.xlane.f32.xlu0 %v2537
    %v2539 = vpop.xlane.xlu0 %2538
    %v2540 = vadd.f32 %v2539, %v2312
    %v2541 = vmul.f32 %v2540, 0.5
    %v2542 = vtanh.pop %v2541
    %v2543 = vmul.f32 %v2542, 0.5
    %v2544 = vadd.f32 %v2543, 0.5
    %s2545 = scalar_lea.vmem %s18, 16
    %2546 = vst.msk [vmem:[%s2545] sm:$0xff] %vm2319, %v2544
    %v2547 = vld [vmem:[%s553] sm:$0xff]
    %2549 = vrot.lane.b32.xlu0 %v2531, 32
    %v2550 = vpop.permute.xlu0 %2549
    %v2551 = vsel %vm244, %v2550, 0
    %2553 = vmatprep.subr.mxu0 0.0
    %2554 = vmatpush1.msra.mxu0 %v2186
    %2555 = vmatprep.subr.mxu0 0.0
    %2556 = vmatpush1.msra.mxu0 %v2187
    %2557 = vmatprep.subr.mxu0 0.0
    %2558 = vmatpush1.msra.mxu0 %v2188
    %2559 = vmatprep.subr.mxu0 0.0
    %2560 = vmatpush1.msra.mxu0 %v2189
    %2561 = vmatprep.subr.mxu0 0.0
    %2562 = vmatpush1.msra.mxu0 0.0
    %2563 = vmatprep.subr.mxu0 0.0
    %2564 = vmatpush1.msra.mxu0 0.0
    %2565 = vmatprep.subr.mxu0 0.0
    %2566 = vmatpush1.msra.mxu0 0.0
    %2567 = vmatprep.subr.mxu0 0.0
    %2568 = vmatpush1.msra.mxu0 0.0
    %2569 = vmatprep.subr.mxu0 0.0
    %2570 = vmatpush1.msra.mxu0 0.0
    %2571 = vmatprep.subr.mxu0 0.0
    %2572 = vmatpush1.msra.mxu0 0.0
    %2573 = vmatprep.subr.mxu0 0.0
    %2574 = vmatpush1.msra.mxu0 0.0
    %2575 = vmatprep.subr.mxu0 0.0
    %2576 = vmatpush1.msra.mxu0 0.0
    %2577 = vmatprep.subr.mxu0 0.0
    %2578 = vmatpush1.msra.mxu0 0.0
    %2579 = vmatprep.subr.mxu0 0.0
    %2580 = vmatpush1.msra.mxu0 0.0
    %2581 = vmatprep.subr.mxu0 0.0
    %2582 = vmatpush1.msra.mxu0 0.0
    %2583 = vmatprep.subr.mxu0 0.0
    %2584 = vmatpush1.msra.mxu0 0.0
    %2585 = vmatprep.subr.mxu0 0.0
    %2586 = vmatpush1.msra.mxu0 0.0
    %2587 = vmatprep.subr.mxu0 0.0
    %2588 = vmatpush1.msra.mxu0 0.0
    %2589 = vmatprep.subr.mxu0 0.0
    %2590 = vmatpush1.msra.mxu0 0.0
    %2591 = vmatprep.subr.mxu0 0.0
    %2592 = vmatpush1.msra.mxu0 0.0
    %2593 = vmatprep.subr.mxu0 0.0
    %2594 = vmatpush1.msra.mxu0 0.0
    %2595 = vmatprep.subr.mxu0 0.0
    %2596 = vmatpush1.msra.mxu0 0.0
    %2597 = vmatprep.subr.mxu0 0.0
    %2598 = vmatpush1.msra.mxu0 0.0
    %2599 = vmatprep.subr.mxu0 0.0
    %2600 = vmatpush1.msra.mxu0 0.0
    %2601 = vmatprep.subr.mxu0 0.0
    %2602 = vmatpush1.msra.mxu0 0.0
    %2603 = vmatprep.subr.mxu0 0.0
    %2604 = vmatpush1.msra.mxu0 0.0
    %2605 = vmatprep.subr.mxu0 0.0
    %2606 = vmatpush1.msra.mxu0 0.0
    %2607 = vmatprep.subr.mxu0 0.0
    %2608 = vmatpush1.msra.mxu0 0.0
    %2609 = vmatprep.subr.mxu0 0.0
    %2610 = vmatpush1.msra.mxu0 0.0
    %2611 = vmatprep.subr.mxu0 0.0
    %2612 = vmatpush1.msra.mxu0 0.0
    %2613 = vmatprep.subr.mxu0 0.0
    %2614 = vmatpush1.msra.mxu0 0.0
    %2615 = vmatprep.subr.mxu0 0.0
    %2616 = vmatpush1.msra.mxu0 0.0
    %2617 = vmatprep.mubr.f32.mxu0 0.0
    %2618 = vmatmul.mubr.f32.gmra.mrb[0].mxu0 %v2551
    %v2619 = vpop.f32.mrb[0].mxu0
    %v2620 = vadd.f32 0.0, %v2619
    %v2621 = vpop.f32.mrb[0].mxu0
    %2622 = vdwg.mxu0
    %v2623 = vadd.f32 %v2547, %v2620
    %v2624 = vmul.f32 %v2623, %v78
    %v2625 = vtanh.pop %v2624
    %v2626 = vmul.f32 %v2625, %v78
    %v2627 = vadd.f32 %v2626, %v79
    %v2628 = vmul.f32 %v2627, %v2525
    %2630 = vrot.lane.b32.xlu0 %v2627, 64
    %v2631 = vpop.permute.xlu0 %2630
    %v2633 = vmul.f32 %v2627, %v2631
    %2635 = vrot.lane.b32.xlu0 %v2633, 32
    %v2636 = vpop.permute.xlu0 %2635
    %v2638 = vadd.f32 %v2628, %v2636
    %v2639 = vtanh.pop %v2638
    %2641 = vrot.lane.b32.xlu0 %v2639, 64
    %v2642 = vpop.permute.xlu0 %2641
    %v2644 = vmul.f32 %v2627, %v2642
    %v2645 = vmul.f32 %v2644, %v2298
    %2647 = vrot.lane.b32.xlu0 %v2645, 32
    %v2648 = vpop.permute.xlu0 %2647
    %v2650 = vsel %vm244, %v2648, 0.0
    %2651 = vadd.xlane.f32.xlu0 %v2650
    %v2652 = vpop.xlane.xlu0 %2651
    %v2653 = vadd.f32 %v2652, %v2312
    %v2654 = vmul.f32 %v2653, 0.5
    %v2655 = vtanh.pop %v2654
    %v2656 = vmul.f32 %v2655, 0.5
    %v2657 = vadd.f32 %v2656, 0.5
    %s2658 = scalar_lea.vmem %s18, 24
    %2659 = vst.msk [vmem:[%s2658] sm:$0xff] %vm2319, %v2657
    %v2660 = vld [vmem:[%s655] sm:$0xff]
    %2662 = vrot.lane.b32.xlu0 %v2644, 32
    %v2663 = vpop.permute.xlu0 %2662
    %v2664 = vsel %vm244, %v2663, 0
    %2666 = vmatprep.subr.mxu0 0.0
    %2667 = vmatpush1.msra.mxu0 %v2186
    %2668 = vmatprep.subr.mxu0 0.0
    %2669 = vmatpush1.msra.mxu0 %v2187
    %2670 = vmatprep.subr.mxu0 0.0
    %2671 = vmatpush1.msra.mxu0 %v2188
    %2672 = vmatprep.subr.mxu0 0.0
    %2673 = vmatpush1.msra.mxu0 %v2189
    %2674 = vmatprep.subr.mxu0 0.0
    %2675 = vmatpush1.msra.mxu0 0.0
    %2676 = vmatprep.subr.mxu0 0.0
    %2677 = vmatpush1.msra.mxu0 0.0
    %2678 = vmatprep.subr.mxu0 0.0
    %2679 = vmatpush1.msra.mxu0 0.0
    %2680 = vmatprep.subr.mxu0 0.0
    %2681 = vmatpush1.msra.mxu0 0.0
    %2682 = vmatprep.subr.mxu0 0.0
    %2683 = vmatpush1.msra.mxu0 0.0
    %2684 = vmatprep.subr.mxu0 0.0
    %2685 = vmatpush1.msra.mxu0 0.0
    %2686 = vmatprep.subr.mxu0 0.0
    %2687 = vmatpush1.msra.mxu0 0.0
    %2688 = vmatprep.subr.mxu0 0.0
    %2689 = vmatpush1.msra.mxu0 0.0
    %2690 = vmatprep.subr.mxu0 0.0
    %2691 = vmatpush1.msra.mxu0 0.0
    %2692 = vmatprep.subr.mxu0 0.0
    %2693 = vmatpush1.msra.mxu0 0.0
    %2694 = vmatprep.subr.mxu0 0.0
    %2695 = vmatpush1.msra.mxu0 0.0
    %2696 = vmatprep.subr.mxu0 0.0
    %2697 = vmatpush1.msra.mxu0 0.0
    %2698 = vmatprep.subr.mxu0 0.0
    %2699 = vmatpush1.msra.mxu0 0.0
    %2700 = vmatprep.subr.mxu0 0.0
    %2701 = vmatpush1.msra.mxu0 0.0
    %2702 = vmatprep.subr.mxu0 0.0
    %2703 = vmatpush1.msra.mxu0 0.0
    %2704 = vmatprep.subr.mxu0 0.0
    %2705 = vmatpush1.msra.mxu0 0.0
    %2706 = vmatprep.subr.mxu0 0.0
    %2707 = vmatpush1.msra.mxu0 0.0
    %2708 = vmatprep.subr.mxu0 0.0
    %2709 = vmatpush1.msra.mxu0 0.0
    %2710 = vmatprep.subr.mxu0 0.0
    %2711 = vmatpush1.msra.mxu0 0.0
    %2712 = vmatprep.subr.mxu0 0.0
    %2713 = vmatpush1.msra.mxu0 0.0
    %2714 = vmatprep.subr.mxu0 0.0
    %2715 = vmatpush1.msra.mxu0 0.0
    %2716 = vmatprep.subr.mxu0 0.0
    %2717 = vmatpush1.msra.mxu0 0.0
    %2718 = vmatprep.subr.mxu0 0.0
    %2719 = vmatpush1.msra.mxu0 0.0
    %2720 = vmatprep.subr.mxu0 0.0
    %2721 = vmatpush1.msra.mxu0 0.0
    %2722 = vmatprep.subr.mxu0 0.0
    %2723 = vmatpush1.msra.mxu0 0.0
    %2724 = vmatprep.subr.mxu0 0.0
    %2725 = vmatpush1.msra.mxu0 0.0
    %2726 = vmatprep.subr.mxu0 0.0
    %2727 = vmatpush1.msra.mxu0 0.0
    %2728 = vmatprep.subr.mxu0 0.0
    %2729 = vmatpush1.msra.mxu0 0.0
    %2730 = vmatprep.mubr.f32.mxu0 0.0
    %2731 = vmatmul.mubr.f32.gmra.mrb[0].mxu0 %v2664
    %v2732 = vpop.f32.mrb[0].mxu0
    %v2733 = vadd.f32 0.0, %v2732
    %v2734 = vpop.f32.mrb[0].mxu0
    %2735 = vdwg.mxu0
    %v2736 = vadd.f32 %v2660, %v2733
    %v2737 = vmul.f32 %v2736, %v78
    %v2738 = vtanh.pop %v2737
    %v2739 = vmul.f32 %v2738, %v78
    %v2740 = vadd.f32 %v2739, %v79
    %v2741 = vmul.f32 %v2740, %v2638
    %2743 = vrot.lane.b32.xlu0 %v2740, 64
    %v2744 = vpop.permute.xlu0 %2743
    %v2746 = vmul.f32 %v2740, %v2744
    %2748 = vrot.lane.b32.xlu0 %v2746, 32
    %v2749 = vpop.permute.xlu0 %2748
    %v2751 = vadd.f32 %v2741, %v2749
    %v2752 = vtanh.pop %v2751
    %2754 = vrot.lane.b32.xlu0 %v2752, 64
    %v2755 = vpop.permute.xlu0 %2754
    %v2757 = vmul.f32 %v2740, %v2755
    %v2758 = vmul.f32 %v2757, %v2298
    %2760 = vrot.lane.b32.xlu0 %v2758, 32
    %v2761 = vpop.permute.xlu0 %2760
    %v2763 = vsel %vm244, %v2761, 0.0
    %2764 = vadd.xlane.f32.xlu0 %v2763
    %v2765 = vpop.xlane.xlu0 %2764
    %v2766 = vadd.f32 %v2765, %v2312
    %v2767 = vmul.f32 %v2766, 0.5
    %v2768 = vtanh.pop %v2767
    %v2769 = vmul.f32 %v2768, 0.5
    %v2770 = vadd.f32 %v2769, 0.5
    %s2771 = scalar_lea.vmem %s18, 32
    %2772 = vst.msk [vmem:[%s2771] sm:$0xff] %vm2319, %v2770
    %v2773 = vld [vmem:[%s757] sm:$0xff]
    %2775 = vrot.lane.b32.xlu0 %v2757, 32
    %v2776 = vpop.permute.xlu0 %2775
    %v2777 = vsel %vm244, %v2776, 0
    %2779 = vmatprep.subr.mxu0 0.0
    %2780 = vmatpush1.msra.mxu0 %v2186
    %2781 = vmatprep.subr.mxu0 0.0
    %2782 = vmatpush1.msra.mxu0 %v2187
    %2783 = vmatprep.subr.mxu0 0.0
    %2784 = vmatpush1.msra.mxu0 %v2188
    %2785 = vmatprep.subr.mxu0 0.0
    %2786 = vmatpush1.msra.mxu0 %v2189
    %2787 = vmatprep.subr.mxu0 0.0
    %2788 = vmatpush1.msra.mxu0 0.0
    %2789 = vmatprep.subr.mxu0 0.0
    %2790 = vmatpush1.msra.mxu0 0.0
    %2791 = vmatprep.subr.mxu0 0.0
    %2792 = vmatpush1.msra.mxu0 0.0
    %2793 = vmatprep.subr.mxu0 0.0
    %2794 = vmatpush1.msra.mxu0 0.0
    %2795 = vmatprep.subr.mxu0 0.0
    %2796 = vmatpush1.msra.mxu0 0.0
    %2797 = vmatprep.subr.mxu0 0.0
    %2798 = vmatpush1.msra.mxu0 0.0
    %2799 = vmatprep.subr.mxu0 0.0
    %2800 = vmatpush1.msra.mxu0 0.0
    %2801 = vmatprep.subr.mxu0 0.0
    %2802 = vmatpush1.msra.mxu0 0.0
    %2803 = vmatprep.subr.mxu0 0.0
    %2804 = vmatpush1.msra.mxu0 0.0
    %2805 = vmatprep.subr.mxu0 0.0
    %2806 = vmatpush1.msra.mxu0 0.0
    %2807 = vmatprep.subr.mxu0 0.0
    %2808 = vmatpush1.msra.mxu0 0.0
    %2809 = vmatprep.subr.mxu0 0.0
    %2810 = vmatpush1.msra.mxu0 0.0
    %2811 = vmatprep.subr.mxu0 0.0
    %2812 = vmatpush1.msra.mxu0 0.0
    %2813 = vmatprep.subr.mxu0 0.0
    %2814 = vmatpush1.msra.mxu0 0.0
    %2815 = vmatprep.subr.mxu0 0.0
    %2816 = vmatpush1.msra.mxu0 0.0
    %2817 = vmatprep.subr.mxu0 0.0
    %2818 = vmatpush1.msra.mxu0 0.0
    %2819 = vmatprep.subr.mxu0 0.0
    %2820 = vmatpush1.msra.mxu0 0.0
    %2821 = vmatprep.subr.mxu0 0.0
    %2822 = vmatpush1.msra.mxu0 0.0
    %2823 = vmatprep.subr.mxu0 0.0
    %2824 = vmatpush1.msra.mxu0 0.0
    %2825 = vmatprep.subr.mxu0 0.0
    %2826 = vmatpush1.msra.mxu0 0.0
    %2827 = vmatprep.subr.mxu0 0.0
    %2828 = vmatpush1.msra.mxu0 0.0
    %2829 = vmatprep.subr.mxu0 0.0
    %2830 = vmatpush1.msra.mxu0 0.0
    %2831 = vmatprep.subr.mxu0 0.0
    %2832 = vmatpush1.msra.mxu0 0.0
    %2833 = vmatprep.subr.mxu0 0.0
    %2834 = vmatpush1.msra.mxu0 0.0
    %2835 = vmatprep.subr.mxu0 0.0
    %2836 = vmatpush1.msra.mxu0 0.0
    %2837 = vmatprep.subr.mxu0 0.0
    %2838 = vmatpush1.msra.mxu0 0.0
    %2839 = vmatprep.subr.mxu0 0.0
    %2840 = vmatpush1.msra.mxu0 0.0
    %2841 = vmatprep.subr.mxu0 0.0
    %2842 = vmatpush1.msra.mxu0 0.0
    %2843 = vmatprep.mubr.f32.mxu0 0.0
    %2844 = vmatmul.mubr.f32.gmra.mrb[0].mxu0 %v2777
    %v2845 = vpop.f32.mrb[0].mxu0
    %v2846 = vadd.f32 0.0, %v2845
    %v2847 = vpop.f32.mrb[0].mxu0
    %2848 = vdwg.mxu0
    %v2849 = vadd.f32 %v2773, %v2846
    %v2850 = vmul.f32 %v2849, %v78
    %v2851 = vtanh.pop %v2850
    %v2852 = vmul.f32 %v2851, %v78
    %v2853 = vadd.f32 %v2852, %v79
    %v2854 = vmul.f32 %v2853, %v2751
    %2856 = vrot.lane.b32.xlu0 %v2853, 64
    %v2857 = vpop.permute.xlu0 %2856
    %v2859 = vmul.f32 %v2853, %v2857
    %2861 = vrot.lane.b32.xlu0 %v2859, 32
    %v2862 = vpop.permute.xlu0 %2861
    %v2864 = vadd.f32 %v2854, %v2862
    %v2865 = vtanh.pop %v2864
    %2867 = vrot.lane.b32.xlu0 %v2865, 64
    %v2868 = vpop.permute.xlu0 %2867
    %v2870 = vmul.f32 %v2853, %v2868
    %v2871 = vmul.f32 %v2870, %v2298
    %2873 = vrot.lane.b32.xlu0 %v2871, 32
    %v2874 = vpop.permute.xlu0 %2873
    %v2876 = vsel %vm244, %v2874, 0.0
    %2877 = vadd.xlane.f32.xlu0 %v2876
    %v2878 = vpop.xlane.xlu0 %2877
    %v2879 = vadd.f32 %v2878, %v2312
    %v2880 = vmul.f32 %v2879, 0.5
    %v2881 = vtanh.pop %v2880
    %v2882 = vmul.f32 %v2881, 0.5
    %v2883 = vadd.f32 %v2882, 0.5
    %s2884 = scalar_lea.vmem %s18, 40
    %2885 = vst.msk [vmem:[%s2884] sm:$0xff] %vm2319, %v2883
    %v2886 = vld [vmem:[%s859] sm:$0xff]
    %2888 = vrot.lane.b32.xlu0 %v2870, 32
    %v2889 = vpop.permute.xlu0 %2888
    %v2890 = vsel %vm244, %v2889, 0
    %2892 = vmatprep.subr.mxu0 0.0
    %2893 = vmatpush1.msra.mxu0 %v2186
    %2894 = vmatprep.subr.mxu0 0.0
    %2895 = vmatpush1.msra.mxu0 %v2187
    %2896 = vmatprep.subr.mxu0 0.0
    %2897 = vmatpush1.msra.mxu0 %v2188
    %2898 = vmatprep.subr.mxu0 0.0
    %2899 = vmatpush1.msra.mxu0 %v2189
    %2900 = vmatprep.subr.mxu0 0.0
    %2901 = vmatpush1.msra.mxu0 0.0
    %2902 = vmatprep.subr.mxu0 0.0
    %2903 = vmatpush1.msra.mxu0 0.0
    %2904 = vmatprep.subr.mxu0 0.0
    %2905 = vmatpush1.msra.mxu0 0.0
    %2906 = vmatprep.subr.mxu0 0.0
    %2907 = vmatpush1.msra.mxu0 0.0
    %2908 = vmatprep.subr.mxu0 0.0
    %2909 = vmatpush1.msra.mxu0 0.0
    %2910 = vmatprep.subr.mxu0 0.0
    %2911 = vmatpush1.msra.mxu0 0.0
    %2912 = vmatprep.subr.mxu0 0.0
    %2913 = vmatpush1.msra.mxu0 0.0
    %2914 = vmatprep.subr.mxu0 0.0
    %2915 = vmatpush1.msra.mxu0 0.0
    %2916 = vmatprep.subr.mxu0 0.0
    %2917 = vmatpush1.msra.mxu0 0.0
    %2918 = vmatprep.subr.mxu0 0.0
    %2919 = vmatpush1.msra.mxu0 0.0
    %2920 = vmatprep.subr.mxu0 0.0
    %2921 = vmatpush1.msra.mxu0 0.0
    %2922 = vmatprep.subr.mxu0 0.0
    %2923 = vmatpush1.msra.mxu0 0.0
    %2924 = vmatprep.subr.mxu0 0.0
    %2925 = vmatpush1.msra.mxu0 0.0
    %2926 = vmatprep.subr.mxu0 0.0
    %2927 = vmatpush1.msra.mxu0 0.0
    %2928 = vmatprep.subr.mxu0 0.0
    %2929 = vmatpush1.msra.mxu0 0.0
    %2930 = vmatprep.subr.mxu0 0.0
    %2931 = vmatpush1.msra.mxu0 0.0
    %2932 = vmatprep.subr.mxu0 0.0
    %2933 = vmatpush1.msra.mxu0 0.0
    %2934 = vmatprep.subr.mxu0 0.0
    %2935 = vmatpush1.msra.mxu0 0.0
    %2936 = vmatprep.subr.mxu0 0.0
    %2937 = vmatpush1.msra.mxu0 0.0
    %2938 = vmatprep.subr.mxu0 0.0
    %2939 = vmatpush1.msra.mxu0 0.0
    %2940 = vmatprep.subr.mxu0 0.0
    %2941 = vmatpush1.msra.mxu0 0.0
    %2942 = vmatprep.subr.mxu0 0.0
    %2943 = vmatpush1.msra.mxu0 0.0
    %2944 = vmatprep.subr.mxu0 0.0
    %2945 = vmatpush1.msra.mxu0 0.0
    %2946 = vmatprep.subr.mxu0 0.0
    %2947 = vmatpush1.msra.mxu0 0.0
    %2948 = vmatprep.subr.mxu0 0.0
    %2949 = vmatpush1.msra.mxu0 0.0
    %2950 = vmatprep.subr.mxu0 0.0
    %2951 = vmatpush1.msra.mxu0 0.0
    %2952 = vmatprep.subr.mxu0 0.0
    %2953 = vmatpush1.msra.mxu0 0.0
    %2954 = vmatprep.subr.mxu0 0.0
    %2955 = vmatpush1.msra.mxu0 0.0
    %2956 = vmatprep.mubr.f32.mxu0 0.0
    %2957 = vmatmul.mubr.f32.gmra.mrb[0].mxu0 %v2890
    %v2958 = vpop.f32.mrb[0].mxu0
    %v2959 = vadd.f32 0.0, %v2958
    %v2960 = vpop.f32.mrb[0].mxu0
    %2961 = vdwg.mxu0
    %v2962 = vadd.f32 %v2886, %v2959
    %v2963 = vmul.f32 %v2962, %v78
    %v2964 = vtanh.pop %v2963
    %v2965 = vmul.f32 %v2964, %v78
    %v2966 = vadd.f32 %v2965, %v79
    %v2967 = vmul.f32 %v2966, %v2864
    %2969 = vrot.lane.b32.xlu0 %v2966, 64
    %v2970 = vpop.permute.xlu0 %2969
    %v2972 = vmul.f32 %v2966, %v2970
    %2974 = vrot.lane.b32.xlu0 %v2972, 32
    %v2975 = vpop.permute.xlu0 %2974
    %v2977 = vadd.f32 %v2967, %v2975
    %v2978 = vtanh.pop %v2977
    %2980 = vrot.lane.b32.xlu0 %v2978, 64
    %v2981 = vpop.permute.xlu0 %2980
    %v2983 = vmul.f32 %v2966, %v2981
    %v2984 = vmul.f32 %v2983, %v2298
    %2986 = vrot.lane.b32.xlu0 %v2984, 32
    %v2987 = vpop.permute.xlu0 %2986
    %v2989 = vsel %vm244, %v2987, 0.0
    %2990 = vadd.xlane.f32.xlu0 %v2989
    %v2991 = vpop.xlane.xlu0 %2990
    %v2992 = vadd.f32 %v2991, %v2312
    %v2993 = vmul.f32 %v2992, 0.5
    %v2994 = vtanh.pop %v2993
    %v2995 = vmul.f32 %v2994, 0.5
    %v2996 = vadd.f32 %v2995, 0.5
    %s2997 = scalar_lea.vmem %s18, 48
    %2998 = vst.msk [vmem:[%s2997] sm:$0xff] %vm2319, %v2996
    %v2999 = vld [vmem:[%s961] sm:$0xff]
    %3001 = vrot.lane.b32.xlu0 %v2983, 32
    %v3002 = vpop.permute.xlu0 %3001
    %v3003 = vsel %vm244, %v3002, 0
    %3005 = vmatprep.subr.mxu0 0.0
    %3006 = vmatpush1.msra.mxu0 %v2186
    %3007 = vmatprep.subr.mxu0 0.0
    %3008 = vmatpush1.msra.mxu0 %v2187
    %3009 = vmatprep.subr.mxu0 0.0
    %3010 = vmatpush1.msra.mxu0 %v2188
    %3011 = vmatprep.subr.mxu0 0.0
    %3012 = vmatpush1.msra.mxu0 %v2189
    %3013 = vmatprep.subr.mxu0 0.0
    %3014 = vmatpush1.msra.mxu0 0.0
    %3015 = vmatprep.subr.mxu0 0.0
    %3016 = vmatpush1.msra.mxu0 0.0
    %3017 = vmatprep.subr.mxu0 0.0
    %3018 = vmatpush1.msra.mxu0 0.0
    %3019 = vmatprep.subr.mxu0 0.0
    %3020 = vmatpush1.msra.mxu0 0.0
    %3021 = vmatprep.subr.mxu0 0.0
    %3022 = vmatpush1.msra.mxu0 0.0
    %3023 = vmatprep.subr.mxu0 0.0
    %3024 = vmatpush1.msra.mxu0 0.0
    %3025 = vmatprep.subr.mxu0 0.0
    %3026 = vmatpush1.msra.mxu0 0.0
    %3027 = vmatprep.subr.mxu0 0.0
    %3028 = vmatpush1.msra.mxu0 0.0
    %3029 = vmatprep.subr.mxu0 0.0
    %3030 = vmatpush1.msra.mxu0 0.0
    %3031 = vmatprep.subr.mxu0 0.0
    %3032 = vmatpush1.msra.mxu0 0.0
    %3033 = vmatprep.subr.mxu0 0.0
    %3034 = vmatpush1.msra.mxu0 0.0
    %3035 = vmatprep.subr.mxu0 0.0
    %3036 = vmatpush1.msra.mxu0 0.0
    %3037 = vmatprep.subr.mxu0 0.0
    %3038 = vmatpush1.msra.mxu0 0.0
    %3039 = vmatprep.subr.mxu0 0.0
    %3040 = vmatpush1.msra.mxu0 0.0
    %3041 = vmatprep.subr.mxu0 0.0
    %3042 = vmatpush1.msra.mxu0 0.0
    %3043 = vmatprep.subr.mxu0 0.0
    %3044 = vmatpush1.msra.mxu0 0.0
    %3045 = vmatprep.subr.mxu0 0.0
    %3046 = vmatpush1.msra.mxu0 0.0
    %3047 = vmatprep.subr.mxu0 0.0
    %3048 = vmatpush1.msra.mxu0 0.0
    %3049 = vmatprep.subr.mxu0 0.0
    %3050 = vmatpush1.msra.mxu0 0.0
    %3051 = vmatprep.subr.mxu0 0.0
    %3052 = vmatpush1.msra.mxu0 0.0
    %3053 = vmatprep.subr.mxu0 0.0
    %3054 = vmatpush1.msra.mxu0 0.0
    %3055 = vmatprep.subr.mxu0 0.0
    %3056 = vmatpush1.msra.mxu0 0.0
    %3057 = vmatprep.subr.mxu0 0.0
    %3058 = vmatpush1.msra.mxu0 0.0
    %3059 = vmatprep.subr.mxu0 0.0
    %3060 = vmatpush1.msra.mxu0 0.0
    %3061 = vmatprep.subr.mxu0 0.0
    %3062 = vmatpush1.msra.mxu0 0.0
    %3063 = vmatprep.subr.mxu0 0.0
    %3064 = vmatpush1.msra.mxu0 0.0
    %3065 = vmatprep.subr.mxu0 0.0
    %3066 = vmatpush1.msra.mxu0 0.0
    %3067 = vmatprep.subr.mxu0 0.0
    %3068 = vmatpush1.msra.mxu0 0.0
    %3069 = vmatprep.mubr.f32.mxu0 0.0
    %3070 = vmatmul.mubr.f32.gmra.mrb[0].mxu0 %v3003
    %v3071 = vpop.f32.mrb[0].mxu0
    %v3072 = vadd.f32 0.0, %v3071
    %v3073 = vpop.f32.mrb[0].mxu0
    %3074 = vdwg.mxu0
    %v3075 = vadd.f32 %v2999, %v3072
    %v3076 = vmul.f32 %v3075, %v78
    %v3077 = vtanh.pop %v3076
    %v3078 = vmul.f32 %v3077, %v78
    %v3079 = vadd.f32 %v3078, %v79
    %v3080 = vmul.f32 %v3079, %v2977
    %3082 = vrot.lane.b32.xlu0 %v3079, 64
    %v3083 = vpop.permute.xlu0 %3082
    %v3085 = vmul.f32 %v3079, %v3083
    %3087 = vrot.lane.b32.xlu0 %v3085, 32
    %v3088 = vpop.permute.xlu0 %3087
    %v3090 = vadd.f32 %v3080, %v3088
    %v3091 = vtanh.pop %v3090
    %3093 = vrot.lane.b32.xlu0 %v3091, 64
    %v3094 = vpop.permute.xlu0 %3093
    %v3096 = vmul.f32 %v3079, %v3094
    %v3097 = vmul.f32 %v3096, %v2298
    %3099 = vrot.lane.b32.xlu0 %v3097, 32
    %v3100 = vpop.permute.xlu0 %3099
    %v3102 = vsel %vm244, %v3100, 0.0
    %3103 = vadd.xlane.f32.xlu0 %v3102
    %v3104 = vpop.xlane.xlu0 %3103
    %v3105 = vadd.f32 %v3104, %v2312
    %v3106 = vmul.f32 %v3105, 0.5
    %v3107 = vtanh.pop %v3106
    %v3108 = vmul.f32 %v3107, 0.5
    %v3109 = vadd.f32 %v3108, 0.5
    %s3110 = scalar_lea.vmem %s18, 56
    %3111 = vst.msk [vmem:[%s3110] sm:$0xff] %vm2319, %v3109
    // Predicated region
    $region78: #{rnn_char_tagger_forward.1} parent=1 // pred_check
      _
    $region79: #{rnn_char_tagger_forward.1} parent=1 // pred_check_branch
      %3113 = sbr.rel (0) target = $region81
    $region80: #{rnn_char_tagger_forward.1} parent=1 // pred_region
      _
    $region81: #{rnn_char_tagger_forward.1} parent=1 // pred_fallthru
      _
    // Predicated region
    $region82: #{rnn_char_tagger_forward.1} parent=1 // pred_check
      _
    $region83: #{rnn_char_tagger_forward.1} parent=1 // pred_check_branch
      %3115 = sbr.rel (0) target = $region85
    $region84: #{rnn_char_tagger_forward.1} parent=1 // pred_region
      _
    $region85: #{rnn_char_tagger_forward.1} parent=1 // pred_fallthru
      _
    %3116 = vsyncpa [#allocation6], 1

</llo_original>
